<compile_context>
chip_gen: v7x
topology: tpu7x:2x2x1
jax: 0.10.0
libtpu: 0.0.40
codegen_flags: <defaults>
</compile_context>

<pallas_src>
import functools

import jax
import jax.numpy as jnp
from jax.experimental import pallas as pl
from jax.experimental.pallas import tpu as pltpu


def _round_up(x, m):
    return (x + m - 1) // m * m


def _refconv_kernel(x_ref, w_ref, b_ref, o_ref, patch_ref, *,
                    kh, kw, stride, th, ow, c):
    """One (batch, row-tile) step of the reflection-padded conv.

    x_ref:     (1, Hp, Wp, C)      whole padded image (NHWC), compute dtype
    w_ref:     (KH*KW*C, OC_pad)   im2col weight matrix, compute dtype
    b_ref:     (1, OC_pad)         bias row, float32
    o_ref:     (1, TH, OW, OC_pad) output row tile
    patch_ref: (TH, OW, KH*KW*C)   in-VMEM im2col scratch, compute dtype
    """
    t = pl.program_id(1)
    row0 = pl.multiple_of(t * (th * stride), th * stride)

    # ---- in-VMEM im2col: one sublane-preserving, lane-offset copy per tap.
    # The (M, C*KH*KW) patch matrix never touches HBM.
    for i in range(kh):
        for j in range(kw):
            if stride == 1:
                win = x_ref[0, pl.ds(row0 + i, th), j:j + ow, :]
            else:
                win = x_ref[0, pl.ds(row0 + i, th, stride),
                            pl.ds(j, ow, stride), :]
            tap = i * kw + j
            patch_ref[:, :, tap * c:(tap + 1) * c] = win

    # ---- single wide matmul (K = KH*KW*C), f32 accumulation in registers,
    # bias added once, one store.
    k_dim = kh * kw * c
    oc_pad = o_ref.shape[-1]
    lhs = patch_ref[...].reshape(th * ow, k_dim)          # OW % 8 == 0 -> free
    acc = jnp.dot(lhs, w_ref[...], preferred_element_type=jnp.float32)
    acc = acc + b_ref[...]                                 # (M,OCp) + (1,OCp)
    o_ref[0] = acc.reshape(th, ow, oc_pad).astype(o_ref.dtype)


@functools.partial(jax.jit, static_argnames=("stride", "compute_dtype",
                                              "out_format",
                                              "single_buffer_consts"))
def _reflection_conv_impl(x, weight, bias, *, stride, compute_dtype,
                          out_format, single_buffer_consts):
    n, c, h, w = x.shape
    oc, c_w, kh, kw = weight.shape
    assert c_w == c, (c_w, c)
    pad_h, pad_w = kh // 2, kw // 2
    # ReflectionPad2d requires pad < spatial size.
    assert pad_h < h and pad_w < w, "reflection padding larger than input"

    # Conv geometry (matches PyTorch ReflectionPad2d(k//2) + Conv2d(stride)).
    hp, wp = h + 2 * pad_h, w + 2 * pad_w
    oh = (hp - kh) // stride + 1
    ow = (wp - kw) // stride + 1

    # ---- lane / sublane friendly padded extents -----------------------------
    oc_pad = _round_up(oc, 128)          # lane-dense output stores
    ow_pad = _round_up(ow, 8)            # M = TH*OW_pad is a multiple of 8
    k_dim = kh * kw * c                  # folded contraction dim
    itemsize = jnp.dtype(compute_dtype).itemsize

    # Row-tile size: keep the im2col scratch and the double-buffered output
    # block around <= 4 MiB each.
    per_row_patch = ow_pad * _round_up(k_dim, 128) * itemsize
    per_row_out = ow_pad * oc_pad * x.dtype.itemsize
    budget = 4 * 1024 * 1024
    th = max(1, min(oh,
                    budget // max(per_row_patch, 1),
                    budget // max(2 * per_row_out, 1)))
    # Give the pipeline / second TensorCore at least 2 grid steps if possible.
    if n * (-(-oh // th)) < 2 and oh >= 2:
        th = -(-oh // 2)
    oh_pad = _round_up(oh, th)
    n_tiles = oh_pad // th

    # Padded-image extents needed to cover every (padded) output position.
    hp2 = (oh_pad - 1) * stride + kh
    wp2 = (ow_pad - 1) * stride + kw

    # ---- layout plumbing in plain JAX (single pass each) --------------------
    x_nhwc = jnp.transpose(x, (0, 2, 3, 1))                           # (N,H,W,C)
    x_pad = jnp.pad(x_nhwc, ((0, 0), (pad_h, pad_h), (pad_w, pad_w), (0, 0)),
                    mode="reflect")
    x_pad = jnp.pad(x_pad, ((0, 0), (0, max(0, hp2 - hp)),
                            (0, max(0, wp2 - wp)), (0, 0)))
    x_pad = x_pad[:, :hp2, :wp2, :].astype(compute_dtype)

    # Weights -> (KH*KW*C, OC_pad) so column k = (i*kw+j)*C + c matches the
    # patch scratch ordering.  Bias stays f32 (v5e VPU has no bf16 VALU).
    w_mat = jnp.transpose(weight, (2, 3, 1, 0)).reshape(k_dim, oc)
    w_mat = jnp.pad(w_mat, ((0, 0), (0, oc_pad - oc))).astype(compute_dtype)
    b_row = jnp.pad(bias.astype(jnp.float32), (0, oc_pad - oc)).reshape(1, oc_pad)

    # ---- VMEM accounting (with (8,128) tile padding) ------------------------
    def tile_bytes(s0, s1, isz):
        return _round_up(max(s0, 1), 8) * _round_up(max(s1, 1), 128) * isz

    x_blk = hp2 * tile_bytes(wp2, c, itemsize)
    o_blk = th * tile_bytes(ow_pad, oc_pad, x.dtype.itemsize)
    w_blk = tile_bytes(k_dim, oc_pad, itemsize)
    p_blk = th * tile_bytes(ow_pad, k_dim, itemsize)
    w_bufs = 1 if single_buffer_consts else 2
    vmem_need = 2 * x_blk + 2 * o_blk + w_bufs * (w_blk + tile_bytes(1, oc_pad, 4)) + p_blk

    try:
        vmem_cap = int(pltpu.get_tpu_info().vmem_capacity_bytes)
    except Exception:
        vmem_cap = 64 * 1024 * 1024          # conservative (v7x per-TC) fallback

    compiler_kwargs = dict(dimension_semantics=("parallel", "parallel"))
    # Only raise the scoped-VMEM limit above the smallest per-generation
    # default (16 MiB on v5e); never above ~60% of physical capacity so v7x's
    # 64 MiB keeps headroom for compiler scratch / semaphores.
    if vmem_need > 16 * 1024 * 1024:
        compiler_kwargs["vmem_limit_bytes"] = int(
            min(max(int(1.5 * vmem_need), 32 * 1024 * 1024),
                int(0.6 * vmem_cap)))

    cost = pl.CostEstimate(
        flops=2 * n * oh * ow * kh * kw * c * oc,      # true OC, not OC_pad
        transcendentals=0,
        bytes_accessed=int(x_pad.size * itemsize + w_mat.size * itemsize
                           + b_row.size * 4
                           + n * oh_pad * ow_pad * oc_pad * x.dtype.itemsize),
    )

    kernel = functools.partial(_refconv_kernel, kh=kh, kw=kw, stride=stride,
                               th=th, ow=ow_pad, c=c)

    if single_buffer_consts:
        w_spec = pl.BlockSpec((k_dim, oc_pad), lambda b, t: (0, 0),
                              pipeline_mode=pl.Buffered(1))
        b_spec = pl.BlockSpec((1, oc_pad), lambda b, t: (0, 0),
                              pipeline_mode=pl.Buffered(1))
    else:
        w_spec = pl.BlockSpec((k_dim, oc_pad), lambda b, t: (0, 0))
        b_spec = pl.BlockSpec((1, oc_pad), lambda b, t: (0, 0))

    out = pl.pallas_call(
        kernel,
        out_shape=jax.ShapeDtypeStruct((n, oh_pad, ow_pad, oc_pad), x.dtype),
        grid_spec=pltpu.PrefetchScalarGridSpec(
            num_scalar_prefetch=0,
            grid=(n, n_tiles),
            in_specs=[
                # Whole padded image per batch element; constant across the
                # (inner, fast) row-tile axis so it is only re-DMA'd per batch.
                pl.BlockSpec((1, hp2, wp2, c), lambda b, t: (b, 0, 0, 0)),
                w_spec,
                b_spec,
            ],
            out_specs=pl.BlockSpec((1, th, ow_pad, oc_pad),
                                   lambda b, t: (b, t, 0, 0)),
            scratch_shapes=[pltpu.VMEM((th, ow_pad, k_dim), compute_dtype)],
        ),
        compiler_params=pltpu.CompilerParams(**compiler_kwargs),
        cost_estimate=cost,
    )(x_pad, w_mat, b_row)

    out = out[:, :oh, :ow, :oc]                       # crop the padding
    if out_format == "NHWC":
        return out
    return jnp.transpose(out, (0, 3, 1, 2))           # NCHW (PyTorch layout)


def reflection_conv(x, weight, bias, *, stride=1, compute_dtype=jnp.float32,
                    out_format="NCHW"):
    """Reflection-padded conv2d (PyTorch ReflectionConv forward).

    x: (N,C,H,W) f32; weight: (OC,C,KH,KW) f32; bias: (OC,) f32.
    """
    try:
        return _reflection_conv_impl(x, weight, bias, stride=stride,
                                     compute_dtype=compute_dtype,
                                     out_format=out_format,
                                     single_buffer_consts=True)
    except Exception:
        # pl.Buffered(1) not accepted on this jax version -> fall back to the
        # default double-buffered constant blocks (identical numerics).
        return _reflection_conv_impl(x, weight, bias, stride=stride,
                                     compute_dtype=compute_dtype,
                                     out_format=out_format,
                                     single_buffer_consts=False)


def _reference(x, weight, bias, stride):
    kh, kw = weight.shape[2], weight.shape[3]
    x_pad = jnp.pad(x, ((0, 0), (0, 0), (kh // 2, kh // 2), (kw // 2, kw // 2)),
                    mode="reflect")
    out = jax.lax.conv_general_dilated(
        x_pad, weight, window_strides=(stride, stride), padding="VALID",
        dimension_numbers=("NCHW", "OIHW", "NCHW"))
    return out + bias.reshape(1, -1, 1, 1)


if __name__ == "__main__":
    key = jax.random.PRNGKey(0)
    k_x, k_w, k_b = jax.random.split(key, 3)

    # Small shapes consistent with the module: N=2, C_in=4, H=W=16,
    # C_out=8, kernel_size=3, stride=1.
    N, C_IN, H, W = 2, 4, 16, 16
    C_OUT, KSIZE, STRIDE = 8, 3, 1

    x = jax.random.normal(k_x, (N, C_IN, H, W), dtype=jnp.float32)
    fan_in = C_IN * KSIZE * KSIZE
    bound = 1.0 / (fan_in ** 0.5)
    weight = jax.random.uniform(k_w, (C_OUT, C_IN, KSIZE, KSIZE),
                                minval=-bound, maxval=bound, dtype=jnp.float32)
    bias = jax.random.uniform(k_b, (C_OUT,),
                              minval=-bound, maxval=bound, dtype=jnp.float32)

    ref = jax.block_until_ready(_reference(x, weight, bias, STRIDE))

    # f32 compute path: numerically equivalent to the PyTorch module.
    out = jax.block_until_ready(reflection_conv(x, weight, bias, stride=STRIDE))
    assert out.shape == (N, C_OUT, H, W), out.shape
    err = float(jnp.max(jnp.abs(out - ref)))
    assert err < 1e-4, err

    # bf16 compute path (opt-in): quantizes activations/weights to bf16 before
    # the conv, so it is NOT bit-equivalent to the f32 module — MXU-native on
    # v5e/v6e/v7x and halves the streamed-image HBM bytes; accumulation stays f32.
    out_bf16 = jax.block_until_ready(
        reflection_conv(x, weight, bias, stride=STRIDE, compute_dtype=jnp.bfloat16))
    assert out_bf16.shape == (N, C_OUT, H, W), out_bf16.shape
    err_bf16 = float(jnp.max(jnp.abs(out_bf16 - ref)))
    assert err_bf16 < 1e-1, err_bf16

    print("KERNEL_OK")
</pallas_src>

<mosaic_0001>
module attributes {stable_mosaic.version = 11 : i64} {
  func.func @_refconv_kernel(%arg0: i32, %arg1: i32, %arg2: memref<1x18x18x4xf32, #tpu.memory_space<vmem>>, %arg3: memref<36x128xf32, #tpu.memory_space<vmem>>, %arg4: memref<1x128xf32, #tpu.memory_space<vmem>>, %arg5: memref<1x16x16x128xf32, #tpu.memory_space<vmem>>, %arg6: memref<16x16x36xf32, #tpu.memory_space<vmem>>) attributes {dimension_semantics = [#tpu.dimension_semantics<parallel>, #tpu.dimension_semantics<parallel>], iteration_bounds = array<i64: 2, 1>, scalar_prefetch = 0 : i64, scratch_operands = 1 : i64, tpu.core_type = #tpu.core_type<tc>, window_params = [{transform_indices = @transform_0, window_bounds = array<i64: 1, 18, 18, 4>}, {pipeline_mode = #tpu.pipeline_mode<synchronous>, transform_indices = @transform_1, window_bounds = array<i64: 36, 128>}, {pipeline_mode = #tpu.pipeline_mode<synchronous>, transform_indices = @transform_2, window_bounds = array<i64: 1, 128>}, {transform_indices = @transform_3, window_bounds = array<i64: 1, 16, 16, 128>}]} {
    %c16_i32 = arith.constant 16 : i32
    %0 = arith.muli %arg1, %c16_i32 : i32
    %1 = tpu.assume_multiple %0, 16 : i32
    %c0_i32 = arith.constant 0 : i32
    %2 = arith.addi %1, %c0_i32 : i32
    %c0 = arith.constant 0 : index
    %3 = arith.index_cast %2 : i32 to index
    %c0_0 = arith.constant 0 : index
    %c0_1 = arith.constant 0 : index
    %4 = vector.load %arg2[%c0, %3, %c0_0, %c0_1] : memref<1x18x18x4xf32, #tpu.memory_space<vmem>>, vector<1x16x16x4xf32>
    %5 = vector.shape_cast %4 : vector<1x16x16x4xf32> to vector<16x16x4xf32>
    %c0_2 = arith.constant 0 : index
    %c0_3 = arith.constant 0 : index
    %c0_4 = arith.constant 0 : index
    %6 = vector.load %arg6[%c0_2, %c0_3, %c0_4] : memref<16x16x36xf32, #tpu.memory_space<vmem>>, vector<16x16x4xf32>
    tpu.vector_store %arg6[%c0_2, %c0_3, %c0_4], %5 {strides = array<i32>} : memref<16x16x36xf32, #tpu.memory_space<vmem>>, vector<16x16x4xf32>,
    %c0_i32_5 = arith.constant 0 : i32
    %7 = arith.addi %1, %c0_i32_5 : i32
    %c0_6 = arith.constant 0 : index
    %8 = arith.index_cast %7 : i32 to index
    %c1 = arith.constant 1 : index
    %c0_7 = arith.constant 0 : index
    %9 = vector.load %arg2[%c0_6, %8, %c1, %c0_7] : memref<1x18x18x4xf32, #tpu.memory_space<vmem>>, vector<1x16x16x4xf32>
    %10 = vector.shape_cast %9 : vector<1x16x16x4xf32> to vector<16x16x4xf32>
    %c0_8 = arith.constant 0 : index
    %c0_9 = arith.constant 0 : index
    %c4 = arith.constant 4 : index
    %11 = vector.load %arg6[%c0_8, %c0_9, %c4] : memref<16x16x36xf32, #tpu.memory_space<vmem>>, vector<16x16x4xf32>
    tpu.vector_store %arg6[%c0_8, %c0_9, %c4], %10 {strides = array<i32>} : memref<16x16x36xf32, #tpu.memory_space<vmem>>, vector<16x16x4xf32>,
    %c0_i32_10 = arith.constant 0 : i32
    %12 = arith.addi %1, %c0_i32_10 : i32
    %c0_11 = arith.constant 0 : index
    %13 = arith.index_cast %12 : i32 to index
    %c2 = arith.constant 2 : index
    %c0_12 = arith.constant 0 : index
    %14 = vector.load %arg2[%c0_11, %13, %c2, %c0_12] : memref<1x18x18x4xf32, #tpu.memory_space<vmem>>, vector<1x16x16x4xf32>
    %15 = vector.shape_cast %14 : vector<1x16x16x4xf32> to vector<16x16x4xf32>
    %c0_13 = arith.constant 0 : index
    %c0_14 = arith.constant 0 : index
    %c8 = arith.constant 8 : index
    %16 = vector.load %arg6[%c0_13, %c0_14, %c8] : memref<16x16x36xf32, #tpu.memory_space<vmem>>, vector<16x16x4xf32>
    tpu.vector_store %arg6[%c0_13, %c0_14, %c8], %15 {strides = array<i32>} : memref<16x16x36xf32, #tpu.memory_space<vmem>>, vector<16x16x4xf32>,
    %c1_i32 = arith.constant 1 : i32
    %17 = arith.addi %1, %c1_i32 : i32
    %c0_15 = arith.constant 0 : index
    %18 = arith.index_cast %17 : i32 to index
    %c0_16 = arith.constant 0 : index
    %c0_17 = arith.constant 0 : index
    %19 = vector.load %arg2[%c0_15, %18, %c0_16, %c0_17] : memref<1x18x18x4xf32, #tpu.memory_space<vmem>>, vector<1x16x16x4xf32>
    %20 = vector.shape_cast %19 : vector<1x16x16x4xf32> to vector<16x16x4xf32>
    %c0_18 = arith.constant 0 : index
    %c0_19 = arith.constant 0 : index
    %c12 = arith.constant 12 : index
    %21 = vector.load %arg6[%c0_18, %c0_19, %c12] : memref<16x16x36xf32, #tpu.memory_space<vmem>>, vector<16x16x4xf32>
    tpu.vector_store %arg6[%c0_18, %c0_19, %c12], %20 {strides = array<i32>} : memref<16x16x36xf32, #tpu.memory_space<vmem>>, vector<16x16x4xf32>,
    %c1_i32_20 = arith.constant 1 : i32
    %22 = arith.addi %1, %c1_i32_20 : i32
    %c0_21 = arith.constant 0 : index
    %23 = arith.index_cast %22 : i32 to index
    %c1_22 = arith.constant 1 : index
    %c0_23 = arith.constant 0 : index
    %24 = vector.load %arg2[%c0_21, %23, %c1_22, %c0_23] : memref<1x18x18x4xf32, #tpu.memory_space<vmem>>, vector<1x16x16x4xf32>
    %25 = vector.shape_cast %24 : vector<1x16x16x4xf32> to vector<16x16x4xf32>
    %c0_24 = arith.constant 0 : index
    %c0_25 = arith.constant 0 : index
    %c16 = arith.constant 16 : index
    %26 = vector.load %arg6[%c0_24, %c0_25, %c16] : memref<16x16x36xf32, #tpu.memory_space<vmem>>, vector<16x16x4xf32>
    tpu.vector_store %arg6[%c0_24, %c0_25, %c16], %25 {strides = array<i32>} : memref<16x16x36xf32, #tpu.memory_space<vmem>>, vector<16x16x4xf32>,
    %c1_i32_26 = arith.constant 1 : i32
    %27 = arith.addi %1, %c1_i32_26 : i32
    %c0_27 = arith.constant 0 : index
    %28 = arith.index_cast %27 : i32 to index
    %c2_28 = arith.constant 2 : index
    %c0_29 = arith.constant 0 : index
    %29 = vector.load %arg2[%c0_27, %28, %c2_28, %c0_29] : memref<1x18x18x4xf32, #tpu.memory_space<vmem>>, vector<1x16x16x4xf32>
    %30 = vector.shape_cast %29 : vector<1x16x16x4xf32> to vector<16x16x4xf32>
    %c0_30 = arith.constant 0 : index
    %c0_31 = arith.constant 0 : index
    %c20 = arith.constant 20 : index
    %31 = vector.load %arg6[%c0_30, %c0_31, %c20] : memref<16x16x36xf32, #tpu.memory_space<vmem>>, vector<16x16x4xf32>
    tpu.vector_store %arg6[%c0_30, %c0_31, %c20], %30 {strides = array<i32>} : memref<16x16x36xf32, #tpu.memory_space<vmem>>, vector<16x16x4xf32>,
    %c2_i32 = arith.constant 2 : i32
    %32 = arith.addi %1, %c2_i32 : i32
    %c0_32 = arith.constant 0 : index
    %33 = arith.index_cast %32 : i32 to index
    %c0_33 = arith.constant 0 : index
    %c0_34 = arith.constant 0 : index
    %34 = vector.load %arg2[%c0_32, %33, %c0_33, %c0_34] : memref<1x18x18x4xf32, #tpu.memory_space<vmem>>, vector<1x16x16x4xf32>
    %35 = vector.shape_cast %34 : vector<1x16x16x4xf32> to vector<16x16x4xf32>
    %c0_35 = arith.constant 0 : index
    %c0_36 = arith.constant 0 : index
    %c24 = arith.constant 24 : index
    %36 = vector.load %arg6[%c0_35, %c0_36, %c24] : memref<16x16x36xf32, #tpu.memory_space<vmem>>, vector<16x16x4xf32>
    tpu.vector_store %arg6[%c0_35, %c0_36, %c24], %35 {strides = array<i32>} : memref<16x16x36xf32, #tpu.memory_space<vmem>>, vector<16x16x4xf32>,
    %c2_i32_37 = arith.constant 2 : i32
    %37 = arith.addi %1, %c2_i32_37 : i32
    %c0_38 = arith.constant 0 : index
    %38 = arith.index_cast %37 : i32 to index
    %c1_39 = arith.constant 1 : index
    %c0_40 = arith.constant 0 : index
    %39 = vector.load %arg2[%c0_38, %38, %c1_39, %c0_40] : memref<1x18x18x4xf32, #tpu.memory_space<vmem>>, vector<1x16x16x4xf32>
    %40 = vector.shape_cast %39 : vector<1x16x16x4xf32> to vector<16x16x4xf32>
    %c0_41 = arith.constant 0 : index
    %c0_42 = arith.constant 0 : index
    %c28 = arith.constant 28 : index
    %41 = vector.load %arg6[%c0_41, %c0_42, %c28] : memref<16x16x36xf32, #tpu.memory_space<vmem>>, vector<16x16x4xf32>
    tpu.vector_store %arg6[%c0_41, %c0_42, %c28], %40 {strides = array<i32>} : memref<16x16x36xf32, #tpu.memory_space<vmem>>, vector<16x16x4xf32>,
    %c2_i32_43 = arith.constant 2 : i32
    %42 = arith.addi %1, %c2_i32_43 : i32
    %c0_44 = arith.constant 0 : index
    %43 = arith.index_cast %42 : i32 to index
    %c2_45 = arith.constant 2 : index
    %c0_46 = arith.constant 0 : index
    %44 = vector.load %arg2[%c0_44, %43, %c2_45, %c0_46] : memref<1x18x18x4xf32, #tpu.memory_space<vmem>>, vector<1x16x16x4xf32>
    %45 = vector.shape_cast %44 : vector<1x16x16x4xf32> to vector<16x16x4xf32>
    %c0_47 = arith.constant 0 : index
    %c0_48 = arith.constant 0 : index
    %c32 = arith.constant 32 : index
    %46 = vector.load %arg6[%c0_47, %c0_48, %c32] : memref<16x16x36xf32, #tpu.memory_space<vmem>>, vector<16x16x4xf32>
    tpu.vector_store %arg6[%c0_47, %c0_48, %c32], %45 {strides = array<i32>} : memref<16x16x36xf32, #tpu.memory_space<vmem>>, vector<16x16x4xf32>,
    %c0_49 = arith.constant 0 : index
    %c0_50 = arith.constant 0 : index
    %c0_51 = arith.constant 0 : index
    %47 = vector.load %arg6[%c0_49, %c0_50, %c0_51] : memref<16x16x36xf32, #tpu.memory_space<vmem>>, vector<16x16x36xf32>
    %48 = vector.shape_cast %47 : vector<16x16x36xf32> to vector<256x36xf32>
    %c0_52 = arith.constant 0 : index
    %c0_53 = arith.constant 0 : index
    %49 = vector.load %arg3[%c0_52, %c0_53] : memref<36x128xf32, #tpu.memory_space<vmem>>, vector<36x128xf32>
    %cst = arith.constant dense<0.000000e+00> : vector<256x128xf32>
    %50 = tpu.matmul %48, %49, %cst {dimension_numbers = #tpu.dot_dimension_numbers<[1], [0], [0], [1], [0, 0, 1, 1], [], []>} : vector<256x36xf32>, vector<36x128xf32>, vector<256x128xf32> -> vector<256x128xf32>
    %c0_54 = arith.constant 0 : index
    %c0_55 = arith.constant 0 : index
    %51 = vector.load %arg4[%c0_54, %c0_55] : memref<1x128xf32, #tpu.memory_space<vmem>>, vector<1x128xf32>
    %52 = vector.broadcast %51 : vector<1x128xf32> to vector<256x128xf32>
    %53 = arith.addf %50, %52 : vector<256x128xf32>
    %54 = vector.shape_cast %53 : vector<256x128xf32> to vector<16x16x128xf32>
    %c0_56 = arith.constant 0 : index
    %c0_57 = arith.constant 0 : index
    %c0_58 = arith.constant 0 : index
    %c0_59 = arith.constant 0 : index
    %55 = vector.load %arg5[%c0_56, %c0_57, %c0_58, %c0_59] : memref<1x16x16x128xf32, #tpu.memory_space<vmem>>, vector<1x16x16x128xf32>
    %56 = vector.shape_cast %55 : vector<1x16x16x128xf32> to vector<16x16x128xf32>
    %57 = vector.shape_cast %54 : vector<16x16x128xf32> to vector<1x16x16x128xf32>
    tpu.vector_store %arg5[%c0_56, %c0_57, %c0_58, %c0_59], %57 {strides = array<i32>} : memref<1x16x16x128xf32, #tpu.memory_space<vmem>>, vector<1x16x16x128xf32>,
    return
  }
  func.func @transform_0(%arg0: i32, %arg1: i32) -> (i32, i32, i32, i32) {
    %c0_i32 = arith.constant 0 : i32
    %c0_i32_0 = arith.constant 0 : i32
    %c0_i32_1 = arith.constant 0 : i32
    %c0_i32_2 = arith.constant 0 : i32
    return %arg0, %c0_i32, %c0_i32_0, %c0_i32_1 : i32, i32, i32, i32
  }
  func.func @transform_1(%arg0: i32, %arg1: i32) -> (i32, i32) {
    %c0_i32 = arith.constant 0 : i32
    %c0_i32_0 = arith.constant 0 : i32
    %c0_i32_1 = arith.constant 0 : i32
    return %c0_i32, %c0_i32_0 : i32, i32
  }
  func.func @transform_2(%arg0: i32, %arg1: i32) -> (i32, i32) {
    %c0_i32 = arith.constant 0 : i32
    %c0_i32_0 = arith.constant 0 : i32
    %c0_i32_1 = arith.constant 0 : i32
    return %c0_i32, %c0_i32_0 : i32, i32
  }
  func.func @transform_3(%arg0: i32, %arg1: i32) -> (i32, i32, i32, i32) {
    %c0_i32 = arith.constant 0 : i32
    %c0_i32_0 = arith.constant 0 : i32
    %c0_i32_1 = arith.constant 0 : i32
    return %arg0, %arg1, %c0_i32, %c0_i32_0 : i32, i32, i32, i32
  }
}

module attributes {stable_mosaic.version = 11 : i64} {
  func.func @_refconv_kernel(%arg0: i32, %arg1: i32, %arg2: memref<1x18x18x4xf32, #tpu.memory_space<vmem>>, %arg3: memref<36x128xf32, #tpu.memory_space<vmem>>, %arg4: memref<1x128xf32, #tpu.memory_space<vmem>>, %arg5: memref<1x16x16x128xf32, #tpu.memory_space<vmem>>, %arg6: memref<16x16x36xf32, #tpu.memory_space<vmem>>) attributes {dimension_semantics = [#tpu.dimension_semantics<parallel>, #tpu.dimension_semantics<parallel>], iteration_bounds = array<i64: 2, 1>, scalar_prefetch = 0 : i64, scratch_operands = 1 : i64, tpu.core_type = #tpu.core_type<tc>, window_params = [{transform_indices = @transform_0, window_bounds = array<i64: 1, 18, 18, 4>}, {pipeline_mode = #tpu.pipeline_mode<synchronous>, transform_indices = @transform_1, window_bounds = array<i64: 36, 128>}, {pipeline_mode = #tpu.pipeline_mode<synchronous>, transform_indices = @transform_2, window_bounds = array<i64: 1, 128>}, {transform_indices = @transform_3, window_bounds = array<i64: 1, 16, 16, 128>}]} {
    %c16_i32 = arith.constant 16 : i32
    %0 = arith.muli %arg1, %c16_i32 : i32
    %1 = tpu.assume_multiple %0, 16 : i32
    %c0_i32 = arith.constant 0 : i32
    %2 = arith.addi %1, %c0_i32 : i32
    %c0 = arith.constant 0 : index
    %3 = arith.index_cast %2 : i32 to index
    %c0_0 = arith.constant 0 : index
    %c0_1 = arith.constant 0 : index
    %4 = vector.load %arg2[%c0, %3, %c0_0, %c0_1] : memref<1x18x18x4xf32, #tpu.memory_space<vmem>>, vector<1x16x16x4xf32>
    %5 = vector.shape_cast %4 : vector<1x16x16x4xf32> to vector<16x16x4xf32>
    %c0_2 = arith.constant 0 : index
    %c0_3 = arith.constant 0 : index
    %c0_4 = arith.constant 0 : index
    %6 = vector.load %arg6[%c0_2, %c0_3, %c0_4] : memref<16x16x36xf32, #tpu.memory_space<vmem>>, vector<16x16x4xf32>
    tpu.vector_store %arg6[%c0_2, %c0_3, %c0_4], %5 {strides = array<i32>} : memref<16x16x36xf32, #tpu.memory_space<vmem>>, vector<16x16x4xf32>,
    %c0_i32_5 = arith.constant 0 : i32
    %7 = arith.addi %1, %c0_i32_5 : i32
    %c0_6 = arith.constant 0 : index
    %8 = arith.index_cast %7 : i32 to index
    %c1 = arith.constant 1 : index
    %c0_7 = arith.constant 0 : index
    %9 = vector.load %arg2[%c0_6, %8, %c1, %c0_7] : memref<1x18x18x4xf32, #tpu.memory_space<vmem>>, vector<1x16x16x4xf32>
    %10 = vector.shape_cast %9 : vector<1x16x16x4xf32> to vector<16x16x4xf32>
    %c0_8 = arith.constant 0 : index
    %c0_9 = arith.constant 0 : index
    %c4 = arith.constant 4 : index
    %11 = vector.load %arg6[%c0_8, %c0_9, %c4] : memref<16x16x36xf32, #tpu.memory_space<vmem>>, vector<16x16x4xf32>
    tpu.vector_store %arg6[%c0_8, %c0_9, %c4], %10 {strides = array<i32>} : memref<16x16x36xf32, #tpu.memory_space<vmem>>, vector<16x16x4xf32>,
    %c0_i32_10 = arith.constant 0 : i32
    %12 = arith.addi %1, %c0_i32_10 : i32
    %c0_11 = arith.constant 0 : index
    %13 = arith.index_cast %12 : i32 to index
    %c2 = arith.constant 2 : index
    %c0_12 = arith.constant 0 : index
    %14 = vector.load %arg2[%c0_11, %13, %c2, %c0_12] : memref<1x18x18x4xf32, #tpu.memory_space<vmem>>, vector<1x16x16x4xf32>
    %15 = vector.shape_cast %14 : vector<1x16x16x4xf32> to vector<16x16x4xf32>
    %c0_13 = arith.constant 0 : index
    %c0_14 = arith.constant 0 : index
    %c8 = arith.constant 8 : index
    %16 = vector.load %arg6[%c0_13, %c0_14, %c8] : memref<16x16x36xf32, #tpu.memory_space<vmem>>, vector<16x16x4xf32>
    tpu.vector_store %arg6[%c0_13, %c0_14, %c8], %15 {strides = array<i32>} : memref<16x16x36xf32, #tpu.memory_space<vmem>>, vector<16x16x4xf32>,
    %c1_i32 = arith.constant 1 : i32
    %17 = arith.addi %1, %c1_i32 : i32
    %c0_15 = arith.constant 0 : index
    %18 = arith.index_cast %17 : i32 to index
    %c0_16 = arith.constant 0 : index
    %c0_17 = arith.constant 0 : index
    %19 = vector.load %arg2[%c0_15, %18, %c0_16, %c0_17] : memref<1x18x18x4xf32, #tpu.memory_space<vmem>>, vector<1x16x16x4xf32>
    %20 = vector.shape_cast %19 : vector<1x16x16x4xf32> to vector<16x16x4xf32>
    %c0_18 = arith.constant 0 : index
    %c0_19 = arith.constant 0 : index
    %c12 = arith.constant 12 : index
    %21 = vector.load %arg6[%c0_18, %c0_19, %c12] : memref<16x16x36xf32, #tpu.memory_space<vmem>>, vector<16x16x4xf32>
    tpu.vector_store %arg6[%c0_18, %c0_19, %c12], %20 {strides = array<i32>} : memref<16x16x36xf32, #tpu.memory_space<vmem>>, vector<16x16x4xf32>,
    %c1_i32_20 = arith.constant 1 : i32
    %22 = arith.addi %1, %c1_i32_20 : i32
    %c0_21 = arith.constant 0 : index
    %23 = arith.index_cast %22 : i32 to index
    %c1_22 = arith.constant 1 : index
    %c0_23 = arith.constant 0 : index
    %24 = vector.load %arg2[%c0_21, %23, %c1_22, %c0_23] : memref<1x18x18x4xf32, #tpu.memory_space<vmem>>, vector<1x16x16x4xf32>
    %25 = vector.shape_cast %24 : vector<1x16x16x4xf32> to vector<16x16x4xf32>
    %c0_24 = arith.constant 0 : index
    %c0_25 = arith.constant 0 : index
    %c16 = arith.constant 16 : index
    %26 = vector.load %arg6[%c0_24, %c0_25, %c16] : memref<16x16x36xf32, #tpu.memory_space<vmem>>, vector<16x16x4xf32>
    tpu.vector_store %arg6[%c0_24, %c0_25, %c16], %25 {strides = array<i32>} : memref<16x16x36xf32, #tpu.memory_space<vmem>>, vector<16x16x4xf32>,
    %c1_i32_26 = arith.constant 1 : i32
    %27 = arith.addi %1, %c1_i32_26 : i32
    %c0_27 = arith.constant 0 : index
    %28 = arith.index_cast %27 : i32 to index
    %c2_28 = arith.constant 2 : index
    %c0_29 = arith.constant 0 : index
    %29 = vector.load %arg2[%c0_27, %28, %c2_28, %c0_29] : memref<1x18x18x4xf32, #tpu.memory_space<vmem>>, vector<1x16x16x4xf32>
    %30 = vector.shape_cast %29 : vector<1x16x16x4xf32> to vector<16x16x4xf32>
    %c0_30 = arith.constant 0 : index
    %c0_31 = arith.constant 0 : index
    %c20 = arith.constant 20 : index
    %31 = vector.load %arg6[%c0_30, %c0_31, %c20] : memref<16x16x36xf32, #tpu.memory_space<vmem>>, vector<16x16x4xf32>
    tpu.vector_store %arg6[%c0_30, %c0_31, %c20], %30 {strides = array<i32>} : memref<16x16x36xf32, #tpu.memory_space<vmem>>, vector<16x16x4xf32>,
    %c2_i32 = arith.constant 2 : i32
    %32 = arith.addi %1, %c2_i32 : i32
    %c0_32 = arith.constant 0 : index
    %33 = arith.index_cast %32 : i32 to index
    %c0_33 = arith.constant 0 : index
    %c0_34 = arith.constant 0 : index
    %34 = vector.load %arg2[%c0_32, %33, %c0_33, %c0_34] : memref<1x18x18x4xf32, #tpu.memory_space<vmem>>, vector<1x16x16x4xf32>
    %35 = vector.shape_cast %34 : vector<1x16x16x4xf32> to vector<16x16x4xf32>
    %c0_35 = arith.constant 0 : index
    %c0_36 = arith.constant 0 : index
    %c24 = arith.constant 24 : index
    %36 = vector.load %arg6[%c0_35, %c0_36, %c24] : memref<16x16x36xf32, #tpu.memory_space<vmem>>, vector<16x16x4xf32>
    tpu.vector_store %arg6[%c0_35, %c0_36, %c24], %35 {strides = array<i32>} : memref<16x16x36xf32, #tpu.memory_space<vmem>>, vector<16x16x4xf32>,
    %c2_i32_37 = arith.constant 2 : i32
    %37 = arith.addi %1, %c2_i32_37 : i32
    %c0_38 = arith.constant 0 : index
    %38 = arith.index_cast %37 : i32 to index
    %c1_39 = arith.constant 1 : index
    %c0_40 = arith.constant 0 : index
    %39 = vector.load %arg2[%c0_38, %38, %c1_39, %c0_40] : memref<1x18x18x4xf32, #tpu.memory_space<vmem>>, vector<1x16x16x4xf32>
    %40 = vector.shape_cast %39 : vector<1x16x16x4xf32> to vector<16x16x4xf32>
    %c0_41 = arith.constant 0 : index
    %c0_42 = arith.constant 0 : index
    %c28 = arith.constant 28 : index
    %41 = vector.load %arg6[%c0_41, %c0_42, %c28] : memref<16x16x36xf32, #tpu.memory_space<vmem>>, vector<16x16x4xf32>
    tpu.vector_store %arg6[%c0_41, %c0_42, %c28], %40 {strides = array<i32>} : memref<16x16x36xf32, #tpu.memory_space<vmem>>, vector<16x16x4xf32>,
    %c2_i32_43 = arith.constant 2 : i32
    %42 = arith.addi %1, %c2_i32_43 : i32
    %c0_44 = arith.constant 0 : index
    %43 = arith.index_cast %42 : i32 to index
    %c2_45 = arith.constant 2 : index
    %c0_46 = arith.constant 0 : index
    %44 = vector.load %arg2[%c0_44, %43, %c2_45, %c0_46] : memref<1x18x18x4xf32, #tpu.memory_space<vmem>>, vector<1x16x16x4xf32>
    %45 = vector.shape_cast %44 : vector<1x16x16x4xf32> to vector<16x16x4xf32>
    %c0_47 = arith.constant 0 : index
    %c0_48 = arith.constant 0 : index
    %c32 = arith.constant 32 : index
    %46 = vector.load %arg6[%c0_47, %c0_48, %c32] : memref<16x16x36xf32, #tpu.memory_space<vmem>>, vector<16x16x4xf32>
    tpu.vector_store %arg6[%c0_47, %c0_48, %c32], %45 {strides = array<i32>} : memref<16x16x36xf32, #tpu.memory_space<vmem>>, vector<16x16x4xf32>,
    %c0_49 = arith.constant 0 : index
    %c0_50 = arith.constant 0 : index
    %c0_51 = arith.constant 0 : index
    %47 = vector.load %arg6[%c0_49, %c0_50, %c0_51] : memref<16x16x36xf32, #tpu.memory_space<vmem>>, vector<16x16x36xf32>
    %48 = vector.shape_cast %47 : vector<16x16x36xf32> to vector<256x36xf32>
    %c0_52 = arith.constant 0 : index
    %c0_53 = arith.constant 0 : index
    %49 = vector.load %arg3[%c0_52, %c0_53] : memref<36x128xf32, #tpu.memory_space<vmem>>, vector<36x128xf32>
    %cst = arith.constant dense<0.000000e+00> : vector<256x128xf32>
    %50 = tpu.matmul %48, %49, %cst {dimension_numbers = #tpu.dot_dimension_numbers<[1], [0], [0], [1], [0, 0, 1, 1], [], []>} : vector<256x36xf32>, vector<36x128xf32>, vector<256x128xf32> -> vector<256x128xf32>
    %c0_54 = arith.constant 0 : index
    %c0_55 = arith.constant 0 : index
    %51 = vector.load %arg4[%c0_54, %c0_55] : memref<1x128xf32, #tpu.memory_space<vmem>>, vector<1x128xf32>
    %52 = vector.broadcast %51 : vector<1x128xf32> to vector<256x128xf32>
    %53 = arith.addf %50, %52 : vector<256x128xf32>
    %54 = vector.shape_cast %53 : vector<256x128xf32> to vector<16x16x128xf32>
    %c0_56 = arith.constant 0 : index
    %c0_57 = arith.constant 0 : index
    %c0_58 = arith.constant 0 : index
    %c0_59 = arith.constant 0 : index
    %55 = vector.load %arg5[%c0_56, %c0_57, %c0_58, %c0_59] : memref<1x16x16x128xf32, #tpu.memory_space<vmem>>, vector<1x16x16x128xf32>
    %56 = vector.shape_cast %55 : vector<1x16x16x128xf32> to vector<16x16x128xf32>
    %57 = vector.shape_cast %54 : vector<16x16x128xf32> to vector<1x16x16x128xf32>
    tpu.vector_store %arg5[%c0_56, %c0_57, %c0_58, %c0_59], %57 {strides = array<i32>} : memref<1x16x16x128xf32, #tpu.memory_space<vmem>>, vector<1x16x16x128xf32>,
    return
  }
  func.func @transform_0(%arg0: i32, %arg1: i32) -> (i32, i32, i32, i32) {
    %c0_i32 = arith.constant 0 : i32
    %c0_i32_0 = arith.constant 0 : i32
    %c0_i32_1 = arith.constant 0 : i32
    %c0_i32_2 = arith.constant 0 : i32
    return %arg0, %c0_i32, %c0_i32_0, %c0_i32_1 : i32, i32, i32, i32
  }
  func.func @transform_1(%arg0: i32, %arg1: i32) -> (i32, i32) {
    %c0_i32 = arith.constant 0 : i32
    %c0_i32_0 = arith.constant 0 : i32
    %c0_i32_1 = arith.constant 0 : i32
    return %c0_i32, %c0_i32_0 : i32, i32
  }
  func.func @transform_2(%arg0: i32, %arg1: i32) -> (i32, i32) {
    %c0_i32 = arith.constant 0 : i32
    %c0_i32_0 = arith.constant 0 : i32
    %c0_i32_1 = arith.constant 0 : i32
    return %c0_i32, %c0_i32_0 : i32, i32
  }
  func.func @transform_3(%arg0: i32, %arg1: i32) -> (i32, i32, i32, i32) {
    %c0_i32 = arith.constant 0 : i32
    %c0_i32_0 = arith.constant 0 : i32
    %c0_i32_1 = arith.constant 0 : i32
    return %arg0, %arg1, %c0_i32, %c0_i32_0 : i32, i32, i32, i32
  }
}

</mosaic_0001>

<llo_original>
// kernel: _reflection_conv_impl.1
$region0: #{_reflection_conv_impl.1}
  #allocation0 [shape = 'u32[]', space=smem, size = 0x4, offset = 0x4, fixed_abs, tag = 'smem constant byte address 0x4 - core index']
  #allocation1 [shape = 'u32[144,128]{1,0:T(1,128)}', space=vmem, size = 0x12000, scoped, tag = 'internal scratch']
  #allocation2 [shape = 'f32[16,16,36]{2,1,0:T(8,128)}', space=vmem, size = 0x20000, scoped, tag = 'scratch operand']
  %s0 = inlined_call_operand.vmem [shape: f32[2,18,18,4], index: 0, kind: input, shape index: {}]
  %s1 = inlined_call_operand.vmem [shape: f32[36,128], index: 1, kind: input, shape index: {}]
  %s2 = inlined_call_operand.vmem [shape: f32[1,128], index: 2, kind: input, shape index: {}]
  %s3 = inlined_call_operand.vmem [shape: f32[2,16,16,128], index: 3, kind: output, shape index: {}]
  %s4 = sld [smem:[#allocation0]]
  $region45: #{_reflection_conv_impl.1} parent=0
    _
  %s6 = ssub.s32 1, %s4
  %s7 = scalar_select 0, %s6, %s4
  loop: start=0, step=1, limit=4
  $region2: #{_reflection_conv_impl.1} parent=0 // loop_pre_header
    _
  $region3: #{_reflection_conv_impl.1} parent=0 // loop_header
    %s9 = sphi 0, %s13
    %p10 = scmp.ge.s32.totalorder %s9, 4
    %s16 = sphi 0, %s28
    %s17 = sphi 0, %s24
    %s18 = sphi 0, %s16
    %s19 = sphi 0, %s17
    %s20 = sphi 0, %s18
    %s21 = sphi 0, %s19
    %s31 = sphi 0, %s33
    %s34 = sphi 0, %s31
    %s35 = sphi 0, %s34
    %s51 = sphi 0, %s35
    %s55 = sphi 0, %s55
    %s57 = sphi 0, %s55
    %s58 = sphi 0, %s57
    %s72 = sphi 0, %s58
    %s76 = sphi 0, %s76
    %s78 = sphi 0, %s76
    %s79 = sphi 0, %s78
    %s93 = sphi 0, %s79
    %s101 = sphi 0, %s103
    %s104 = sphi 0, %s101
    %s105 = sphi 0, %s104
    %s121 = sphi 0, %s105
  $region4: #{_reflection_conv_impl.1} parent=0 // loop_header_branch
    %12 = sbr.rel (%p10) target = $region8
  $region5: #{_reflection_conv_impl.1} parent=0 // loop_body
    %s14 = ssub.s32 %s9, 1
    %s15 = ssub.s32 %s9, 2
    %s22 = sadd.s32 1, %s17
    %p23 = scmp.ge.s32.totalorder %s22, 1
    %s24 = scalar_select %p23, 0, %s22
    %s25 = sadd.s32 1, %s16
    %s26 = scalar_select %p23, %s25, %s16
    %p27 = scmp.ge.s32.totalorder %s26, 2
    %s28 = scalar_select %p27, 0, %s26
    %s29 = ssub.s32 %s16, %s28
    %p30 = scmp.eq.s32.totalorder %s29, 0
    %s32 = sadd.s32 %s31, 1
    %s33 = scalar_select %p30, %s31, %s32
    %p36 = pneg %p30
    %p37 = scmp.eq.s32.totalorder %s9, 1
    %p38 = por %p36, %p37
    %p39 = scmp.ne.s32.totalorder %s31, %s34
    %p40 = scmp.eq.s32.totalorder %s9, 0
    %p41 = por %p39, %p40
    %p42 = scmp.ne.s32.totalorder %s31, %s34
    %p43 = scmp.eq.s32.totalorder %s14, 1
    %p44 = por %p42, %p43
    %p45 = scmp.ne.s32.totalorder %s34, %s35
    %p46 = scmp.eq.s32.totalorder %s14, 0
    %p47 = por %p45, %p46
    %p48 = scmp.ne.s32.totalorder %s34, %s35
    %p49 = scmp.eq.s32.totalorder %s15, 1
    %p50 = por %p48, %p49
    %p52 = scmp.ne.s32.totalorder %s35, %s51
    %p53 = scmp.eq.s32.totalorder %s15, 0
    %p54 = por %p52, %p53
    %s56 = sadd.s32 %s55, 1
    %p59 = scmp.eq.s32.totalorder %s9, 1
    %p60 = scmp.ne.s32.totalorder %s55, %s57
    %p61 = scmp.eq.s32.totalorder %s9, 0
    %p62 = por %p60, %p61
    %p63 = scmp.ne.s32.totalorder %s55, %s57
    %p64 = scmp.eq.s32.totalorder %s14, 1
    %p65 = por %p63, %p64
    %p66 = scmp.ne.s32.totalorder %s57, %s58
    %p67 = scmp.eq.s32.totalorder %s14, 0
    %p68 = por %p66, %p67
    %p69 = scmp.ne.s32.totalorder %s57, %s58
    %p70 = scmp.eq.s32.totalorder %s15, 1
    %p71 = por %p69, %p70
    %p73 = scmp.ne.s32.totalorder %s58, %s72
    %p74 = scmp.eq.s32.totalorder %s15, 0
    %p75 = por %p73, %p74
    %s77 = sadd.s32 %s76, 1
    %p80 = scmp.eq.s32.totalorder %s9, 1
    %p81 = scmp.ne.s32.totalorder %s76, %s78
    %p82 = scmp.eq.s32.totalorder %s9, 0
    %p83 = por %p81, %p82
    %p84 = scmp.ne.s32.totalorder %s76, %s78
    %p85 = scmp.eq.s32.totalorder %s14, 1
    %p86 = por %p84, %p85
    %p87 = scmp.ne.s32.totalorder %s78, %s79
    %p88 = scmp.eq.s32.totalorder %s14, 0
    %p89 = por %p87, %p88
    %p90 = scmp.ne.s32.totalorder %s78, %s79
    %p91 = scmp.eq.s32.totalorder %s15, 1
    %p92 = por %p90, %p91
    %p94 = scmp.ne.s32.totalorder %s79, %s93
    %p95 = scmp.eq.s32.totalorder %s15, 0
    %p96 = por %p94, %p95
    %s97 = ssub.s32 %s16, %s28
    %s98 = ssub.s32 %s17, %s24
    %s99 = sor.u32 %s97, %s98
    %p100 = scmp.eq.s32.totalorder %s99, 0
    %s102 = sadd.s32 %s101, 1
    %s103 = scalar_select %p100, %s101, %s102
    %p106 = pneg %p100
    %p107 = scmp.eq.s32.totalorder %s9, 1
    %p108 = por %p106, %p107
    %p109 = scmp.ne.s32.totalorder %s101, %s104
    %p110 = scmp.eq.s32.totalorder %s9, 0
    %p111 = por %p109, %p110
    %p112 = scmp.ne.s32.totalorder %s101, %s104
    %p113 = scmp.eq.s32.totalorder %s14, 1
    %p114 = por %p112, %p113
    %p115 = scmp.ne.s32.totalorder %s104, %s105
    %p116 = scmp.eq.s32.totalorder %s14, 0
    %p117 = por %p115, %p116
    %p118 = scmp.ne.s32.totalorder %s104, %s105
    %p119 = scmp.eq.s32.totalorder %s15, 1
    %p120 = por %p118, %p119
    %p122 = scmp.ne.s32.totalorder %s105, %s121
    %p123 = scmp.eq.s32.totalorder %s15, 0
    %p124 = por %p122, %p123
    %p125 = scmp.le.s32.totalorder 1, %s9
    %p126 = scmp.lt.s32.totalorder %s9, 3
    %p127 = pnand %p125, %p126
    %p128 = pneg %p127
    // Predicated region
    $region9: #{_reflection_conv_impl.1} parent=5 // pred_check
      _
    $region10: #{_reflection_conv_impl.1} parent=5 // pred_check_branch
      %130 = sbr.rel (%p127) target = $region12
    $region11: #{_reflection_conv_impl.1} parent=5 // pred_region
      %s131 = ssub.s32 %s9, 1
      // Predicated region
      $region13: #{_reflection_conv_impl.1} parent=11 // pred_check
        %p132 = pneg %p68
      $region14: #{_reflection_conv_impl.1} parent=11 // pred_check_branch
        %134 = sbr.rel (%p132) target = $region16
      $region15: #{_reflection_conv_impl.1} parent=11 // pred_region
        _
      $region16: #{_reflection_conv_impl.1} parent=11 // pred_fallthru
        _
      // Predicated region
      $region17: #{_reflection_conv_impl.1} parent=11 // pred_check
        %p135 = pneg %p89
      $region18: #{_reflection_conv_impl.1} parent=11 // pred_check_branch
        %137 = sbr.rel (%p135) target = $region20
      $region19: #{_reflection_conv_impl.1} parent=11 // pred_region
        _
      $region20: #{_reflection_conv_impl.1} parent=11 // pred_fallthru
        _
    $region12: #{_reflection_conv_impl.1} parent=5 // pred_fallthru
      _
    %p138 = scmp.lt.s32.totalorder %s9, 2
    // Predicated region
    $region21: #{_reflection_conv_impl.1} parent=5 // pred_check
      %p139 = pneg %p138
    $region22: #{_reflection_conv_impl.1} parent=5 // pred_check_branch
      %141 = sbr.rel (%p139) target = $region24
    $region23: #{_reflection_conv_impl.1} parent=5 // pred_region
      // Predicated region
      $region25: #{_reflection_conv_impl.1} parent=23 // pred_check
        %p142 = pneg %p41
      $region26: #{_reflection_conv_impl.1} parent=23 // pred_check_branch
        %144 = sbr.rel (%p142) target = $region28
      $region27: #{_reflection_conv_impl.1} parent=23 // pred_region
        %p145 = scmp.lt.s32.totalorder %s16, 1
        %s146 = scalar_select %p145, %s16, 1
        %s147 = smul.addr %s146, 54
        %s148 = smul.addr %s147, 8
        %s149 = scalar_lea.vmem %s0, %s148
      $region28: #{_reflection_conv_impl.1} parent=23 // pred_fallthru
        _
    $region24: #{_reflection_conv_impl.1} parent=5 // pred_fallthru
      _
    %p150 = scmp.le.s32.totalorder 1, %s9
    %p151 = scmp.lt.s32.totalorder %s9, 3
    %p152 = pnand %p150, %p151
    %p153 = pneg %p152
    // Predicated region
    $region29: #{_reflection_conv_impl.1} parent=5 // pred_check
      _
    $region30: #{_reflection_conv_impl.1} parent=5 // pred_check_branch
      %155 = sbr.rel (%p152) target = $region32
    $region31: #{_reflection_conv_impl.1} parent=5 // pred_region
      %s156 = ssub.s32 %s9, 1
      %p157 = scmp.lt.s32.totalorder %s18, 1
      %s158 = scalar_select %p157, %s18, 1
      %s159 = smul.addr %s158, 54
      %s160 = smul.addr %s159, 8
      %s161 = scalar_lea.vmem %s0, %s160
      %p162 = pneg %p47
      %p163 = pneg %p44
      %p164 = pneg %p68
      %p165 = pneg %p65
      %p166 = pneg %p89
      %p167 = pneg %p86
      %p168 = pneg %p117
      %p169 = pneg %p114
      %s170 = smul.u32 16, %s19
      %p171 = scmp.lt.s32.totalorder %s18, 1
      %s172 = scalar_select %p171, %s18, 1
      %p173 = scmp.lt.s32.totalorder %s170, 15
      %s174 = scalar_select %p173, %s170, 15
      %s175 = smul.addr %s174, 2
      %s176 = smul.addr %s172, 32
      %s177 = sadd.s32 %s175, %s176
      %s178 = smul.addr %s177, 8
      %s179 = scalar_lea.vmem %s3, %s178
      %p180 = scmp.lt.s32.totalorder %s18, 1
      %s181 = scalar_select %p180, %s18, 1
      %s182 = smul.addr %s181, 54
      %s183 = smul.addr %s182, 8
      %s184 = scalar_lea.vmem %s0, %s183
      %s185 = smul.u32 16, %s19
      %p186 = scmp.lt.s32.totalorder %s18, 1
      %s187 = scalar_select %p186, %s18, 1
      %p188 = scmp.lt.s32.totalorder %s185, 15
      %s189 = scalar_select %p188, %s185, 15
      %s190 = smul.addr %s189, 2
      %s191 = smul.addr %s187, 32
      %s192 = sadd.s32 %s190, %s191
      %s193 = smul.addr %s192, 8
      %s194 = scalar_lea.vmem %s3, %s193
      %s195 = smul.u32 16, %s19
      %s196 = smul.u32 %s19, 16
      %s197 = smul.u32 %s196, 24
      %s198 = scalar_lea.vmem %s184, %s197
      %v199 = vld [vmem:[%s198] sm:$0xff]
      %v200 = vld [vmem:[%s198 + $0x8] sm:$0xff]
      %v201 = vld [vmem:[%s198 + $0x18] sm:$0xff]
      %v202 = vld [vmem:[%s198 + $0x20] sm:$0xff]
      %v203 = vld [vmem:[%s198 + $0x30] sm:$0xff]
      %v204 = vld [vmem:[%s198 + $0x38] sm:$0xff]
      %v205 = vld [vmem:[%s198 + $0x48] sm:$0xff]
      %v206 = vld [vmem:[%s198 + $0x50] sm:$0xff]
      %v207 = vld [vmem:[%s198 + $0x60] sm:$0xff]
      %v208 = vld [vmem:[%s198 + $0x68] sm:$0xff]
      %v209 = vld [vmem:[%s198 + $0x78] sm:$0xff]
      %v210 = vld [vmem:[%s198 + $0x80] sm:$0xff]
      %v211 = vld [vmem:[%s198 + $0x90] sm:$0xff]
      %v212 = vld [vmem:[%s198 + $0x98] sm:$0xff]
      %v213 = vld [vmem:[%s198 + $0xa8] sm:$0xff]
      %v214 = vld [vmem:[%s198 + $0xb0] sm:$0xff]
      %v215 = vld [vmem:[%s198 + $0xc0] sm:$0xff]
      %v216 = vld [vmem:[%s198 + $0xc8] sm:$0xff]
      %v217 = vld [vmem:[%s198 + $0xd8] sm:$0xff]
      %v218 = vld [vmem:[%s198 + $0xe0] sm:$0xff]
      %v219 = vld [vmem:[%s198 + $0xf0] sm:$0xff]
      %v220 = vld [vmem:[%s198 + $0xf8] sm:$0xff]
      %v221 = vld [vmem:[%s198 + $0x108] sm:$0xff]
      %v222 = vld [vmem:[%s198 + $0x110] sm:$0xff]
      %v223 = vld [vmem:[%s198 + $0x120] sm:$0xff]
      %v224 = vld [vmem:[%s198 + $0x128] sm:$0xff]
      %v225 = vld [vmem:[%s198 + $0x138] sm:$0xff]
      %v226 = vld [vmem:[%s198 + $0x140] sm:$0xff]
      %v227 = vld [vmem:[%s198 + $0x150] sm:$0xff]
      %v228 = vld [vmem:[%s198 + $0x158] sm:$0xff]
      %v229 = vld [vmem:[%s198 + $0x168] sm:$0xff]
      %v230 = vld [vmem:[%s198 + $0x170] sm:$0xff]
      %vm231 = vcmask 31744
      %232 = vst.msk [vmem:[#allocation2] sm:$0xff] %vm231, %v199
      %233 = vst.msk [vmem:[#allocation2 + $0x8] sm:$0xff] %vm231, %v200
      %234 = vst.msk [vmem:[#allocation2 + $0x10] sm:$0xff] %vm231, %v201
      %235 = vst.msk [vmem:[#allocation2 + $0x18] sm:$0xff] %vm231, %v202
      %236 = vst.msk [vmem:[#allocation2 + $0x20] sm:$0xff] %vm231, %v203
      %237 = vst.msk [vmem:[#allocation2 + $0x28] sm:$0xff] %vm231, %v204
      %238 = vst.msk [vmem:[#allocation2 + $0x30] sm:$0xff] %vm231, %v205
      %239 = vst.msk [vmem:[#allocation2 + $0x38] sm:$0xff] %vm231, %v206
      %240 = vst.msk [vmem:[#allocation2 + $0x40] sm:$0xff] %vm231, %v207
      %241 = vst.msk [vmem:[#allocation2 + $0x48] sm:$0xff] %vm231, %v208
      %242 = vst.msk [vmem:[#allocation2 + $0x50] sm:$0xff] %vm231, %v209
      %243 = vst.msk [vmem:[#allocation2 + $0x58] sm:$0xff] %vm231, %v210
      %244 = vst.msk [vmem:[#allocation2 + $0x60] sm:$0xff] %vm231, %v211
      %245 = vst.msk [vmem:[#allocation2 + $0x68] sm:$0xff] %vm231, %v212
      %246 = vst.msk [vmem:[#allocation2 + $0x70] sm:$0xff] %vm231, %v213
      %247 = vst.msk [vmem:[#allocation2 + $0x78] sm:$0xff] %vm231, %v214
      %248 = vst.msk [vmem:[#allocation2 + $0x80] sm:$0xff] %vm231, %v215
      %249 = vst.msk [vmem:[#allocation2 + $0x88] sm:$0xff] %vm231, %v216
      %250 = vst.msk [vmem:[#allocation2 + $0x90] sm:$0xff] %vm231, %v217
      %251 = vst.msk [vmem:[#allocation2 + $0x98] sm:$0xff] %vm231, %v218
      %252 = vst.msk [vmem:[#allocation2 + $0xa0] sm:$0xff] %vm231, %v219
      %253 = vst.msk [vmem:[#allocation2 + $0xa8] sm:$0xff] %vm231, %v220
      %254 = vst.msk [vmem:[#allocation2 + $0xb0] sm:$0xff] %vm231, %v221
      %255 = vst.msk [vmem:[#allocation2 + $0xb8] sm:$0xff] %vm231, %v222
      %256 = vst.msk [vmem:[#allocation2 + $0xc0] sm:$0xff] %vm231, %v223
      %257 = vst.msk [vmem:[#allocation2 + $0xc8] sm:$0xff] %vm231, %v224
      %258 = vst.msk [vmem:[#allocation2 + $0xd0] sm:$0xff] %vm231, %v225
      %259 = vst.msk [vmem:[#allocation2 + $0xd8] sm:$0xff] %vm231, %v226
      %260 = vst.msk [vmem:[#allocation2 + $0xe0] sm:$0xff] %vm231, %v227
      %261 = vst.msk [vmem:[#allocation2 + $0xe8] sm:$0xff] %vm231, %v228
      %262 = vst.msk [vmem:[#allocation2 + $0xf0] sm:$0xff] %vm231, %v229
      %263 = vst.msk [vmem:[#allocation2 + $0xf8] sm:$0xff] %vm231, %v230
      %v264 = vld [vmem:[%s198 + $0x1] sm:$0xff]
      %v265 = vld [vmem:[%s198 + $0x9] sm:$0xff]
      %v266 = vld [vmem:[%s198 + $0x19] sm:$0xff]
      %v267 = vld [vmem:[%s198 + $0x21] sm:$0xff]
      %v268 = vld [vmem:[%s198 + $0x31] sm:$0xff]
      %v269 = vld [vmem:[%s198 + $0x39] sm:$0xff]
      %v270 = vld [vmem:[%s198 + $0x49] sm:$0xff]
      %v271 = vld [vmem:[%s198 + $0x51] sm:$0xff]
      %v272 = vld [vmem:[%s198 + $0x61] sm:$0xff]
      %v273 = vld [vmem:[%s198 + $0x69] sm:$0xff]
      %v274 = vld [vmem:[%s198 + $0x79] sm:$0xff]
      %v275 = vld [vmem:[%s198 + $0x81] sm:$0xff]
      %v276 = vld [vmem:[%s198 + $0x91] sm:$0xff]
      %v277 = vld [vmem:[%s198 + $0x99] sm:$0xff]
      %v278 = vld [vmem:[%s198 + $0xa9] sm:$0xff]
      %v279 = vld [vmem:[%s198 + $0xb1] sm:$0xff]
      %v280 = vld [vmem:[%s198 + $0xc1] sm:$0xff]
      %v281 = vld [vmem:[%s198 + $0xc9] sm:$0xff]
      %v282 = vld [vmem:[%s198 + $0xd9] sm:$0xff]
      %v283 = vld [vmem:[%s198 + $0xe1] sm:$0xff]
      %v284 = vld [vmem:[%s198 + $0xf1] sm:$0xff]
      %v285 = vld [vmem:[%s198 + $0xf9] sm:$0xff]
      %v286 = vld [vmem:[%s198 + $0x109] sm:$0xff]
      %v287 = vld [vmem:[%s198 + $0x111] sm:$0xff]
      %v288 = vld [vmem:[%s198 + $0x121] sm:$0xff]
      %v289 = vld [vmem:[%s198 + $0x129] sm:$0xff]
      %v290 = vld [vmem:[%s198 + $0x139] sm:$0xff]
      %v291 = vld [vmem:[%s198 + $0x141] sm:$0xff]
      %v292 = vld [vmem:[%s198 + $0x151] sm:$0xff]
      %v293 = vld [vmem:[%s198 + $0x159] sm:$0xff]
      %v294 = vld [vmem:[%s198 + $0x169] sm:$0xff]
      %v295 = vld [vmem:[%s198 + $0x171] sm:$0xff]
      %328 = vrot.lane.b32.xlu0 %v264, 4
      %v329 = vpop.permute.xlu0 %328
      %330 = vrot.lane.b32.xlu0 %v265, 4
      %v331 = vpop.permute.xlu0 %330
      %332 = vrot.lane.b32.xlu0 %v266, 4
      %v333 = vpop.permute.xlu0 %332
      %334 = vrot.lane.b32.xlu0 %v267, 4
      %v335 = vpop.permute.xlu0 %334
      %336 = vrot.lane.b32.xlu0 %v268, 4
      %v337 = vpop.permute.xlu0 %336
      %338 = vrot.lane.b32.xlu0 %v269, 4
      %v339 = vpop.permute.xlu0 %338
      %340 = vrot.lane.b32.xlu0 %v270, 4
      %v341 = vpop.permute.xlu0 %340
      %342 = vrot.lane.b32.xlu0 %v271, 4
      %v343 = vpop.permute.xlu0 %342
      %344 = vrot.lane.b32.xlu0 %v272, 4
      %v345 = vpop.permute.xlu0 %344
      %346 = vrot.lane.b32.xlu0 %v273, 4
      %v347 = vpop.permute.xlu0 %346
      %348 = vrot.lane.b32.xlu0 %v274, 4
      %v349 = vpop.permute.xlu0 %348
      %350 = vrot.lane.b32.xlu0 %v275, 4
      %v351 = vpop.permute.xlu0 %350
      %352 = vrot.lane.b32.xlu0 %v276, 4
      %v353 = vpop.permute.xlu0 %352
      %354 = vrot.lane.b32.xlu0 %v277, 4
      %v355 = vpop.permute.xlu0 %354
      %356 = vrot.lane.b32.xlu0 %v278, 4
      %v357 = vpop.permute.xlu0 %356
      %358 = vrot.lane.b32.xlu0 %v279, 4
      %v359 = vpop.permute.xlu0 %358
      %360 = vrot.lane.b32.xlu0 %v280, 4
      %v361 = vpop.permute.xlu0 %360
      %362 = vrot.lane.b32.xlu0 %v281, 4
      %v363 = vpop.permute.xlu0 %362
      %364 = vrot.lane.b32.xlu0 %v282, 4
      %v365 = vpop.permute.xlu0 %364
      %366 = vrot.lane.b32.xlu0 %v283, 4
      %v367 = vpop.permute.xlu0 %366
      %368 = vrot.lane.b32.xlu0 %v284, 4
      %v369 = vpop.permute.xlu0 %368
      %370 = vrot.lane.b32.xlu0 %v285, 4
      %v371 = vpop.permute.xlu0 %370
      %372 = vrot.lane.b32.xlu0 %v286, 4
      %v373 = vpop.permute.xlu0 %372
      %374 = vrot.lane.b32.xlu0 %v287, 4
      %v375 = vpop.permute.xlu0 %374
      %376 = vrot.lane.b32.xlu0 %v288, 4
      %v377 = vpop.permute.xlu0 %376
      %378 = vrot.lane.b32.xlu0 %v289, 4
      %v379 = vpop.permute.xlu0 %378
      %380 = vrot.lane.b32.xlu0 %v290, 4
      %v381 = vpop.permute.xlu0 %380
      %382 = vrot.lane.b32.xlu0 %v291, 4
      %v383 = vpop.permute.xlu0 %382
      %384 = vrot.lane.b32.xlu0 %v292, 4
      %v385 = vpop.permute.xlu0 %384
      %386 = vrot.lane.b32.xlu0 %v293, 4
      %v387 = vpop.permute.xlu0 %386
      %388 = vrot.lane.b32.xlu0 %v294, 4
      %v389 = vpop.permute.xlu0 %388
      %390 = vrot.lane.b32.xlu0 %v295, 4
      %v391 = vpop.permute.xlu0 %390
      %vm424 = vcmask 64544
      %425 = vst.msk [vmem:[#allocation2] sm:$0xff] %vm424, %v329
      %426 = vst.msk [vmem:[#allocation2 + $0x8] sm:$0xff] %vm424, %v331
      %427 = vst.msk [vmem:[#allocation2 + $0x10] sm:$0xff] %vm424, %v333
      %428 = vst.msk [vmem:[#allocation2 + $0x18] sm:$0xff] %vm424, %v335
      %429 = vst.msk [vmem:[#allocation2 + $0x20] sm:$0xff] %vm424, %v337
      %430 = vst.msk [vmem:[#allocation2 + $0x28] sm:$0xff] %vm424, %v339
      %431 = vst.msk [vmem:[#allocation2 + $0x30] sm:$0xff] %vm424, %v341
      %432 = vst.msk [vmem:[#allocation2 + $0x38] sm:$0xff] %vm424, %v343
      %433 = vst.msk [vmem:[#allocation2 + $0x40] sm:$0xff] %vm424, %v345
      %434 = vst.msk [vmem:[#allocation2 + $0x48] sm:$0xff] %vm424, %v347
      %435 = vst.msk [vmem:[#allocation2 + $0x50] sm:$0xff] %vm424, %v349
      %436 = vst.msk [vmem:[#allocation2 + $0x58] sm:$0xff] %vm424, %v351
      %437 = vst.msk [vmem:[#allocation2 + $0x60] sm:$0xff] %vm424, %v353
      %438 = vst.msk [vmem:[#allocation2 + $0x68] sm:$0xff] %vm424, %v355
      %439 = vst.msk [vmem:[#allocation2 + $0x70] sm:$0xff] %vm424, %v357
      %440 = vst.msk [vmem:[#allocation2 + $0x78] sm:$0xff] %vm424, %v359
      %441 = vst.msk [vmem:[#allocation2 + $0x80] sm:$0xff] %vm424, %v361
      %442 = vst.msk [vmem:[#allocation2 + $0x88] sm:$0xff] %vm424, %v363
      %443 = vst.msk [vmem:[#allocation2 + $0x90] sm:$0xff] %vm424, %v365
      %444 = vst.msk [vmem:[#allocation2 + $0x98] sm:$0xff] %vm424, %v367
      %445 = vst.msk [vmem:[#allocation2 + $0xa0] sm:$0xff] %vm424, %v369
      %446 = vst.msk [vmem:[#allocation2 + $0xa8] sm:$0xff] %vm424, %v371
      %447 = vst.msk [vmem:[#allocation2 + $0xb0] sm:$0xff] %vm424, %v373
      %448 = vst.msk [vmem:[#allocation2 + $0xb8] sm:$0xff] %vm424, %v375
      %449 = vst.msk [vmem:[#allocation2 + $0xc0] sm:$0xff] %vm424, %v377
      %450 = vst.msk [vmem:[#allocation2 + $0xc8] sm:$0xff] %vm424, %v379
      %451 = vst.msk [vmem:[#allocation2 + $0xd0] sm:$0xff] %vm424, %v381
      %452 = vst.msk [vmem:[#allocation2 + $0xd8] sm:$0xff] %vm424, %v383
      %453 = vst.msk [vmem:[#allocation2 + $0xe0] sm:$0xff] %vm424, %v385
      %454 = vst.msk [vmem:[#allocation2 + $0xe8] sm:$0xff] %vm424, %v387
      %455 = vst.msk [vmem:[#allocation2 + $0xf0] sm:$0xff] %vm424, %v389
      %456 = vst.msk [vmem:[#allocation2 + $0xf8] sm:$0xff] %vm424, %v391
      %v457 = vld [vmem:[%s198 + $0x2] sm:$0xff]
      %v458 = vld [vmem:[%s198 + $0xa] sm:$0xff]
      %v459 = vld [vmem:[%s198 + $0x1a] sm:$0xff]
      %v460 = vld [vmem:[%s198 + $0x22] sm:$0xff]
      %v461 = vld [vmem:[%s198 + $0x32] sm:$0xff]
      %v462 = vld [vmem:[%s198 + $0x3a] sm:$0xff]
      %v463 = vld [vmem:[%s198 + $0x4a] sm:$0xff]
      %v464 = vld [vmem:[%s198 + $0x52] sm:$0xff]
      %v465 = vld [vmem:[%s198 + $0x62] sm:$0xff]
      %v466 = vld [vmem:[%s198 + $0x6a] sm:$0xff]
      %v467 = vld [vmem:[%s198 + $0x7a] sm:$0xff]
      %v468 = vld [vmem:[%s198 + $0x82] sm:$0xff]
      %v469 = vld [vmem:[%s198 + $0x92] sm:$0xff]
      %v470 = vld [vmem:[%s198 + $0x9a] sm:$0xff]
      %v471 = vld [vmem:[%s198 + $0xaa] sm:$0xff]
      %v472 = vld [vmem:[%s198 + $0xb2] sm:$0xff]
      %v473 = vld [vmem:[%s198 + $0xc2] sm:$0xff]
      %v474 = vld [vmem:[%s198 + $0xca] sm:$0xff]
      %v475 = vld [vmem:[%s198 + $0xda] sm:$0xff]
      %v476 = vld [vmem:[%s198 + $0xe2] sm:$0xff]
      %v477 = vld [vmem:[%s198 + $0xf2] sm:$0xff]
      %v478 = vld [vmem:[%s198 + $0xfa] sm:$0xff]
      %v479 = vld [vmem:[%s198 + $0x10a] sm:$0xff]
      %v480 = vld [vmem:[%s198 + $0x112] sm:$0xff]
      %v481 = vld [vmem:[%s198 + $0x122] sm:$0xff]
      %v482 = vld [vmem:[%s198 + $0x12a] sm:$0xff]
      %v483 = vld [vmem:[%s198 + $0x13a] sm:$0xff]
      %v484 = vld [vmem:[%s198 + $0x142] sm:$0xff]
      %v485 = vld [vmem:[%s198 + $0x152] sm:$0xff]
      %v486 = vld [vmem:[%s198 + $0x15a] sm:$0xff]
      %v487 = vld [vmem:[%s198 + $0x16a] sm:$0xff]
      %v488 = vld [vmem:[%s198 + $0x172] sm:$0xff]
      %521 = vrot.lane.b32.xlu0 %v457, 8
      %v522 = vpop.permute.xlu0 %521
      %523 = vrot.lane.b32.xlu0 %v458, 8
      %v524 = vpop.permute.xlu0 %523
      %525 = vrot.lane.b32.xlu0 %v459, 8
      %v526 = vpop.permute.xlu0 %525
      %527 = vrot.lane.b32.xlu0 %v460, 8
      %v528 = vpop.permute.xlu0 %527
      %529 = vrot.lane.b32.xlu0 %v461, 8
      %v530 = vpop.permute.xlu0 %529
      %531 = vrot.lane.b32.xlu0 %v462, 8
      %v532 = vpop.permute.xlu0 %531
      %533 = vrot.lane.b32.xlu0 %v463, 8
      %v534 = vpop.permute.xlu0 %533
      %535 = vrot.lane.b32.xlu0 %v464, 8
      %v536 = vpop.permute.xlu0 %535
      %537 = vrot.lane.b32.xlu0 %v465, 8
      %v538 = vpop.permute.xlu0 %537
      %539 = vrot.lane.b32.xlu0 %v466, 8
      %v540 = vpop.permute.xlu0 %539
      %541 = vrot.lane.b32.xlu0 %v467, 8
      %v542 = vpop.permute.xlu0 %541
      %543 = vrot.lane.b32.xlu0 %v468, 8
      %v544 = vpop.permute.xlu0 %543
      %545 = vrot.lane.b32.xlu0 %v469, 8
      %v546 = vpop.permute.xlu0 %545
      %547 = vrot.lane.b32.xlu0 %v470, 8
      %v548 = vpop.permute.xlu0 %547
      %549 = vrot.lane.b32.xlu0 %v471, 8
      %v550 = vpop.permute.xlu0 %549
      %551 = vrot.lane.b32.xlu0 %v472, 8
      %v552 = vpop.permute.xlu0 %551
      %553 = vrot.lane.b32.xlu0 %v473, 8
      %v554 = vpop.permute.xlu0 %553
      %555 = vrot.lane.b32.xlu0 %v474, 8
      %v556 = vpop.permute.xlu0 %555
      %557 = vrot.lane.b32.xlu0 %v475, 8
      %v558 = vpop.permute.xlu0 %557
      %559 = vrot.lane.b32.xlu0 %v476, 8
      %v560 = vpop.permute.xlu0 %559
      %561 = vrot.lane.b32.xlu0 %v477, 8
      %v562 = vpop.permute.xlu0 %561
      %563 = vrot.lane.b32.xlu0 %v478, 8
      %v564 = vpop.permute.xlu0 %563
      %565 = vrot.lane.b32.xlu0 %v479, 8
      %v566 = vpop.permute.xlu0 %565
      %567 = vrot.lane.b32.xlu0 %v480, 8
      %v568 = vpop.permute.xlu0 %567
      %569 = vrot.lane.b32.xlu0 %v481, 8
      %v570 = vpop.permute.xlu0 %569
      %571 = vrot.lane.b32.xlu0 %v482, 8
      %v572 = vpop.permute.xlu0 %571
      %573 = vrot.lane.b32.xlu0 %v483, 8
      %v574 = vpop.permute.xlu0 %573
      %575 = vrot.lane.b32.xlu0 %v484, 8
      %v576 = vpop.permute.xlu0 %575
      %577 = vrot.lane.b32.xlu0 %v485, 8
      %v578 = vpop.permute.xlu0 %577
      %579 = vrot.lane.b32.xlu0 %v486, 8
      %v580 = vpop.permute.xlu0 %579
      %581 = vrot.lane.b32.xlu0 %v487, 8
      %v582 = vpop.permute.xlu0 %581
      %583 = vrot.lane.b32.xlu0 %v488, 8
      %v584 = vpop.permute.xlu0 %583
      %vm617 = vcmask 97344
      %618 = vst.msk [vmem:[#allocation2] sm:$0xff] %vm617, %v522
      %619 = vst.msk [vmem:[#allocation2 + $0x8] sm:$0xff] %vm617, %v524
      %620 = vst.msk [vmem:[#allocation2 + $0x10] sm:$0xff] %vm617, %v526
      %621 = vst.msk [vmem:[#allocation2 + $0x18] sm:$0xff] %vm617, %v528
      %622 = vst.msk [vmem:[#allocation2 + $0x20] sm:$0xff] %vm617, %v530
      %623 = vst.msk [vmem:[#allocation2 + $0x28] sm:$0xff] %vm617, %v532
      %624 = vst.msk [vmem:[#allocation2 + $0x30] sm:$0xff] %vm617, %v534
      %625 = vst.msk [vmem:[#allocation2 + $0x38] sm:$0xff] %vm617, %v536
      %626 = vst.msk [vmem:[#allocation2 + $0x40] sm:$0xff] %vm617, %v538
      %627 = vst.msk [vmem:[#allocation2 + $0x48] sm:$0xff] %vm617, %v540
      %628 = vst.msk [vmem:[#allocation2 + $0x50] sm:$0xff] %vm617, %v542
      %629 = vst.msk [vmem:[#allocation2 + $0x58] sm:$0xff] %vm617, %v544
      %630 = vst.msk [vmem:[#allocation2 + $0x60] sm:$0xff] %vm617, %v546
      %631 = vst.msk [vmem:[#allocation2 + $0x68] sm:$0xff] %vm617, %v548
      %632 = vst.msk [vmem:[#allocation2 + $0x70] sm:$0xff] %vm617, %v550
      %633 = vst.msk [vmem:[#allocation2 + $0x78] sm:$0xff] %vm617, %v552
      %634 = vst.msk [vmem:[#allocation2 + $0x80] sm:$0xff] %vm617, %v554
      %635 = vst.msk [vmem:[#allocation2 + $0x88] sm:$0xff] %vm617, %v556
      %636 = vst.msk [vmem:[#allocation2 + $0x90] sm:$0xff] %vm617, %v558
      %637 = vst.msk [vmem:[#allocation2 + $0x98] sm:$0xff] %vm617, %v560
      %638 = vst.msk [vmem:[#allocation2 + $0xa0] sm:$0xff] %vm617, %v562
      %639 = vst.msk [vmem:[#allocation2 + $0xa8] sm:$0xff] %vm617, %v564
      %640 = vst.msk [vmem:[#allocation2 + $0xb0] sm:$0xff] %vm617, %v566
      %641 = vst.msk [vmem:[#allocation2 + $0xb8] sm:$0xff] %vm617, %v568
      %642 = vst.msk [vmem:[#allocation2 + $0xc0] sm:$0xff] %vm617, %v570
      %643 = vst.msk [vmem:[#allocation2 + $0xc8] sm:$0xff] %vm617, %v572
      %644 = vst.msk [vmem:[#allocation2 + $0xd0] sm:$0xff] %vm617, %v574
      %645 = vst.msk [vmem:[#allocation2 + $0xd8] sm:$0xff] %vm617, %v576
      %646 = vst.msk [vmem:[#allocation2 + $0xe0] sm:$0xff] %vm617, %v578
      %647 = vst.msk [vmem:[#allocation2 + $0xe8] sm:$0xff] %vm617, %v580
      %648 = vst.msk [vmem:[#allocation2 + $0xf0] sm:$0xff] %vm617, %v582
      %649 = vst.msk [vmem:[#allocation2 + $0xf8] sm:$0xff] %vm617, %v584
      %s650 = sadd.s32 %s196, 1
      %s651 = smul.u32 %s650, 24
      %s652 = scalar_lea.vmem %s184, %s651
      %v653 = vld [vmem:[%s652] sm:$0xff]
      %v654 = vld [vmem:[%s652 + $0x8] sm:$0xff]
      %v655 = vld [vmem:[%s652 + $0x18] sm:$0xff]
      %v656 = vld [vmem:[%s652 + $0x20] sm:$0xff]
      %v657 = vld [vmem:[%s652 + $0x30] sm:$0xff]
      %v658 = vld [vmem:[%s652 + $0x38] sm:$0xff]
      %v659 = vld [vmem:[%s652 + $0x48] sm:$0xff]
      %v660 = vld [vmem:[%s652 + $0x50] sm:$0xff]
      %v661 = vld [vmem:[%s652 + $0x60] sm:$0xff]
      %v662 = vld [vmem:[%s652 + $0x68] sm:$0xff]
      %v663 = vld [vmem:[%s652 + $0x78] sm:$0xff]
      %v664 = vld [vmem:[%s652 + $0x80] sm:$0xff]
      %v665 = vld [vmem:[%s652 + $0x90] sm:$0xff]
      %v666 = vld [vmem:[%s652 + $0x98] sm:$0xff]
      %v667 = vld [vmem:[%s652 + $0xa8] sm:$0xff]
      %v668 = vld [vmem:[%s652 + $0xb0] sm:$0xff]
      %v669 = vld [vmem:[%s652 + $0xc0] sm:$0xff]
      %v670 = vld [vmem:[%s652 + $0xc8] sm:$0xff]
      %v671 = vld [vmem:[%s652 + $0xd8] sm:$0xff]
      %v672 = vld [vmem:[%s652 + $0xe0] sm:$0xff]
      %v673 = vld [vmem:[%s652 + $0xf0] sm:$0xff]
      %v674 = vld [vmem:[%s652 + $0xf8] sm:$0xff]
      %v675 = vld [vmem:[%s652 + $0x108] sm:$0xff]
      %v676 = vld [vmem:[%s652 + $0x110] sm:$0xff]
      %v677 = vld [vmem:[%s652 + $0x120] sm:$0xff]
      %v678 = vld [vmem:[%s652 + $0x128] sm:$0xff]
      %v679 = vld [vmem:[%s652 + $0x138] sm:$0xff]
      %v680 = vld [vmem:[%s652 + $0x140] sm:$0xff]
      %v681 = vld [vmem:[%s652 + $0x150] sm:$0xff]
      %v682 = vld [vmem:[%s652 + $0x158] sm:$0xff]
      %v683 = vld [vmem:[%s652 + $0x168] sm:$0xff]
      %v684 = vld [vmem:[%s652 + $0x170] sm:$0xff]
      %717 = vrot.lane.b32.xlu0 %v653, 12
      %v718 = vpop.permute.xlu0 %717
      %719 = vrot.lane.b32.xlu0 %v654, 12
      %v720 = vpop.permute.xlu0 %719
      %721 = vrot.lane.b32.xlu0 %v655, 12
      %v722 = vpop.permute.xlu0 %721
      %723 = vrot.lane.b32.xlu0 %v656, 12
      %v724 = vpop.permute.xlu0 %723
      %725 = vrot.lane.b32.xlu0 %v657, 12
      %v726 = vpop.permute.xlu0 %725
      %727 = vrot.lane.b32.xlu0 %v658, 12
      %v728 = vpop.permute.xlu0 %727
      %729 = vrot.lane.b32.xlu0 %v659, 12
      %v730 = vpop.permute.xlu0 %729
      %731 = vrot.lane.b32.xlu0 %v660, 12
      %v732 = vpop.permute.xlu0 %731
      %733 = vrot.lane.b32.xlu0 %v661, 12
      %v734 = vpop.permute.xlu0 %733
      %735 = vrot.lane.b32.xlu0 %v662, 12
      %v736 = vpop.permute.xlu0 %735
      %737 = vrot.lane.b32.xlu0 %v663, 12
      %v738 = vpop.permute.xlu0 %737
      %739 = vrot.lane.b32.xlu0 %v664, 12
      %v740 = vpop.permute.xlu0 %739
      %741 = vrot.lane.b32.xlu0 %v665, 12
      %v742 = vpop.permute.xlu0 %741
      %743 = vrot.lane.b32.xlu0 %v666, 12
      %v744 = vpop.permute.xlu0 %743
      %745 = vrot.lane.b32.xlu0 %v667, 12
      %v746 = vpop.permute.xlu0 %745
      %747 = vrot.lane.b32.xlu0 %v668, 12
      %v748 = vpop.permute.xlu0 %747
      %749 = vrot.lane.b32.xlu0 %v669, 12
      %v750 = vpop.permute.xlu0 %749
      %751 = vrot.lane.b32.xlu0 %v670, 12
      %v752 = vpop.permute.xlu0 %751
      %753 = vrot.lane.b32.xlu0 %v671, 12
      %v754 = vpop.permute.xlu0 %753
      %755 = vrot.lane.b32.xlu0 %v672, 12
      %v756 = vpop.permute.xlu0 %755
      %757 = vrot.lane.b32.xlu0 %v673, 12
      %v758 = vpop.permute.xlu0 %757
      %759 = vrot.lane.b32.xlu0 %v674, 12
      %v760 = vpop.permute.xlu0 %759
      %761 = vrot.lane.b32.xlu0 %v675, 12
      %v762 = vpop.permute.xlu0 %761
      %763 = vrot.lane.b32.xlu0 %v676, 12
      %v764 = vpop.permute.xlu0 %763
      %765 = vrot.lane.b32.xlu0 %v677, 12
      %v766 = vpop.permute.xlu0 %765
      %767 = vrot.lane.b32.xlu0 %v678, 12
      %v768 = vpop.permute.xlu0 %767
      %769 = vrot.lane.b32.xlu0 %v679, 12
      %v770 = vpop.permute.xlu0 %769
      %771 = vrot.lane.b32.xlu0 %v680, 12
      %v772 = vpop.permute.xlu0 %771
      %773 = vrot.lane.b32.xlu0 %v681, 12
      %v774 = vpop.permute.xlu0 %773
      %775 = vrot.lane.b32.xlu0 %v682, 12
      %v776 = vpop.permute.xlu0 %775
      %777 = vrot.lane.b32.xlu0 %v683, 12
      %v778 = vpop.permute.xlu0 %777
      %779 = vrot.lane.b32.xlu0 %v684, 12
      %v780 = vpop.permute.xlu0 %779
      %vm813 = vcmask 130144
      %814 = vst.msk [vmem:[#allocation2] sm:$0xff] %vm813, %v718
      %815 = vst.msk [vmem:[#allocation2 + $0x8] sm:$0xff] %vm813, %v720
      %816 = vst.msk [vmem:[#allocation2 + $0x10] sm:$0xff] %vm813, %v722
      %817 = vst.msk [vmem:[#allocation2 + $0x18] sm:$0xff] %vm813, %v724
      %818 = vst.msk [vmem:[#allocation2 + $0x20] sm:$0xff] %vm813, %v726
      %819 = vst.msk [vmem:[#allocation2 + $0x28] sm:$0xff] %vm813, %v728
      %820 = vst.msk [vmem:[#allocation2 + $0x30] sm:$0xff] %vm813, %v730
      %821 = vst.msk [vmem:[#allocation2 + $0x38] sm:$0xff] %vm813, %v732
      %822 = vst.msk [vmem:[#allocation2 + $0x40] sm:$0xff] %vm813, %v734
      %823 = vst.msk [vmem:[#allocation2 + $0x48] sm:$0xff] %vm813, %v736
      %824 = vst.msk [vmem:[#allocation2 + $0x50] sm:$0xff] %vm813, %v738
      %825 = vst.msk [vmem:[#allocation2 + $0x58] sm:$0xff] %vm813, %v740
      %826 = vst.msk [vmem:[#allocation2 + $0x60] sm:$0xff] %vm813, %v742
      %827 = vst.msk [vmem:[#allocation2 + $0x68] sm:$0xff] %vm813, %v744
      %828 = vst.msk [vmem:[#allocation2 + $0x70] sm:$0xff] %vm813, %v746
      %829 = vst.msk [vmem:[#allocation2 + $0x78] sm:$0xff] %vm813, %v748
      %830 = vst.msk [vmem:[#allocation2 + $0x80] sm:$0xff] %vm813, %v750
      %831 = vst.msk [vmem:[#allocation2 + $0x88] sm:$0xff] %vm813, %v752
      %832 = vst.msk [vmem:[#allocation2 + $0x90] sm:$0xff] %vm813, %v754
      %833 = vst.msk [vmem:[#allocation2 + $0x98] sm:$0xff] %vm813, %v756
      %834 = vst.msk [vmem:[#allocation2 + $0xa0] sm:$0xff] %vm813, %v758
      %835 = vst.msk [vmem:[#allocation2 + $0xa8] sm:$0xff] %vm813, %v760
      %836 = vst.msk [vmem:[#allocation2 + $0xb0] sm:$0xff] %vm813, %v762
      %837 = vst.msk [vmem:[#allocation2 + $0xb8] sm:$0xff] %vm813, %v764
      %838 = vst.msk [vmem:[#allocation2 + $0xc0] sm:$0xff] %vm813, %v766
      %839 = vst.msk [vmem:[#allocation2 + $0xc8] sm:$0xff] %vm813, %v768
      %840 = vst.msk [vmem:[#allocation2 + $0xd0] sm:$0xff] %vm813, %v770
      %841 = vst.msk [vmem:[#allocation2 + $0xd8] sm:$0xff] %vm813, %v772
      %842 = vst.msk [vmem:[#allocation2 + $0xe0] sm:$0xff] %vm813, %v774
      %843 = vst.msk [vmem:[#allocation2 + $0xe8] sm:$0xff] %vm813, %v776
      %844 = vst.msk [vmem:[#allocation2 + $0xf0] sm:$0xff] %vm813, %v778
      %845 = vst.msk [vmem:[#allocation2 + $0xf8] sm:$0xff] %vm813, %v780
      %v846 = vld [vmem:[%s652 + $0x1] sm:$0xff]
      %v847 = vld [vmem:[%s652 + $0x9] sm:$0xff]
      %v848 = vld [vmem:[%s652 + $0x19] sm:$0xff]
      %v849 = vld [vmem:[%s652 + $0x21] sm:$0xff]
      %v850 = vld [vmem:[%s652 + $0x31] sm:$0xff]
      %v851 = vld [vmem:[%s652 + $0x39] sm:$0xff]
      %v852 = vld [vmem:[%s652 + $0x49] sm:$0xff]
      %v853 = vld [vmem:[%s652 + $0x51] sm:$0xff]
      %v854 = vld [vmem:[%s652 + $0x61] sm:$0xff]
      %v855 = vld [vmem:[%s652 + $0x69] sm:$0xff]
      %v856 = vld [vmem:[%s652 + $0x79] sm:$0xff]
      %v857 = vld [vmem:[%s652 + $0x81] sm:$0xff]
      %v858 = vld [vmem:[%s652 + $0x91] sm:$0xff]
      %v859 = vld [vmem:[%s652 + $0x99] sm:$0xff]
      %v860 = vld [vmem:[%s652 + $0xa9] sm:$0xff]
      %v861 = vld [vmem:[%s652 + $0xb1] sm:$0xff]
      %v862 = vld [vmem:[%s652 + $0xc1] sm:$0xff]
      %v863 = vld [vmem:[%s652 + $0xc9] sm:$0xff]
      %v864 = vld [vmem:[%s652 + $0xd9] sm:$0xff]
      %v865 = vld [vmem:[%s652 + $0xe1] sm:$0xff]
      %v866 = vld [vmem:[%s652 + $0xf1] sm:$0xff]
      %v867 = vld [vmem:[%s652 + $0xf9] sm:$0xff]
      %v868 = vld [vmem:[%s652 + $0x109] sm:$0xff]
      %v869 = vld [vmem:[%s652 + $0x111] sm:$0xff]
      %v870 = vld [vmem:[%s652 + $0x121] sm:$0xff]
      %v871 = vld [vmem:[%s652 + $0x129] sm:$0xff]
      %v872 = vld [vmem:[%s652 + $0x139] sm:$0xff]
      %v873 = vld [vmem:[%s652 + $0x141] sm:$0xff]
      %v874 = vld [vmem:[%s652 + $0x151] sm:$0xff]
      %v875 = vld [vmem:[%s652 + $0x159] sm:$0xff]
      %v876 = vld [vmem:[%s652 + $0x169] sm:$0xff]
      %v877 = vld [vmem:[%s652 + $0x171] sm:$0xff]
      %910 = vrot.lane.b32.xlu0 %v846, 16
      %v911 = vpop.permute.xlu0 %910
      %912 = vrot.lane.b32.xlu0 %v847, 16
      %v913 = vpop.permute.xlu0 %912
      %914 = vrot.lane.b32.xlu0 %v848, 16
      %v915 = vpop.permute.xlu0 %914
      %916 = vrot.lane.b32.xlu0 %v849, 16
      %v917 = vpop.permute.xlu0 %916
      %918 = vrot.lane.b32.xlu0 %v850, 16
      %v919 = vpop.permute.xlu0 %918
      %920 = vrot.lane.b32.xlu0 %v851, 16
      %v921 = vpop.permute.xlu0 %920
      %922 = vrot.lane.b32.xlu0 %v852, 16
      %v923 = vpop.permute.xlu0 %922
      %924 = vrot.lane.b32.xlu0 %v853, 16
      %v925 = vpop.permute.xlu0 %924
      %926 = vrot.lane.b32.xlu0 %v854, 16
      %v927 = vpop.permute.xlu0 %926
      %928 = vrot.lane.b32.xlu0 %v855, 16
      %v929 = vpop.permute.xlu0 %928
      %930 = vrot.lane.b32.xlu0 %v856, 16
      %v931 = vpop.permute.xlu0 %930
      %932 = vrot.lane.b32.xlu0 %v857, 16
      %v933 = vpop.permute.xlu0 %932
      %934 = vrot.lane.b32.xlu0 %v858, 16
      %v935 = vpop.permute.xlu0 %934
      %936 = vrot.lane.b32.xlu0 %v859, 16
      %v937 = vpop.permute.xlu0 %936
      %938 = vrot.lane.b32.xlu0 %v860, 16
      %v939 = vpop.permute.xlu0 %938
      %940 = vrot.lane.b32.xlu0 %v861, 16
      %v941 = vpop.permute.xlu0 %940
      %942 = vrot.lane.b32.xlu0 %v862, 16
      %v943 = vpop.permute.xlu0 %942
      %944 = vrot.lane.b32.xlu0 %v863, 16
      %v945 = vpop.permute.xlu0 %944
      %946 = vrot.lane.b32.xlu0 %v864, 16
      %v947 = vpop.permute.xlu0 %946
      %948 = vrot.lane.b32.xlu0 %v865, 16
      %v949 = vpop.permute.xlu0 %948
      %950 = vrot.lane.b32.xlu0 %v866, 16
      %v951 = vpop.permute.xlu0 %950
      %952 = vrot.lane.b32.xlu0 %v867, 16
      %v953 = vpop.permute.xlu0 %952
      %954 = vrot.lane.b32.xlu0 %v868, 16
      %v955 = vpop.permute.xlu0 %954
      %956 = vrot.lane.b32.xlu0 %v869, 16
      %v957 = vpop.permute.xlu0 %956
      %958 = vrot.lane.b32.xlu0 %v870, 16
      %v959 = vpop.permute.xlu0 %958
      %960 = vrot.lane.b32.xlu0 %v871, 16
      %v961 = vpop.permute.xlu0 %960
      %962 = vrot.lane.b32.xlu0 %v872, 16
      %v963 = vpop.permute.xlu0 %962
      %964 = vrot.lane.b32.xlu0 %v873, 16
      %v965 = vpop.permute.xlu0 %964
      %966 = vrot.lane.b32.xlu0 %v874, 16
      %v967 = vpop.permute.xlu0 %966
      %968 = vrot.lane.b32.xlu0 %v875, 16
      %v969 = vpop.permute.xlu0 %968
      %970 = vrot.lane.b32.xlu0 %v876, 16
      %v971 = vpop.permute.xlu0 %970
      %972 = vrot.lane.b32.xlu0 %v877, 16
      %v973 = vpop.permute.xlu0 %972
      %vm1006 = vcmask 162944
      %1007 = vst.msk [vmem:[#allocation2] sm:$0xff] %vm1006, %v911
      %1008 = vst.msk [vmem:[#allocation2 + $0x8] sm:$0xff] %vm1006, %v913
      %1009 = vst.msk [vmem:[#allocation2 + $0x10] sm:$0xff] %vm1006, %v915
      %1010 = vst.msk [vmem:[#allocation2 + $0x18] sm:$0xff] %vm1006, %v917
      %1011 = vst.msk [vmem:[#allocation2 + $0x20] sm:$0xff] %vm1006, %v919
      %1012 = vst.msk [vmem:[#allocation2 + $0x28] sm:$0xff] %vm1006, %v921
      %1013 = vst.msk [vmem:[#allocation2 + $0x30] sm:$0xff] %vm1006, %v923
      %1014 = vst.msk [vmem:[#allocation2 + $0x38] sm:$0xff] %vm1006, %v925
      %1015 = vst.msk [vmem:[#allocation2 + $0x40] sm:$0xff] %vm1006, %v927
      %1016 = vst.msk [vmem:[#allocation2 + $0x48] sm:$0xff] %vm1006, %v929
      %1017 = vst.msk [vmem:[#allocation2 + $0x50] sm:$0xff] %vm1006, %v931
      %1018 = vst.msk [vmem:[#allocation2 + $0x58] sm:$0xff] %vm1006, %v933
      %1019 = vst.msk [vmem:[#allocation2 + $0x60] sm:$0xff] %vm1006, %v935
      %1020 = vst.msk [vmem:[#allocation2 + $0x68] sm:$0xff] %vm1006, %v937
      %1021 = vst.msk [vmem:[#allocation2 + $0x70] sm:$0xff] %vm1006, %v939
      %1022 = vst.msk [vmem:[#allocation2 + $0x78] sm:$0xff] %vm1006, %v941
      %1023 = vst.msk [vmem:[#allocation2 + $0x80] sm:$0xff] %vm1006, %v943
      %1024 = vst.msk [vmem:[#allocation2 + $0x88] sm:$0xff] %vm1006, %v945
      %1025 = vst.msk [vmem:[#allocation2 + $0x90] sm:$0xff] %vm1006, %v947
      %1026 = vst.msk [vmem:[#allocation2 + $0x98] sm:$0xff] %vm1006, %v949
      %1027 = vst.msk [vmem:[#allocation2 + $0xa0] sm:$0xff] %vm1006, %v951
      %1028 = vst.msk [vmem:[#allocation2 + $0xa8] sm:$0xff] %vm1006, %v953
      %1029 = vst.msk [vmem:[#allocation2 + $0xb0] sm:$0xff] %vm1006, %v955
      %1030 = vst.msk [vmem:[#allocation2 + $0xb8] sm:$0xff] %vm1006, %v957
      %1031 = vst.msk [vmem:[#allocation2 + $0xc0] sm:$0xff] %vm1006, %v959
      %1032 = vst.msk [vmem:[#allocation2 + $0xc8] sm:$0xff] %vm1006, %v961
      %1033 = vst.msk [vmem:[#allocation2 + $0xd0] sm:$0xff] %vm1006, %v963
      %1034 = vst.msk [vmem:[#allocation2 + $0xd8] sm:$0xff] %vm1006, %v965
      %1035 = vst.msk [vmem:[#allocation2 + $0xe0] sm:$0xff] %vm1006, %v967
      %1036 = vst.msk [vmem:[#allocation2 + $0xe8] sm:$0xff] %vm1006, %v969
      %1037 = vst.msk [vmem:[#allocation2 + $0xf0] sm:$0xff] %vm1006, %v971
      %1038 = vst.msk [vmem:[#allocation2 + $0xf8] sm:$0xff] %vm1006, %v973
      %v1039 = vld [vmem:[%s652 + $0x2] sm:$0xff]
      %v1040 = vld [vmem:[%s652 + $0xa] sm:$0xff]
      %v1041 = vld [vmem:[%s652 + $0x1a] sm:$0xff]
      %v1042 = vld [vmem:[%s652 + $0x22] sm:$0xff]
      %v1043 = vld [vmem:[%s652 + $0x32] sm:$0xff]
      %v1044 = vld [vmem:[%s652 + $0x3a] sm:$0xff]
      %v1045 = vld [vmem:[%s652 + $0x4a] sm:$0xff]
      %v1046 = vld [vmem:[%s652 + $0x52] sm:$0xff]
      %v1047 = vld [vmem:[%s652 + $0x62] sm:$0xff]
      %v1048 = vld [vmem:[%s652 + $0x6a] sm:$0xff]
      %v1049 = vld [vmem:[%s652 + $0x7a] sm:$0xff]
      %v1050 = vld [vmem:[%s652 + $0x82] sm:$0xff]
      %v1051 = vld [vmem:[%s652 + $0x92] sm:$0xff]
      %v1052 = vld [vmem:[%s652 + $0x9a] sm:$0xff]
      %v1053 = vld [vmem:[%s652 + $0xaa] sm:$0xff]
      %v1054 = vld [vmem:[%s652 + $0xb2] sm:$0xff]
      %v1055 = vld [vmem:[%s652 + $0xc2] sm:$0xff]
      %v1056 = vld [vmem:[%s652 + $0xca] sm:$0xff]
      %v1057 = vld [vmem:[%s652 + $0xda] sm:$0xff]
      %v1058 = vld [vmem:[%s652 + $0xe2] sm:$0xff]
      %v1059 = vld [vmem:[%s652 + $0xf2] sm:$0xff]
      %v1060 = vld [vmem:[%s652 + $0xfa] sm:$0xff]
      %v1061 = vld [vmem:[%s652 + $0x10a] sm:$0xff]
      %v1062 = vld [vmem:[%s652 + $0x112] sm:$0xff]
      %v1063 = vld [vmem:[%s652 + $0x122] sm:$0xff]
      %v1064 = vld [vmem:[%s652 + $0x12a] sm:$0xff]
      %v1065 = vld [vmem:[%s652 + $0x13a] sm:$0xff]
      %v1066 = vld [vmem:[%s652 + $0x142] sm:$0xff]
      %v1067 = vld [vmem:[%s652 + $0x152] sm:$0xff]
      %v1068 = vld [vmem:[%s652 + $0x15a] sm:$0xff]
      %v1069 = vld [vmem:[%s652 + $0x16a] sm:$0xff]
      %v1070 = vld [vmem:[%s652 + $0x172] sm:$0xff]
      %1103 = vrot.lane.b32.xlu0 %v1039, 20
      %v1104 = vpop.permute.xlu0 %1103
      %1105 = vrot.lane.b32.xlu0 %v1040, 20
      %v1106 = vpop.permute.xlu0 %1105
      %1107 = vrot.lane.b32.xlu0 %v1041, 20
      %v1108 = vpop.permute.xlu0 %1107
      %1109 = vrot.lane.b32.xlu0 %v1042, 20
      %v1110 = vpop.permute.xlu0 %1109
      %1111 = vrot.lane.b32.xlu0 %v1043, 20
      %v1112 = vpop.permute.xlu0 %1111
      %1113 = vrot.lane.b32.xlu0 %v1044, 20
      %v1114 = vpop.permute.xlu0 %1113
      %1115 = vrot.lane.b32.xlu0 %v1045, 20
      %v1116 = vpop.permute.xlu0 %1115
      %1117 = vrot.lane.b32.xlu0 %v1046, 20
      %v1118 = vpop.permute.xlu0 %1117
      %1119 = vrot.lane.b32.xlu0 %v1047, 20
      %v1120 = vpop.permute.xlu0 %1119
      %1121 = vrot.lane.b32.xlu0 %v1048, 20
      %v1122 = vpop.permute.xlu0 %1121
      %1123 = vrot.lane.b32.xlu0 %v1049, 20
      %v1124 = vpop.permute.xlu0 %1123
      %1125 = vrot.lane.b32.xlu0 %v1050, 20
      %v1126 = vpop.permute.xlu0 %1125
      %1127 = vrot.lane.b32.xlu0 %v1051, 20
      %v1128 = vpop.permute.xlu0 %1127
      %1129 = vrot.lane.b32.xlu0 %v1052, 20
      %v1130 = vpop.permute.xlu0 %1129
      %1131 = vrot.lane.b32.xlu0 %v1053, 20
      %v1132 = vpop.permute.xlu0 %1131
      %1133 = vrot.lane.b32.xlu0 %v1054, 20
      %v1134 = vpop.permute.xlu0 %1133
      %1135 = vrot.lane.b32.xlu0 %v1055, 20
      %v1136 = vpop.permute.xlu0 %1135
      %1137 = vrot.lane.b32.xlu0 %v1056, 20
      %v1138 = vpop.permute.xlu0 %1137
      %1139 = vrot.lane.b32.xlu0 %v1057, 20
      %v1140 = vpop.permute.xlu0 %1139
      %1141 = vrot.lane.b32.xlu0 %v1058, 20
      %v1142 = vpop.permute.xlu0 %1141
      %1143 = vrot.lane.b32.xlu0 %v1059, 20
      %v1144 = vpop.permute.xlu0 %1143
      %1145 = vrot.lane.b32.xlu0 %v1060, 20
      %v1146 = vpop.permute.xlu0 %1145
      %1147 = vrot.lane.b32.xlu0 %v1061, 20
      %v1148 = vpop.permute.xlu0 %1147
      %1149 = vrot.lane.b32.xlu0 %v1062, 20
      %v1150 = vpop.permute.xlu0 %1149
      %1151 = vrot.lane.b32.xlu0 %v1063, 20
      %v1152 = vpop.permute.xlu0 %1151
      %1153 = vrot.lane.b32.xlu0 %v1064, 20
      %v1154 = vpop.permute.xlu0 %1153
      %1155 = vrot.lane.b32.xlu0 %v1065, 20
      %v1156 = vpop.permute.xlu0 %1155
      %1157 = vrot.lane.b32.xlu0 %v1066, 20
      %v1158 = vpop.permute.xlu0 %1157
      %1159 = vrot.lane.b32.xlu0 %v1067, 20
      %v1160 = vpop.permute.xlu0 %1159
      %1161 = vrot.lane.b32.xlu0 %v1068, 20
      %v1162 = vpop.permute.xlu0 %1161
      %1163 = vrot.lane.b32.xlu0 %v1069, 20
      %v1164 = vpop.permute.xlu0 %1163
      %1165 = vrot.lane.b32.xlu0 %v1070, 20
      %v1166 = vpop.permute.xlu0 %1165
      %vm1199 = vcmask 195744
      %1200 = vst.msk [vmem:[#allocation2] sm:$0xff] %vm1199, %v1104
      %1201 = vst.msk [vmem:[#allocation2 + $0x8] sm:$0xff] %vm1199, %v1106
      %1202 = vst.msk [vmem:[#allocation2 + $0x10] sm:$0xff] %vm1199, %v1108
      %1203 = vst.msk [vmem:[#allocation2 + $0x18] sm:$0xff] %vm1199, %v1110
      %1204 = vst.msk [vmem:[#allocation2 + $0x20] sm:$0xff] %vm1199, %v1112
      %1205 = vst.msk [vmem:[#allocation2 + $0x28] sm:$0xff] %vm1199, %v1114
      %1206 = vst.msk [vmem:[#allocation2 + $0x30] sm:$0xff] %vm1199, %v1116
      %1207 = vst.msk [vmem:[#allocation2 + $0x38] sm:$0xff] %vm1199, %v1118
      %1208 = vst.msk [vmem:[#allocation2 + $0x40] sm:$0xff] %vm1199, %v1120
      %1209 = vst.msk [vmem:[#allocation2 + $0x48] sm:$0xff] %vm1199, %v1122
      %1210 = vst.msk [vmem:[#allocation2 + $0x50] sm:$0xff] %vm1199, %v1124
      %1211 = vst.msk [vmem:[#allocation2 + $0x58] sm:$0xff] %vm1199, %v1126
      %1212 = vst.msk [vmem:[#allocation2 + $0x60] sm:$0xff] %vm1199, %v1128
      %1213 = vst.msk [vmem:[#allocation2 + $0x68] sm:$0xff] %vm1199, %v1130
      %1214 = vst.msk [vmem:[#allocation2 + $0x70] sm:$0xff] %vm1199, %v1132
      %1215 = vst.msk [vmem:[#allocation2 + $0x78] sm:$0xff] %vm1199, %v1134
      %1216 = vst.msk [vmem:[#allocation2 + $0x80] sm:$0xff] %vm1199, %v1136
      %1217 = vst.msk [vmem:[#allocation2 + $0x88] sm:$0xff] %vm1199, %v1138
      %1218 = vst.msk [vmem:[#allocation2 + $0x90] sm:$0xff] %vm1199, %v1140
      %1219 = vst.msk [vmem:[#allocation2 + $0x98] sm:$0xff] %vm1199, %v1142
      %1220 = vst.msk [vmem:[#allocation2 + $0xa0] sm:$0xff] %vm1199, %v1144
      %1221 = vst.msk [vmem:[#allocation2 + $0xa8] sm:$0xff] %vm1199, %v1146
      %1222 = vst.msk [vmem:[#allocation2 + $0xb0] sm:$0xff] %vm1199, %v1148
      %1223 = vst.msk [vmem:[#allocation2 + $0xb8] sm:$0xff] %vm1199, %v1150
      %1224 = vst.msk [vmem:[#allocation2 + $0xc0] sm:$0xff] %vm1199, %v1152
      %1225 = vst.msk [vmem:[#allocation2 + $0xc8] sm:$0xff] %vm1199, %v1154
      %1226 = vst.msk [vmem:[#allocation2 + $0xd0] sm:$0xff] %vm1199, %v1156
      %1227 = vst.msk [vmem:[#allocation2 + $0xd8] sm:$0xff] %vm1199, %v1158
      %1228 = vst.msk [vmem:[#allocation2 + $0xe0] sm:$0xff] %vm1199, %v1160
      %1229 = vst.msk [vmem:[#allocation2 + $0xe8] sm:$0xff] %vm1199, %v1162
      %1230 = vst.msk [vmem:[#allocation2 + $0xf0] sm:$0xff] %vm1199, %v1164
      %1231 = vst.msk [vmem:[#allocation2 + $0xf8] sm:$0xff] %vm1199, %v1166
      %s1232 = sadd.s32 %s196, 2
      %s1233 = smul.u32 %s1232, 24
      %s1234 = scalar_lea.vmem %s184, %s1233
      %v1235 = vld [vmem:[%s1234] sm:$0xff]
      %v1236 = vld [vmem:[%s1234 + $0x8] sm:$0xff]
      %v1237 = vld [vmem:[%s1234 + $0x18] sm:$0xff]
      %v1238 = vld [vmem:[%s1234 + $0x20] sm:$0xff]
      %v1239 = vld [vmem:[%s1234 + $0x30] sm:$0xff]
      %v1240 = vld [vmem:[%s1234 + $0x38] sm:$0xff]
      %v1241 = vld [vmem:[%s1234 + $0x48] sm:$0xff]
      %v1242 = vld [vmem:[%s1234 + $0x50] sm:$0xff]
      %v1243 = vld [vmem:[%s1234 + $0x60] sm:$0xff]
      %v1244 = vld [vmem:[%s1234 + $0x68] sm:$0xff]
      %v1245 = vld [vmem:[%s1234 + $0x78] sm:$0xff]
      %v1246 = vld [vmem:[%s1234 + $0x80] sm:$0xff]
      %v1247 = vld [vmem:[%s1234 + $0x90] sm:$0xff]
      %v1248 = vld [vmem:[%s1234 + $0x98] sm:$0xff]
      %v1249 = vld [vmem:[%s1234 + $0xa8] sm:$0xff]
      %v1250 = vld [vmem:[%s1234 + $0xb0] sm:$0xff]
      %v1251 = vld [vmem:[%s1234 + $0xc0] sm:$0xff]
      %v1252 = vld [vmem:[%s1234 + $0xc8] sm:$0xff]
      %v1253 = vld [vmem:[%s1234 + $0xd8] sm:$0xff]
      %v1254 = vld [vmem:[%s1234 + $0xe0] sm:$0xff]
      %v1255 = vld [vmem:[%s1234 + $0xf0] sm:$0xff]
      %v1256 = vld [vmem:[%s1234 + $0xf8] sm:$0xff]
      %v1257 = vld [vmem:[%s1234 + $0x108] sm:$0xff]
      %v1258 = vld [vmem:[%s1234 + $0x110] sm:$0xff]
      %v1259 = vld [vmem:[%s1234 + $0x120] sm:$0xff]
      %v1260 = vld [vmem:[%s1234 + $0x128] sm:$0xff]
      %v1261 = vld [vmem:[%s1234 + $0x138] sm:$0xff]
      %v1262 = vld [vmem:[%s1234 + $0x140] sm:$0xff]
      %v1263 = vld [vmem:[%s1234 + $0x150] sm:$0xff]
      %v1264 = vld [vmem:[%s1234 + $0x158] sm:$0xff]
      %v1265 = vld [vmem:[%s1234 + $0x168] sm:$0xff]
      %v1266 = vld [vmem:[%s1234 + $0x170] sm:$0xff]
      %1299 = vrot.lane.b32.xlu0 %v1235, 24
      %v1300 = vpop.permute.xlu0 %1299
      %1301 = vrot.lane.b32.xlu0 %v1236, 24
      %v1302 = vpop.permute.xlu0 %1301
      %1303 = vrot.lane.b32.xlu0 %v1237, 24
      %v1304 = vpop.permute.xlu0 %1303
      %1305 = vrot.lane.b32.xlu0 %v1238, 24
      %v1306 = vpop.permute.xlu0 %1305
      %1307 = vrot.lane.b32.xlu0 %v1239, 24
      %v1308 = vpop.permute.xlu0 %1307
      %1309 = vrot.lane.b32.xlu0 %v1240, 24
      %v1310 = vpop.permute.xlu0 %1309
      %1311 = vrot.lane.b32.xlu0 %v1241, 24
      %v1312 = vpop.permute.xlu0 %1311
      %1313 = vrot.lane.b32.xlu0 %v1242, 24
      %v1314 = vpop.permute.xlu0 %1313
      %1315 = vrot.lane.b32.xlu0 %v1243, 24
      %v1316 = vpop.permute.xlu0 %1315
      %1317 = vrot.lane.b32.xlu0 %v1244, 24
      %v1318 = vpop.permute.xlu0 %1317
      %1319 = vrot.lane.b32.xlu0 %v1245, 24
      %v1320 = vpop.permute.xlu0 %1319
      %1321 = vrot.lane.b32.xlu0 %v1246, 24
      %v1322 = vpop.permute.xlu0 %1321
      %1323 = vrot.lane.b32.xlu0 %v1247, 24
      %v1324 = vpop.permute.xlu0 %1323
      %1325 = vrot.lane.b32.xlu0 %v1248, 24
      %v1326 = vpop.permute.xlu0 %1325
      %1327 = vrot.lane.b32.xlu0 %v1249, 24
      %v1328 = vpop.permute.xlu0 %1327
      %1329 = vrot.lane.b32.xlu0 %v1250, 24
      %v1330 = vpop.permute.xlu0 %1329
      %1331 = vrot.lane.b32.xlu0 %v1251, 24
      %v1332 = vpop.permute.xlu0 %1331
      %1333 = vrot.lane.b32.xlu0 %v1252, 24
      %v1334 = vpop.permute.xlu0 %1333
      %1335 = vrot.lane.b32.xlu0 %v1253, 24
      %v1336 = vpop.permute.xlu0 %1335
      %1337 = vrot.lane.b32.xlu0 %v1254, 24
      %v1338 = vpop.permute.xlu0 %1337
      %1339 = vrot.lane.b32.xlu0 %v1255, 24
      %v1340 = vpop.permute.xlu0 %1339
      %1341 = vrot.lane.b32.xlu0 %v1256, 24
      %v1342 = vpop.permute.xlu0 %1341
      %1343 = vrot.lane.b32.xlu0 %v1257, 24
      %v1344 = vpop.permute.xlu0 %1343
      %1345 = vrot.lane.b32.xlu0 %v1258, 24
      %v1346 = vpop.permute.xlu0 %1345
      %1347 = vrot.lane.b32.xlu0 %v1259, 24
      %v1348 = vpop.permute.xlu0 %1347
      %1349 = vrot.lane.b32.xlu0 %v1260, 24
      %v1350 = vpop.permute.xlu0 %1349
      %1351 = vrot.lane.b32.xlu0 %v1261, 24
      %v1352 = vpop.permute.xlu0 %1351
      %1353 = vrot.lane.b32.xlu0 %v1262, 24
      %v1354 = vpop.permute.xlu0 %1353
      %1355 = vrot.lane.b32.xlu0 %v1263, 24
      %v1356 = vpop.permute.xlu0 %1355
      %1357 = vrot.lane.b32.xlu0 %v1264, 24
      %v1358 = vpop.permute.xlu0 %1357
      %1359 = vrot.lane.b32.xlu0 %v1265, 24
      %v1360 = vpop.permute.xlu0 %1359
      %1361 = vrot.lane.b32.xlu0 %v1266, 24
      %v1362 = vpop.permute.xlu0 %1361
      %vm1395 = vcmask 228544
      %1396 = vst.msk [vmem:[#allocation2] sm:$0xff] %vm1395, %v1300
      %1397 = vst.msk [vmem:[#allocation2 + $0x8] sm:$0xff] %vm1395, %v1302
      %1398 = vst.msk [vmem:[#allocation2 + $0x10] sm:$0xff] %vm1395, %v1304
      %1399 = vst.msk [vmem:[#allocation2 + $0x18] sm:$0xff] %vm1395, %v1306
      %1400 = vst.msk [vmem:[#allocation2 + $0x20] sm:$0xff] %vm1395, %v1308
      %1401 = vst.msk [vmem:[#allocation2 + $0x28] sm:$0xff] %vm1395, %v1310
      %1402 = vst.msk [vmem:[#allocation2 + $0x30] sm:$0xff] %vm1395, %v1312
      %1403 = vst.msk [vmem:[#allocation2 + $0x38] sm:$0xff] %vm1395, %v1314
      %1404 = vst.msk [vmem:[#allocation2 + $0x40] sm:$0xff] %vm1395, %v1316
      %1405 = vst.msk [vmem:[#allocation2 + $0x48] sm:$0xff] %vm1395, %v1318
      %1406 = vst.msk [vmem:[#allocation2 + $0x50] sm:$0xff] %vm1395, %v1320
      %1407 = vst.msk [vmem:[#allocation2 + $0x58] sm:$0xff] %vm1395, %v1322
      %1408 = vst.msk [vmem:[#allocation2 + $0x60] sm:$0xff] %vm1395, %v1324
      %1409 = vst.msk [vmem:[#allocation2 + $0x68] sm:$0xff] %vm1395, %v1326
      %1410 = vst.msk [vmem:[#allocation2 + $0x70] sm:$0xff] %vm1395, %v1328
      %1411 = vst.msk [vmem:[#allocation2 + $0x78] sm:$0xff] %vm1395, %v1330
      %1412 = vst.msk [vmem:[#allocation2 + $0x80] sm:$0xff] %vm1395, %v1332
      %1413 = vst.msk [vmem:[#allocation2 + $0x88] sm:$0xff] %vm1395, %v1334
      %1414 = vst.msk [vmem:[#allocation2 + $0x90] sm:$0xff] %vm1395, %v1336
      %1415 = vst.msk [vmem:[#allocation2 + $0x98] sm:$0xff] %vm1395, %v1338
      %1416 = vst.msk [vmem:[#allocation2 + $0xa0] sm:$0xff] %vm1395, %v1340
      %1417 = vst.msk [vmem:[#allocation2 + $0xa8] sm:$0xff] %vm1395, %v1342
      %1418 = vst.msk [vmem:[#allocation2 + $0xb0] sm:$0xff] %vm1395, %v1344
      %1419 = vst.msk [vmem:[#allocation2 + $0xb8] sm:$0xff] %vm1395, %v1346
      %1420 = vst.msk [vmem:[#allocation2 + $0xc0] sm:$0xff] %vm1395, %v1348
      %1421 = vst.msk [vmem:[#allocation2 + $0xc8] sm:$0xff] %vm1395, %v1350
      %1422 = vst.msk [vmem:[#allocation2 + $0xd0] sm:$0xff] %vm1395, %v1352
      %1423 = vst.msk [vmem:[#allocation2 + $0xd8] sm:$0xff] %vm1395, %v1354
      %1424 = vst.msk [vmem:[#allocation2 + $0xe0] sm:$0xff] %vm1395, %v1356
      %1425 = vst.msk [vmem:[#allocation2 + $0xe8] sm:$0xff] %vm1395, %v1358
      %1426 = vst.msk [vmem:[#allocation2 + $0xf0] sm:$0xff] %vm1395, %v1360
      %1427 = vst.msk [vmem:[#allocation2 + $0xf8] sm:$0xff] %vm1395, %v1362
      %v1428 = vld [vmem:[%s1234 + $0x1] sm:$0xff]
      %v1429 = vld [vmem:[%s1234 + $0x9] sm:$0xff]
      %v1430 = vld [vmem:[%s1234 + $0x19] sm:$0xff]
      %v1431 = vld [vmem:[%s1234 + $0x21] sm:$0xff]
      %v1432 = vld [vmem:[%s1234 + $0x31] sm:$0xff]
      %v1433 = vld [vmem:[%s1234 + $0x39] sm:$0xff]
      %v1434 = vld [vmem:[%s1234 + $0x49] sm:$0xff]
      %v1435 = vld [vmem:[%s1234 + $0x51] sm:$0xff]
      %v1436 = vld [vmem:[%s1234 + $0x61] sm:$0xff]
      %v1437 = vld [vmem:[%s1234 + $0x69] sm:$0xff]
      %v1438 = vld [vmem:[%s1234 + $0x79] sm:$0xff]
      %v1439 = vld [vmem:[%s1234 + $0x81] sm:$0xff]
      %v1440 = vld [vmem:[%s1234 + $0x91] sm:$0xff]
      %v1441 = vld [vmem:[%s1234 + $0x99] sm:$0xff]
      %v1442 = vld [vmem:[%s1234 + $0xa9] sm:$0xff]
      %v1443 = vld [vmem:[%s1234 + $0xb1] sm:$0xff]
      %v1444 = vld [vmem:[%s1234 + $0xc1] sm:$0xff]
      %v1445 = vld [vmem:[%s1234 + $0xc9] sm:$0xff]
      %v1446 = vld [vmem:[%s1234 + $0xd9] sm:$0xff]
      %v1447 = vld [vmem:[%s1234 + $0xe1] sm:$0xff]
      %v1448 = vld [vmem:[%s1234 + $0xf1] sm:$0xff]
      %v1449 = vld [vmem:[%s1234 + $0xf9] sm:$0xff]
      %v1450 = vld [vmem:[%s1234 + $0x109] sm:$0xff]
      %v1451 = vld [vmem:[%s1234 + $0x111] sm:$0xff]
      %v1452 = vld [vmem:[%s1234 + $0x121] sm:$0xff]
      %v1453 = vld [vmem:[%s1234 + $0x129] sm:$0xff]
      %v1454 = vld [vmem:[%s1234 + $0x139] sm:$0xff]
      %v1455 = vld [vmem:[%s1234 + $0x141] sm:$0xff]
      %v1456 = vld [vmem:[%s1234 + $0x151] sm:$0xff]
      %v1457 = vld [vmem:[%s1234 + $0x159] sm:$0xff]
      %v1458 = vld [vmem:[%s1234 + $0x169] sm:$0xff]
      %v1459 = vld [vmem:[%s1234 + $0x171] sm:$0xff]
      %1492 = vrot.lane.b32.xlu0 %v1428, 28
      %v1493 = vpop.permute.xlu0 %1492
      %1494 = vrot.lane.b32.xlu0 %v1429, 28
      %v1495 = vpop.permute.xlu0 %1494
      %1496 = vrot.lane.b32.xlu0 %v1430, 28
      %v1497 = vpop.permute.xlu0 %1496
      %1498 = vrot.lane.b32.xlu0 %v1431, 28
      %v1499 = vpop.permute.xlu0 %1498
      %1500 = vrot.lane.b32.xlu0 %v1432, 28
      %v1501 = vpop.permute.xlu0 %1500
      %1502 = vrot.lane.b32.xlu0 %v1433, 28
      %v1503 = vpop.permute.xlu0 %1502
      %1504 = vrot.lane.b32.xlu0 %v1434, 28
      %v1505 = vpop.permute.xlu0 %1504
      %1506 = vrot.lane.b32.xlu0 %v1435, 28
      %v1507 = vpop.permute.xlu0 %1506
      %1508 = vrot.lane.b32.xlu0 %v1436, 28
      %v1509 = vpop.permute.xlu0 %1508
      %1510 = vrot.lane.b32.xlu0 %v1437, 28
      %v1511 = vpop.permute.xlu0 %1510
      %1512 = vrot.lane.b32.xlu0 %v1438, 28
      %v1513 = vpop.permute.xlu0 %1512
      %1514 = vrot.lane.b32.xlu0 %v1439, 28
      %v1515 = vpop.permute.xlu0 %1514
      %1516 = vrot.lane.b32.xlu0 %v1440, 28
      %v1517 = vpop.permute.xlu0 %1516
      %1518 = vrot.lane.b32.xlu0 %v1441, 28
      %v1519 = vpop.permute.xlu0 %1518
      %1520 = vrot.lane.b32.xlu0 %v1442, 28
      %v1521 = vpop.permute.xlu0 %1520
      %1522 = vrot.lane.b32.xlu0 %v1443, 28
      %v1523 = vpop.permute.xlu0 %1522
      %1524 = vrot.lane.b32.xlu0 %v1444, 28
      %v1525 = vpop.permute.xlu0 %1524
      %1526 = vrot.lane.b32.xlu0 %v1445, 28
      %v1527 = vpop.permute.xlu0 %1526
      %1528 = vrot.lane.b32.xlu0 %v1446, 28
      %v1529 = vpop.permute.xlu0 %1528
      %1530 = vrot.lane.b32.xlu0 %v1447, 28
      %v1531 = vpop.permute.xlu0 %1530
      %1532 = vrot.lane.b32.xlu0 %v1448, 28
      %v1533 = vpop.permute.xlu0 %1532
      %1534 = vrot.lane.b32.xlu0 %v1449, 28
      %v1535 = vpop.permute.xlu0 %1534
      %1536 = vrot.lane.b32.xlu0 %v1450, 28
      %v1537 = vpop.permute.xlu0 %1536
      %1538 = vrot.lane.b32.xlu0 %v1451, 28
      %v1539 = vpop.permute.xlu0 %1538
      %1540 = vrot.lane.b32.xlu0 %v1452, 28
      %v1541 = vpop.permute.xlu0 %1540
      %1542 = vrot.lane.b32.xlu0 %v1453, 28
      %v1543 = vpop.permute.xlu0 %1542
      %1544 = vrot.lane.b32.xlu0 %v1454, 28
      %v1545 = vpop.permute.xlu0 %1544
      %1546 = vrot.lane.b32.xlu0 %v1455, 28
      %v1547 = vpop.permute.xlu0 %1546
      %1548 = vrot.lane.b32.xlu0 %v1456, 28
      %v1549 = vpop.permute.xlu0 %1548
      %1550 = vrot.lane.b32.xlu0 %v1457, 28
      %v1551 = vpop.permute.xlu0 %1550
      %1552 = vrot.lane.b32.xlu0 %v1458, 28
      %v1553 = vpop.permute.xlu0 %1552
      %1554 = vrot.lane.b32.xlu0 %v1459, 28
      %v1555 = vpop.permute.xlu0 %1554
      %vm1588 = vcmask 261344
      %1589 = vst.msk [vmem:[#allocation2] sm:$0xff] %vm1588, %v1493
      %1590 = vst.msk [vmem:[#allocation2 + $0x8] sm:$0xff] %vm1588, %v1495
      %1591 = vst.msk [vmem:[#allocation2 + $0x10] sm:$0xff] %vm1588, %v1497
      %1592 = vst.msk [vmem:[#allocation2 + $0x18] sm:$0xff] %vm1588, %v1499
      %1593 = vst.msk [vmem:[#allocation2 + $0x20] sm:$0xff] %vm1588, %v1501
      %1594 = vst.msk [vmem:[#allocation2 + $0x28] sm:$0xff] %vm1588, %v1503
      %1595 = vst.msk [vmem:[#allocation2 + $0x30] sm:$0xff] %vm1588, %v1505
      %1596 = vst.msk [vmem:[#allocation2 + $0x38] sm:$0xff] %vm1588, %v1507
      %1597 = vst.msk [vmem:[#allocation2 + $0x40] sm:$0xff] %vm1588, %v1509
      %1598 = vst.msk [vmem:[#allocation2 + $0x48] sm:$0xff] %vm1588, %v1511
      %1599 = vst.msk [vmem:[#allocation2 + $0x50] sm:$0xff] %vm1588, %v1513
      %1600 = vst.msk [vmem:[#allocation2 + $0x58] sm:$0xff] %vm1588, %v1515
      %1601 = vst.msk [vmem:[#allocation2 + $0x60] sm:$0xff] %vm1588, %v1517
      %1602 = vst.msk [vmem:[#allocation2 + $0x68] sm:$0xff] %vm1588, %v1519
      %1603 = vst.msk [vmem:[#allocation2 + $0x70] sm:$0xff] %vm1588, %v1521
      %1604 = vst.msk [vmem:[#allocation2 + $0x78] sm:$0xff] %vm1588, %v1523
      %1605 = vst.msk [vmem:[#allocation2 + $0x80] sm:$0xff] %vm1588, %v1525
      %1606 = vst.msk [vmem:[#allocation2 + $0x88] sm:$0xff] %vm1588, %v1527
      %1607 = vst.msk [vmem:[#allocation2 + $0x90] sm:$0xff] %vm1588, %v1529
      %1608 = vst.msk [vmem:[#allocation2 + $0x98] sm:$0xff] %vm1588, %v1531
      %1609 = vst.msk [vmem:[#allocation2 + $0xa0] sm:$0xff] %vm1588, %v1533
      %1610 = vst.msk [vmem:[#allocation2 + $0xa8] sm:$0xff] %vm1588, %v1535
      %1611 = vst.msk [vmem:[#allocation2 + $0xb0] sm:$0xff] %vm1588, %v1537
      %1612 = vst.msk [vmem:[#allocation2 + $0xb8] sm:$0xff] %vm1588, %v1539
      %1613 = vst.msk [vmem:[#allocation2 + $0xc0] sm:$0xff] %vm1588, %v1541
      %1614 = vst.msk [vmem:[#allocation2 + $0xc8] sm:$0xff] %vm1588, %v1543
      %1615 = vst.msk [vmem:[#allocation2 + $0xd0] sm:$0xff] %vm1588, %v1545
      %1616 = vst.msk [vmem:[#allocation2 + $0xd8] sm:$0xff] %vm1588, %v1547
      %1617 = vst.msk [vmem:[#allocation2 + $0xe0] sm:$0xff] %vm1588, %v1549
      %1618 = vst.msk [vmem:[#allocation2 + $0xe8] sm:$0xff] %vm1588, %v1551
      %1619 = vst.msk [vmem:[#allocation2 + $0xf0] sm:$0xff] %vm1588, %v1553
      %1620 = vst.msk [vmem:[#allocation2 + $0xf8] sm:$0xff] %vm1588, %v1555
      %v1621 = vld [vmem:[%s1234 + $0x2] sm:$0xff]
      %v1622 = vld [vmem:[%s1234 + $0xa] sm:$0xff]
      %v1623 = vld [vmem:[%s1234 + $0x1a] sm:$0xff]
      %v1624 = vld [vmem:[%s1234 + $0x22] sm:$0xff]
      %v1625 = vld [vmem:[%s1234 + $0x32] sm:$0xff]
      %v1626 = vld [vmem:[%s1234 + $0x3a] sm:$0xff]
      %v1627 = vld [vmem:[%s1234 + $0x4a] sm:$0xff]
      %v1628 = vld [vmem:[%s1234 + $0x52] sm:$0xff]
      %v1629 = vld [vmem:[%s1234 + $0x62] sm:$0xff]
      %v1630 = vld [vmem:[%s1234 + $0x6a] sm:$0xff]
      %v1631 = vld [vmem:[%s1234 + $0x7a] sm:$0xff]
      %v1632 = vld [vmem:[%s1234 + $0x82] sm:$0xff]
      %v1633 = vld [vmem:[%s1234 + $0x92] sm:$0xff]
      %v1634 = vld [vmem:[%s1234 + $0x9a] sm:$0xff]
      %v1635 = vld [vmem:[%s1234 + $0xaa] sm:$0xff]
      %v1636 = vld [vmem:[%s1234 + $0xb2] sm:$0xff]
      %v1637 = vld [vmem:[%s1234 + $0xc2] sm:$0xff]
      %v1638 = vld [vmem:[%s1234 + $0xca] sm:$0xff]
      %v1639 = vld [vmem:[%s1234 + $0xda] sm:$0xff]
      %v1640 = vld [vmem:[%s1234 + $0xe2] sm:$0xff]
      %v1641 = vld [vmem:[%s1234 + $0xf2] sm:$0xff]
      %v1642 = vld [vmem:[%s1234 + $0xfa] sm:$0xff]
      %v1643 = vld [vmem:[%s1234 + $0x10a] sm:$0xff]
      %v1644 = vld [vmem:[%s1234 + $0x112] sm:$0xff]
      %v1645 = vld [vmem:[%s1234 + $0x122] sm:$0xff]
      %v1646 = vld [vmem:[%s1234 + $0x12a] sm:$0xff]
      %v1647 = vld [vmem:[%s1234 + $0x13a] sm:$0xff]
      %v1648 = vld [vmem:[%s1234 + $0x142] sm:$0xff]
      %v1649 = vld [vmem:[%s1234 + $0x152] sm:$0xff]
      %v1650 = vld [vmem:[%s1234 + $0x15a] sm:$0xff]
      %v1651 = vld [vmem:[%s1234 + $0x16a] sm:$0xff]
      %v1652 = vld [vmem:[%s1234 + $0x172] sm:$0xff]
      %1685 = vrot.lane.b32.xlu0 %v1621, 32
      %v1686 = vpop.permute.xlu0 %1685
      %1687 = vrot.lane.b32.xlu0 %v1622, 32
      %v1688 = vpop.permute.xlu0 %1687
      %1689 = vrot.lane.b32.xlu0 %v1623, 32
      %v1690 = vpop.permute.xlu0 %1689
      %1691 = vrot.lane.b32.xlu0 %v1624, 32
      %v1692 = vpop.permute.xlu0 %1691
      %1693 = vrot.lane.b32.xlu0 %v1625, 32
      %v1694 = vpop.permute.xlu0 %1693
      %1695 = vrot.lane.b32.xlu0 %v1626, 32
      %v1696 = vpop.permute.xlu0 %1695
      %1697 = vrot.lane.b32.xlu0 %v1627, 32
      %v1698 = vpop.permute.xlu0 %1697
      %1699 = vrot.lane.b32.xlu0 %v1628, 32
      %v1700 = vpop.permute.xlu0 %1699
      %1701 = vrot.lane.b32.xlu0 %v1629, 32
      %v1702 = vpop.permute.xlu0 %1701
      %1703 = vrot.lane.b32.xlu0 %v1630, 32
      %v1704 = vpop.permute.xlu0 %1703
      %1705 = vrot.lane.b32.xlu0 %v1631, 32
      %v1706 = vpop.permute.xlu0 %1705
      %1707 = vrot.lane.b32.xlu0 %v1632, 32
      %v1708 = vpop.permute.xlu0 %1707
      %1709 = vrot.lane.b32.xlu0 %v1633, 32
      %v1710 = vpop.permute.xlu0 %1709
      %1711 = vrot.lane.b32.xlu0 %v1634, 32
      %v1712 = vpop.permute.xlu0 %1711
      %1713 = vrot.lane.b32.xlu0 %v1635, 32
      %v1714 = vpop.permute.xlu0 %1713
      %1715 = vrot.lane.b32.xlu0 %v1636, 32
      %v1716 = vpop.permute.xlu0 %1715
      %1717 = vrot.lane.b32.xlu0 %v1637, 32
      %v1718 = vpop.permute.xlu0 %1717
      %1719 = vrot.lane.b32.xlu0 %v1638, 32
      %v1720 = vpop.permute.xlu0 %1719
      %1721 = vrot.lane.b32.xlu0 %v1639, 32
      %v1722 = vpop.permute.xlu0 %1721
      %1723 = vrot.lane.b32.xlu0 %v1640, 32
      %v1724 = vpop.permute.xlu0 %1723
      %1725 = vrot.lane.b32.xlu0 %v1641, 32
      %v1726 = vpop.permute.xlu0 %1725
      %1727 = vrot.lane.b32.xlu0 %v1642, 32
      %v1728 = vpop.permute.xlu0 %1727
      %1729 = vrot.lane.b32.xlu0 %v1643, 32
      %v1730 = vpop.permute.xlu0 %1729
      %1731 = vrot.lane.b32.xlu0 %v1644, 32
      %v1732 = vpop.permute.xlu0 %1731
      %1733 = vrot.lane.b32.xlu0 %v1645, 32
      %v1734 = vpop.permute.xlu0 %1733
      %1735 = vrot.lane.b32.xlu0 %v1646, 32
      %v1736 = vpop.permute.xlu0 %1735
      %1737 = vrot.lane.b32.xlu0 %v1647, 32
      %v1738 = vpop.permute.xlu0 %1737
      %1739 = vrot.lane.b32.xlu0 %v1648, 32
      %v1740 = vpop.permute.xlu0 %1739
      %1741 = vrot.lane.b32.xlu0 %v1649, 32
      %v1742 = vpop.permute.xlu0 %1741
      %1743 = vrot.lane.b32.xlu0 %v1650, 32
      %v1744 = vpop.permute.xlu0 %1743
      %1745 = vrot.lane.b32.xlu0 %v1651, 32
      %v1746 = vpop.permute.xlu0 %1745
      %1747 = vrot.lane.b32.xlu0 %v1652, 32
      %v1748 = vpop.permute.xlu0 %1747
      %vm1781 = vcmask 294144
      %1782 = vst.msk [vmem:[#allocation2] sm:$0xff] %vm1781, %v1686
      %1783 = vst.msk [vmem:[#allocation2 + $0x8] sm:$0xff] %vm1781, %v1688
      %1784 = vst.msk [vmem:[#allocation2 + $0x10] sm:$0xff] %vm1781, %v1690
      %1785 = vst.msk [vmem:[#allocation2 + $0x18] sm:$0xff] %vm1781, %v1692
      %1786 = vst.msk [vmem:[#allocation2 + $0x20] sm:$0xff] %vm1781, %v1694
      %1787 = vst.msk [vmem:[#allocation2 + $0x28] sm:$0xff] %vm1781, %v1696
      %1788 = vst.msk [vmem:[#allocation2 + $0x30] sm:$0xff] %vm1781, %v1698
      %1789 = vst.msk [vmem:[#allocation2 + $0x38] sm:$0xff] %vm1781, %v1700
      %1790 = vst.msk [vmem:[#allocation2 + $0x40] sm:$0xff] %vm1781, %v1702
      %1791 = vst.msk [vmem:[#allocation2 + $0x48] sm:$0xff] %vm1781, %v1704
      %1792 = vst.msk [vmem:[#allocation2 + $0x50] sm:$0xff] %vm1781, %v1706
      %1793 = vst.msk [vmem:[#allocation2 + $0x58] sm:$0xff] %vm1781, %v1708
      %1794 = vst.msk [vmem:[#allocation2 + $0x60] sm:$0xff] %vm1781, %v1710
      %1795 = vst.msk [vmem:[#allocation2 + $0x68] sm:$0xff] %vm1781, %v1712
      %1796 = vst.msk [vmem:[#allocation2 + $0x70] sm:$0xff] %vm1781, %v1714
      %1797 = vst.msk [vmem:[#allocation2 + $0x78] sm:$0xff] %vm1781, %v1716
      %1798 = vst.msk [vmem:[#allocation2 + $0x80] sm:$0xff] %vm1781, %v1718
      %1799 = vst.msk [vmem:[#allocation2 + $0x88] sm:$0xff] %vm1781, %v1720
      %1800 = vst.msk [vmem:[#allocation2 + $0x90] sm:$0xff] %vm1781, %v1722
      %1801 = vst.msk [vmem:[#allocation2 + $0x98] sm:$0xff] %vm1781, %v1724
      %1802 = vst.msk [vmem:[#allocation2 + $0xa0] sm:$0xff] %vm1781, %v1726
      %1803 = vst.msk [vmem:[#allocation2 + $0xa8] sm:$0xff] %vm1781, %v1728
      %1804 = vst.msk [vmem:[#allocation2 + $0xb0] sm:$0xff] %vm1781, %v1730
      %1805 = vst.msk [vmem:[#allocation2 + $0xb8] sm:$0xff] %vm1781, %v1732
      %1806 = vst.msk [vmem:[#allocation2 + $0xc0] sm:$0xff] %vm1781, %v1734
      %1807 = vst.msk [vmem:[#allocation2 + $0xc8] sm:$0xff] %vm1781, %v1736
      %1808 = vst.msk [vmem:[#allocation2 + $0xd0] sm:$0xff] %vm1781, %v1738
      %1809 = vst.msk [vmem:[#allocation2 + $0xd8] sm:$0xff] %vm1781, %v1740
      %1810 = vst.msk [vmem:[#allocation2 + $0xe0] sm:$0xff] %vm1781, %v1742
      %1811 = vst.msk [vmem:[#allocation2 + $0xe8] sm:$0xff] %vm1781, %v1744
      %1812 = vst.msk [vmem:[#allocation2 + $0xf0] sm:$0xff] %vm1781, %v1746
      %1813 = vst.msk [vmem:[#allocation2 + $0xf8] sm:$0xff] %vm1781, %v1748
      %v1814 = vld [vmem:[#allocation2] sm:$0xff]
      %v1815 = vld [vmem:[#allocation2 + $0x8] sm:$0xff]
      %v1816 = vld [vmem:[#allocation2 + $0x10] sm:$0xff]
      %v1817 = vld [vmem:[#allocation2 + $0x18] sm:$0xff]
      %v1818 = vld [vmem:[#allocation2 + $0x20] sm:$0xff]
      %v1819 = vld [vmem:[#allocation2 + $0x28] sm:$0xff]
      %v1820 = vld [vmem:[#allocation2 + $0x30] sm:$0xff]
      %v1821 = vld [vmem:[#allocation2 + $0x38] sm:$0xff]
      %v1822 = vld [vmem:[#allocation2 + $0x40] sm:$0xff]
      %v1823 = vld [vmem:[#allocation2 + $0x48] sm:$0xff]
      %v1824 = vld [vmem:[#allocation2 + $0x50] sm:$0xff]
      %v1825 = vld [vmem:[#allocation2 + $0x58] sm:$0xff]
      %v1826 = vld [vmem:[#allocation2 + $0x60] sm:$0xff]
      %v1827 = vld [vmem:[#allocation2 + $0x68] sm:$0xff]
      %v1828 = vld [vmem:[#allocation2 + $0x70] sm:$0xff]
      %v1829 = vld [vmem:[#allocation2 + $0x78] sm:$0xff]
      %v1830 = vld [vmem:[#allocation2 + $0x80] sm:$0xff]
      %v1831 = vld [vmem:[#allocation2 + $0x88] sm:$0xff]
      %v1832 = vld [vmem:[#allocation2 + $0x90] sm:$0xff]
      %v1833 = vld [vmem:[#allocation2 + $0x98] sm:$0xff]
      %v1834 = vld [vmem:[#allocation2 + $0xa0] sm:$0xff]
      %v1835 = vld [vmem:[#allocation2 + $0xa8] sm:$0xff]
      %v1836 = vld [vmem:[#allocation2 + $0xb0] sm:$0xff]
      %v1837 = vld [vmem:[#allocation2 + $0xb8] sm:$0xff]
      %v1838 = vld [vmem:[#allocation2 + $0xc0] sm:$0xff]
      %v1839 = vld [vmem:[#allocation2 + $0xc8] sm:$0xff]
      %v1840 = vld [vmem:[#allocation2 + $0xd0] sm:$0xff]
      %v1841 = vld [vmem:[#allocation2 + $0xd8] sm:$0xff]
      %v1842 = vld [vmem:[#allocation2 + $0xe0] sm:$0xff]
      %v1843 = vld [vmem:[#allocation2 + $0xe8] sm:$0xff]
      %v1844 = vld [vmem:[#allocation2 + $0xf0] sm:$0xff]
      %v1845 = vld [vmem:[#allocation2 + $0xf8] sm:$0xff]
      %v1846 = vld [vmem:[%s1] sm:$0xff]
      %v1847 = vld [vmem:[%s1 + $0x8] sm:$0xff]
      %v1848 = vld [vmem:[%s1 + $0x10] sm:$0xff]
      %v1849 = vld [vmem:[%s1 + $0x18] sm:$0xff]
      %v1850 = vld [vmem:[%s1 + $0x20] sm:$0xf]
      %v1851 = vld [vmem:[%s2] sm:$0x1]
      %v1853 = vlaneseq
      %v1854 = vshrl.u32 %v1853, 7
      %v1855 = vsub.s32 0, %v1854
      %v1856 = vrot.slane %v1851, %v1855
      %vm1858 = vcmask 293888
      %v1860 = vsel %vm1858, %v1814, 0
      %v1863 = vsel %vm1858, %v1815, 0
      %v1866 = vsel %vm1858, %v1816, 0
      %v1869 = vsel %vm1858, %v1817, 0
      %v1872 = vsel %vm1858, %v1818, 0
      %v1875 = vsel %vm1858, %v1819, 0
      %v1878 = vsel %vm1858, %v1820, 0
      %v1881 = vsel %vm1858, %v1821, 0
      %v1884 = vsel %vm1858, %v1822, 0
      %v1887 = vsel %vm1858, %v1823, 0
      %v1890 = vsel %vm1858, %v1824, 0
      %v1893 = vsel %vm1858, %v1825, 0
      %v1896 = vsel %vm1858, %v1826, 0
      %v1899 = vsel %vm1858, %v1827, 0
      %v1902 = vsel %vm1858, %v1828, 0
      %v1905 = vsel %vm1858, %v1829, 0
      %v1908 = vsel %vm1858, %v1830, 0
      %v1911 = vsel %vm1858, %v1831, 0
      %v1914 = vsel %vm1858, %v1832, 0
      %v1917 = vsel %vm1858, %v1833, 0
      %v1920 = vsel %vm1858, %v1834, 0
      %v1923 = vsel %vm1858, %v1835, 0
      %v1926 = vsel %vm1858, %v1836, 0
      %v1929 = vsel %vm1858, %v1837, 0
      %v1932 = vsel %vm1858, %v1838, 0
      %v1935 = vsel %vm1858, %v1839, 0
      %v1938 = vsel %vm1858, %v1840, 0
      %v1941 = vsel %vm1858, %v1841, 0
      %v1944 = vsel %vm1858, %v1842, 0
      %v1947 = vsel %vm1858, %v1843, 0
      %v1950 = vsel %vm1858, %v1844, 0
      %v1953 = vsel %vm1858, %v1845, 0
      %vm1955 = vcmask 1043456
      %v1957 = vsel %vm1955, %v1850, 0
      %1959 = vmatprep.subr.mxu0 0.0
      %1960 = vmatpush1.msra.mxu0 %v1846
      %1961 = vmatprep.subr.mxu0 0.0
      %1962 = vmatpush1.msra.mxu0 %v1847
      %1963 = vmatprep.subr.mxu0 0.0
      %1964 = vmatpush1.msra.mxu0 %v1848
      %1965 = vmatprep.subr.mxu0 0.0
      %1966 = vmatpush1.msra.mxu0 %v1849
      %1967 = vmatprep.subr.mxu0 0.0
      %1968 = vmatpush1.msra.mxu0 %v1957
      %1969 = vmatprep.subr.mxu0 0.0
      %1970 = vmatpush1.msra.mxu0 0.0
      %1971 = vmatprep.subr.mxu0 0.0
      %1972 = vmatpush1.msra.mxu0 0.0
      %1973 = vmatprep.subr.mxu0 0.0
      %1974 = vmatpush1.msra.mxu0 0.0
      %1975 = vmatprep.subr.mxu0 0.0
      %1976 = vmatpush1.msra.mxu0 0.0
      %1977 = vmatprep.subr.mxu0 0.0
      %1978 = vmatpush1.msra.mxu0 0.0
      %1979 = vmatprep.subr.mxu0 0.0
      %1980 = vmatpush1.msra.mxu0 0.0
      %1981 = vmatprep.subr.mxu0 0.0
      %1982 = vmatpush1.msra.mxu0 0.0
      %1983 = vmatprep.subr.mxu0 0.0
      %1984 = vmatpush1.msra.mxu0 0.0
      %1985 = vmatprep.subr.mxu0 0.0
      %1986 = vmatpush1.msra.mxu0 0.0
      %1987 = vmatprep.subr.mxu0 0.0
      %1988 = vmatpush1.msra.mxu0 0.0
      %1989 = vmatprep.subr.mxu0 0.0
      %1990 = vmatpush1.msra.mxu0 0.0
      %1991 = vmatprep.subr.mxu0 0.0
      %1992 = vmatpush1.msra.mxu0 0.0
      %1993 = vmatprep.subr.mxu0 0.0
      %1994 = vmatpush1.msra.mxu0 0.0
      %1995 = vmatprep.subr.mxu0 0.0
      %1996 = vmatpush1.msra.mxu0 0.0
      %1997 = vmatprep.subr.mxu0 0.0
      %1998 = vmatpush1.msra.mxu0 0.0
      %1999 = vmatprep.subr.mxu0 0.0
      %2000 = vmatpush1.msra.mxu0 0.0
      %2001 = vmatprep.subr.mxu0 0.0
      %2002 = vmatpush1.msra.mxu0 0.0
      %2003 = vmatprep.subr.mxu0 0.0
      %2004 = vmatpush1.msra.mxu0 0.0
      %2005 = vmatprep.subr.mxu0 0.0
      %2006 = vmatpush1.msra.mxu0 0.0
      %2007 = vmatprep.subr.mxu0 0.0
      %2008 = vmatpush1.msra.mxu0 0.0
      %2009 = vmatprep.subr.mxu0 0.0
      %2010 = vmatpush1.msra.mxu0 0.0
      %2011 = vmatprep.subr.mxu0 0.0
      %2012 = vmatpush1.msra.mxu0 0.0
      %2013 = vmatprep.subr.mxu0 0.0
      %2014 = vmatpush1.msra.mxu0 0.0
      %2015 = vmatprep.subr.mxu0 0.0
      %2016 = vmatpush1.msra.mxu0 0.0
      %2017 = vmatprep.subr.mxu0 0.0
      %2018 = vmatpush1.msra.mxu0 0.0
      %2019 = vmatprep.subr.mxu0 0.0
      %2020 = vmatpush1.msra.mxu0 0.0
      %2021 = vmatprep.subr.mxu0 0.0
      %2022 = vmatpush1.msra.mxu0 0.0
      %2023 = vmatprep.mubr.f32.mxu0 0.0
      %2024 = vmatmul.mubr.f32.gmra.mrb[0].mxu0 %v1860
      %v2025 = vpop.f32.mrb[0].mxu0
      %v2026 = vadd.f32 %v1856, %v2025
      %v2027 = vpop.f32.mrb[0].mxu0
      %2028 = vmatprep.mubr.f32.mxu0 0.0
      %2029 = vmatmul.mubr.f32.gmra.mrb[0].mxu0 %v1863
      %v2030 = vpop.f32.mrb[0].mxu0
      %v2031 = vadd.f32 %v1856, %v2030
      %v2032 = vpop.f32.mrb[0].mxu0
      %2033 = vmatprep.mubr.f32.mxu0 0.0
      %2034 = vmatmul.mubr.f32.gmra.mrb[0].mxu0 %v1866
      %v2035 = vpop.f32.mrb[0].mxu0
      %v2036 = vadd.f32 %v1856, %v2035
      %v2037 = vpop.f32.mrb[0].mxu0
      %2038 = vmatprep.mubr.f32.mxu0 0.0
      %2039 = vmatmul.mubr.f32.gmra.mrb[0].mxu0 %v1869
      %v2040 = vpop.f32.mrb[0].mxu0
      %v2041 = vadd.f32 %v1856, %v2040
      %v2042 = vpop.f32.mrb[0].mxu0
      %2043 = vmatprep.mubr.f32.mxu0 0.0
      %2044 = vmatmul.mubr.f32.gmra.mrb[0].mxu0 %v1872
      %v2045 = vpop.f32.mrb[0].mxu0
      %v2046 = vadd.f32 %v1856, %v2045
      %v2047 = vpop.f32.mrb[0].mxu0
      %2048 = vmatprep.mubr.f32.mxu0 0.0
      %2049 = vmatmul.mubr.f32.gmra.mrb[0].mxu0 %v1875
      %v2050 = vpop.f32.mrb[0].mxu0
      %v2051 = vadd.f32 %v1856, %v2050
      %v2052 = vpop.f32.mrb[0].mxu0
      %2053 = vmatprep.mubr.f32.mxu0 0.0
      %2054 = vmatmul.mubr.f32.gmra.mrb[0].mxu0 %v1878
      %v2055 = vpop.f32.mrb[0].mxu0
      %v2056 = vadd.f32 %v1856, %v2055
      %v2057 = vpop.f32.mrb[0].mxu0
      %2058 = vmatprep.mubr.f32.mxu0 0.0
      %2059 = vmatmul.mubr.f32.gmra.mrb[0].mxu0 %v1881
      %v2060 = vpop.f32.mrb[0].mxu0
      %v2061 = vadd.f32 %v1856, %v2060
      %v2062 = vpop.f32.mrb[0].mxu0
      %2063 = vmatprep.mubr.f32.mxu0 0.0
      %2064 = vmatmul.mubr.f32.gmra.mrb[0].mxu0 %v1884
      %v2065 = vpop.f32.mrb[0].mxu0
      %v2066 = vadd.f32 %v1856, %v2065
      %v2067 = vpop.f32.mrb[0].mxu0
      %2068 = vmatprep.mubr.f32.mxu0 0.0
      %2069 = vmatmul.mubr.f32.gmra.mrb[0].mxu0 %v1887
      %v2070 = vpop.f32.mrb[0].mxu0
      %v2071 = vadd.f32 %v1856, %v2070
      %v2072 = vpop.f32.mrb[0].mxu0
      %2073 = vmatprep.mubr.f32.mxu0 0.0
      %2074 = vmatmul.mubr.f32.gmra.mrb[0].mxu0 %v1890
      %v2075 = vpop.f32.mrb[0].mxu0
      %v2076 = vadd.f32 %v1856, %v2075
      %v2077 = vpop.f32.mrb[0].mxu0
      %2078 = vmatprep.mubr.f32.mxu0 0.0
      %2079 = vmatmul.mubr.f32.gmra.mrb[0].mxu0 %v1893
      %v2080 = vpop.f32.mrb[0].mxu0
      %v2081 = vadd.f32 %v1856, %v2080
      %v2082 = vpop.f32.mrb[0].mxu0
      %2083 = vmatprep.mubr.f32.mxu0 0.0
      %2084 = vmatmul.mubr.f32.gmra.mrb[0].mxu0 %v1896
      %v2085 = vpop.f32.mrb[0].mxu0
      %v2086 = vadd.f32 %v1856, %v2085
      %v2087 = vpop.f32.mrb[0].mxu0
      %2088 = vmatprep.mubr.f32.mxu0 0.0
      %2089 = vmatmul.mubr.f32.gmra.mrb[0].mxu0 %v1899
      %v2090 = vpop.f32.mrb[0].mxu0
      %v2091 = vadd.f32 %v1856, %v2090
      %v2092 = vpop.f32.mrb[0].mxu0
      %2093 = vmatprep.mubr.f32.mxu0 0.0
      %2094 = vmatmul.mubr.f32.gmra.mrb[0].mxu0 %v1902
      %v2095 = vpop.f32.mrb[0].mxu0
      %v2096 = vadd.f32 %v1856, %v2095
      %v2097 = vpop.f32.mrb[0].mxu0
      %2098 = vmatprep.mubr.f32.mxu0 0.0
      %2099 = vmatmul.mubr.f32.gmra.mrb[0].mxu0 %v1905
      %v2100 = vpop.f32.mrb[0].mxu0
      %v2101 = vadd.f32 %v1856, %v2100
      %v2102 = vpop.f32.mrb[0].mxu0
      %2103 = vmatprep.mubr.f32.mxu0 0.0
      %2104 = vmatmul.mubr.f32.gmra.mrb[0].mxu0 %v1908
      %v2105 = vpop.f32.mrb[0].mxu0
      %v2106 = vadd.f32 %v1856, %v2105
      %v2107 = vpop.f32.mrb[0].mxu0
      %2108 = vmatprep.mubr.f32.mxu0 0.0
      %2109 = vmatmul.mubr.f32.gmra.mrb[0].mxu0 %v1911
      %v2110 = vpop.f32.mrb[0].mxu0
      %v2111 = vadd.f32 %v1856, %v2110
      %v2112 = vpop.f32.mrb[0].mxu0
      %2113 = vmatprep.mubr.f32.mxu0 0.0
      %2114 = vmatmul.mubr.f32.gmra.mrb[0].mxu0 %v1914
      %v2115 = vpop.f32.mrb[0].mxu0
      %v2116 = vadd.f32 %v1856, %v2115
      %v2117 = vpop.f32.mrb[0].mxu0
      %2118 = vmatprep.mubr.f32.mxu0 0.0
      %2119 = vmatmul.mubr.f32.gmra.mrb[0].mxu0 %v1917
      %v2120 = vpop.f32.mrb[0].mxu0
      %v2121 = vadd.f32 %v1856, %v2120
      %v2122 = vpop.f32.mrb[0].mxu0
      %2123 = vmatprep.mubr.f32.mxu0 0.0
      %2124 = vmatmul.mubr.f32.gmra.mrb[0].mxu0 %v1920
      %v2125 = vpop.f32.mrb[0].mxu0
      %v2126 = vadd.f32 %v1856, %v2125
      %v2127 = vpop.f32.mrb[0].mxu0
      %2128 = vmatprep.mubr.f32.mxu0 0.0
      %2129 = vmatmul.mubr.f32.gmra.mrb[0].mxu0 %v1923
      %v2130 = vpop.f32.mrb[0].mxu0
      %v2131 = vadd.f32 %v1856, %v2130
      %v2132 = vpop.f32.mrb[0].mxu0
      %2133 = vmatprep.mubr.f32.mxu0 0.0
      %2134 = vmatmul.mubr.f32.gmra.mrb[0].mxu0 %v1926
      %v2135 = vpop.f32.mrb[0].mxu0
      %v2136 = vadd.f32 %v1856, %v2135
      %v2137 = vpop.f32.mrb[0].mxu0
      %2138 = vmatprep.mubr.f32.mxu0 0.0
      %2139 = vmatmul.mubr.f32.gmra.mrb[0].mxu0 %v1929
      %v2140 = vpop.f32.mrb[0].mxu0
      %v2141 = vadd.f32 %v1856, %v2140
      %v2142 = vpop.f32.mrb[0].mxu0
      %2143 = vmatprep.mubr.f32.mxu0 0.0
      %2144 = vmatmul.mubr.f32.gmra.mrb[0].mxu0 %v1932
      %v2145 = vpop.f32.mrb[0].mxu0
      %v2146 = vadd.f32 %v1856, %v2145
      %v2147 = vpop.f32.mrb[0].mxu0
      %2148 = vmatprep.mubr.f32.mxu0 0.0
      %2149 = vmatmul.mubr.f32.gmra.mrb[0].mxu0 %v1935
      %v2150 = vpop.f32.mrb[0].mxu0
      %v2151 = vadd.f32 %v1856, %v2150
      %v2152 = vpop.f32.mrb[0].mxu0
      %2153 = vmatprep.mubr.f32.mxu0 0.0
      %2154 = vmatmul.mubr.f32.gmra.mrb[0].mxu0 %v1938
      %v2155 = vpop.f32.mrb[0].mxu0
      %v2156 = vadd.f32 %v1856, %v2155
      %v2157 = vpop.f32.mrb[0].mxu0
      %2158 = vmatprep.mubr.f32.mxu0 0.0
      %2159 = vmatmul.mubr.f32.gmra.mrb[0].mxu0 %v1941
      %v2160 = vpop.f32.mrb[0].mxu0
      %v2161 = vadd.f32 %v1856, %v2160
      %v2162 = vpop.f32.mrb[0].mxu0
      %2163 = vmatprep.mubr.f32.mxu0 0.0
      %2164 = vmatmul.mubr.f32.gmra.mrb[0].mxu0 %v1944
      %v2165 = vpop.f32.mrb[0].mxu0
      %v2166 = vadd.f32 %v1856, %v2165
      %v2167 = vpop.f32.mrb[0].mxu0
      %2168 = vmatprep.mubr.f32.mxu0 0.0
      %2169 = vmatmul.mubr.f32.gmra.mrb[0].mxu0 %v1947
      %v2170 = vpop.f32.mrb[0].mxu0
      %v2171 = vadd.f32 %v1856, %v2170
      %v2172 = vpop.f32.mrb[0].mxu0
      %2173 = vmatprep.mubr.f32.mxu0 0.0
      %2174 = vmatmul.mubr.f32.gmra.mrb[0].mxu0 %v1950
      %v2175 = vpop.f32.mrb[0].mxu0
      %v2176 = vadd.f32 %v1856, %v2175
      %v2177 = vpop.f32.mrb[0].mxu0
      %2178 = vmatprep.mubr.f32.mxu0 0.0
      %2179 = vmatmul.mubr.f32.gmra.mrb[0].mxu0 %v1953
      %v2180 = vpop.f32.mrb[0].mxu0
      %v2181 = vadd.f32 %v1856, %v2180
      %v2182 = vpop.f32.mrb[0].mxu0
      %2183 = vdwg.mxu0
      %2184 = vst [vmem:[%s194] sm:$0xff] %v2026
      %2185 = vst [vmem:[%s194 + $0x8] sm:$0xff] %v2031
      %2186 = vst [vmem:[%s194 + $0x10] sm:$0xff] %v2036
      %2187 = vst [vmem:[%s194 + $0x18] sm:$0xff] %v2041
      %2188 = vst [vmem:[%s194 + $0x20] sm:$0xff] %v2046
      %2189 = vst [vmem:[%s194 + $0x28] sm:$0xff] %v2051
      %2190 = vst [vmem:[%s194 + $0x30] sm:$0xff] %v2056
      %2191 = vst [vmem:[%s194 + $0x38] sm:$0xff] %v2061
      %2192 = vst [vmem:[%s194 + $0x40] sm:$0xff] %v2066
      %2193 = vst [vmem:[%s194 + $0x48] sm:$0xff] %v2071
      %2194 = vst [vmem:[%s194 + $0x50] sm:$0xff] %v2076
      %2195 = vst [vmem:[%s194 + $0x58] sm:$0xff] %v2081
      %2196 = vst [vmem:[%s194 + $0x60] sm:$0xff] %v2086
      %2197 = vst [vmem:[%s194 + $0x68] sm:$0xff] %v2091
      %2198 = vst [vmem:[%s194 + $0x70] sm:$0xff] %v2096
      %2199 = vst [vmem:[%s194 + $0x78] sm:$0xff] %v2101
      %2200 = vst [vmem:[%s194 + $0x80] sm:$0xff] %v2106
      %2201 = vst [vmem:[%s194 + $0x88] sm:$0xff] %v2111
      %2202 = vst [vmem:[%s194 + $0x90] sm:$0xff] %v2116
      %2203 = vst [vmem:[%s194 + $0x98] sm:$0xff] %v2121
      %2204 = vst [vmem:[%s194 + $0xa0] sm:$0xff] %v2126
      %2205 = vst [vmem:[%s194 + $0xa8] sm:$0xff] %v2131
      %2206 = vst [vmem:[%s194 + $0xb0] sm:$0xff] %v2136
      %2207 = vst [vmem:[%s194 + $0xb8] sm:$0xff] %v2141
      %2208 = vst [vmem:[%s194 + $0xc0] sm:$0xff] %v2146
      %2209 = vst [vmem:[%s194 + $0xc8] sm:$0xff] %v2151
      %2210 = vst [vmem:[%s194 + $0xd0] sm:$0xff] %v2156
      %2211 = vst [vmem:[%s194 + $0xd8] sm:$0xff] %v2161
      %2212 = vst [vmem:[%s194 + $0xe0] sm:$0xff] %v2166
      %2213 = vst [vmem:[%s194 + $0xe8] sm:$0xff] %v2171
      %2214 = vst [vmem:[%s194 + $0xf0] sm:$0xff] %v2176
      %2215 = vst [vmem:[%s194 + $0xf8] sm:$0xff] %v2181
      %s2216 = smul.u32 16, %s19
      %p2217 = scmp.lt.s32.totalorder %s18, 1
      %s2218 = scalar_select %p2217, %s18, 1
      %p2219 = scmp.lt.s32.totalorder %s2216, 15
      %s2220 = scalar_select %p2219, %s2216, 15
      %s2221 = smul.addr %s2220, 2
      %s2222 = smul.addr %s2218, 32
      %s2223 = sadd.s32 %s2221, %s2222
      %s2224 = smul.addr %s2223, 8
      %s2225 = scalar_lea.vmem %s3, %s2224
      // Predicated region
      $region33: #{_reflection_conv_impl.1} parent=31 // pred_check
        %p2226 = pneg %p114
      $region34: #{_reflection_conv_impl.1} parent=31 // pred_check_branch
        %2228 = sbr.rel (%p2226) target = $region36
      $region35: #{_reflection_conv_impl.1} parent=31 // pred_region
        %s2229 = smul.u32 16, %s19
      $region36: #{_reflection_conv_impl.1} parent=31 // pred_fallthru
        _
    $region32: #{_reflection_conv_impl.1} parent=5 // pred_fallthru
      _
    %p2230 = scmp.le.s32.totalorder 2, %s9
    // Predicated region
    $region37: #{_reflection_conv_impl.1} parent=5 // pred_check
      %p2231 = pneg %p2230
    $region38: #{_reflection_conv_impl.1} parent=5 // pred_check_branch
      %2233 = sbr.rel (%p2231) target = $region40
    $region39: #{_reflection_conv_impl.1} parent=5 // pred_region
      %s2234 = ssub.s32 %s9, 2
      // Predicated region
      $region41: #{_reflection_conv_impl.1} parent=39 // pred_check
        %p2235 = pneg %p120
      $region42: #{_reflection_conv_impl.1} parent=39 // pred_check_branch
        %2237 = sbr.rel (%p2235) target = $region44
      $region43: #{_reflection_conv_impl.1} parent=39 // pred_region
        %s2238 = smul.u32 16, %s21
        %p2239 = scmp.lt.s32.totalorder %s20, 1
        %s2240 = scalar_select %p2239, %s20, 1
        %p2241 = scmp.lt.s32.totalorder %s2238, 15
        %s2242 = scalar_select %p2241, %s2238, 15
        %s2243 = smul.addr %s2242, 2
        %s2244 = smul.addr %s2240, 32
        %s2245 = sadd.s32 %s2243, %s2244
        %s2246 = smul.addr %s2245, 8
        %s2247 = scalar_lea.vmem %s3, %s2246
      $region44: #{_reflection_conv_impl.1} parent=39 // pred_fallthru
        _
    $region40: #{_reflection_conv_impl.1} parent=5 // pred_fallthru
      _
  $region6: #{_reflection_conv_impl.1} parent=0 // loop_footer
    %s13 = sadd.s32 1, %s9
  $region7: #{_reflection_conv_impl.1} parent=0 // loop_footer_branch
    %8 = sbr.rel target = $region3
  $region8: #{_reflection_conv_impl.1} parent=0 // loop_exit
    _

// kernel: _reflection_conv_impl.1
$region0: #{_reflection_conv_impl.1}
  #allocation0 [shape = 'u32[]', space=smem, size = 0x4, offset = 0x4, fixed_abs, tag = 'smem constant byte address 0x4 - core index']
  #allocation1 [shape = 'u32[144,128]{1,0:T(1,128)}', space=vmem, size = 0x12000, scoped, tag = 'internal scratch']
  #allocation2 [shape = 'f32[16,16,36]{2,1,0:T(8,128)}', space=vmem, size = 0x20000, scoped, tag = 'scratch operand']
  %s0 = inlined_call_operand.vmem [shape: f32[2,18,18,4], index: 0, kind: input, shape index: {}]
  %s1 = inlined_call_operand.vmem [shape: f32[36,128], index: 1, kind: input, shape index: {}]
  %s2 = inlined_call_operand.vmem [shape: f32[1,128], index: 2, kind: input, shape index: {}]
  %s3 = inlined_call_operand.vmem [shape: f32[2,16,16,128], index: 3, kind: output, shape index: {}]
  %s4 = sld [smem:[#allocation0]]
  $region45: #{_reflection_conv_impl.1} parent=0
    _
  %s6 = ssub.s32 1, %s4
  %s7 = scalar_select 0, %s6, %s4
  loop: start=0, step=1, limit=4
  $region2: #{_reflection_conv_impl.1} parent=0 // loop_pre_header
    _
  $region3: #{_reflection_conv_impl.1} parent=0 // loop_header
    %s9 = sphi 0, %s13
    %p10 = scmp.ge.s32.totalorder %s9, 4
    %s16 = sphi 0, %s28
    %s17 = sphi 0, %s24
    %s18 = sphi 0, %s16
    %s19 = sphi 0, %s17
    %s20 = sphi 0, %s18
    %s21 = sphi 0, %s19
    %s31 = sphi 0, %s33
    %s34 = sphi 0, %s31
    %s35 = sphi 0, %s34
    %s51 = sphi 0, %s35
    %s55 = sphi 0, %s55
    %s57 = sphi 0, %s55
    %s58 = sphi 0, %s57
    %s72 = sphi 0, %s58
    %s76 = sphi 0, %s76
    %s78 = sphi 0, %s76
    %s79 = sphi 0, %s78
    %s93 = sphi 0, %s79
    %s101 = sphi 0, %s103
    %s104 = sphi 0, %s101
    %s105 = sphi 0, %s104
    %s121 = sphi 0, %s105
  $region4: #{_reflection_conv_impl.1} parent=0 // loop_header_branch
    %12 = sbr.rel (%p10) target = $region8
  $region5: #{_reflection_conv_impl.1} parent=0 // loop_body
    %s14 = ssub.s32 %s9, 1
    %s15 = ssub.s32 %s9, 2
    %s22 = sadd.s32 1, %s17
    %p23 = scmp.ge.s32.totalorder %s22, 1
    %s24 = scalar_select %p23, 0, %s22
    %s25 = sadd.s32 1, %s16
    %s26 = scalar_select %p23, %s25, %s16
    %p27 = scmp.ge.s32.totalorder %s26, 2
    %s28 = scalar_select %p27, 0, %s26
    %s29 = ssub.s32 %s16, %s28
    %p30 = scmp.eq.s32.totalorder %s29, 0
    %s32 = sadd.s32 %s31, 1
    %s33 = scalar_select %p30, %s31, %s32
    %p36 = pneg %p30
    %p37 = scmp.eq.s32.totalorder %s9, 1
    %p38 = por %p36, %p37
    %p39 = scmp.ne.s32.totalorder %s31, %s34
    %p40 = scmp.eq.s32.totalorder %s9, 0
    %p41 = por %p39, %p40
    %p42 = scmp.ne.s32.totalorder %s31, %s34
    %p43 = scmp.eq.s32.totalorder %s14, 1
    %p44 = por %p42, %p43
    %p45 = scmp.ne.s32.totalorder %s34, %s35
    %p46 = scmp.eq.s32.totalorder %s14, 0
    %p47 = por %p45, %p46
    %p48 = scmp.ne.s32.totalorder %s34, %s35
    %p49 = scmp.eq.s32.totalorder %s15, 1
    %p50 = por %p48, %p49
    %p52 = scmp.ne.s32.totalorder %s35, %s51
    %p53 = scmp.eq.s32.totalorder %s15, 0
    %p54 = por %p52, %p53
    %s56 = sadd.s32 %s55, 1
    %p59 = scmp.eq.s32.totalorder %s9, 1
    %p60 = scmp.ne.s32.totalorder %s55, %s57
    %p61 = scmp.eq.s32.totalorder %s9, 0
    %p62 = por %p60, %p61
    %p63 = scmp.ne.s32.totalorder %s55, %s57
    %p64 = scmp.eq.s32.totalorder %s14, 1
    %p65 = por %p63, %p64
    %p66 = scmp.ne.s32.totalorder %s57, %s58
    %p67 = scmp.eq.s32.totalorder %s14, 0
    %p68 = por %p66, %p67
    %p69 = scmp.ne.s32.totalorder %s57, %s58
    %p70 = scmp.eq.s32.totalorder %s15, 1
    %p71 = por %p69, %p70
    %p73 = scmp.ne.s32.totalorder %s58, %s72
    %p74 = scmp.eq.s32.totalorder %s15, 0
    %p75 = por %p73, %p74
    %s77 = sadd.s32 %s76, 1
    %p80 = scmp.eq.s32.totalorder %s9, 1
    %p81 = scmp.ne.s32.totalorder %s76, %s78
    %p82 = scmp.eq.s32.totalorder %s9, 0
    %p83 = por %p81, %p82
    %p84 = scmp.ne.s32.totalorder %s76, %s78
    %p85 = scmp.eq.s32.totalorder %s14, 1
    %p86 = por %p84, %p85
    %p87 = scmp.ne.s32.totalorder %s78, %s79
    %p88 = scmp.eq.s32.totalorder %s14, 0
    %p89 = por %p87, %p88
    %p90 = scmp.ne.s32.totalorder %s78, %s79
    %p91 = scmp.eq.s32.totalorder %s15, 1
    %p92 = por %p90, %p91
    %p94 = scmp.ne.s32.totalorder %s79, %s93
    %p95 = scmp.eq.s32.totalorder %s15, 0
    %p96 = por %p94, %p95
    %s97 = ssub.s32 %s16, %s28
    %s98 = ssub.s32 %s17, %s24
    %s99 = sor.u32 %s97, %s98
    %p100 = scmp.eq.s32.totalorder %s99, 0
    %s102 = sadd.s32 %s101, 1
    %s103 = scalar_select %p100, %s101, %s102
    %p106 = pneg %p100
    %p107 = scmp.eq.s32.totalorder %s9, 1
    %p108 = por %p106, %p107
    %p109 = scmp.ne.s32.totalorder %s101, %s104
    %p110 = scmp.eq.s32.totalorder %s9, 0
    %p111 = por %p109, %p110
    %p112 = scmp.ne.s32.totalorder %s101, %s104
    %p113 = scmp.eq.s32.totalorder %s14, 1
    %p114 = por %p112, %p113
    %p115 = scmp.ne.s32.totalorder %s104, %s105
    %p116 = scmp.eq.s32.totalorder %s14, 0
    %p117 = por %p115, %p116
    %p118 = scmp.ne.s32.totalorder %s104, %s105
    %p119 = scmp.eq.s32.totalorder %s15, 1
    %p120 = por %p118, %p119
    %p122 = scmp.ne.s32.totalorder %s105, %s121
    %p123 = scmp.eq.s32.totalorder %s15, 0
    %p124 = por %p122, %p123
    %p125 = scmp.le.s32.totalorder 1, %s9
    %p126 = scmp.lt.s32.totalorder %s9, 3
    %p127 = pnand %p125, %p126
    %p128 = pneg %p127
    // Predicated region
    $region9: #{_reflection_conv_impl.1} parent=5 // pred_check
      _
    $region10: #{_reflection_conv_impl.1} parent=5 // pred_check_branch
      %130 = sbr.rel (%p127) target = $region12
    $region11: #{_reflection_conv_impl.1} parent=5 // pred_region
      %s131 = ssub.s32 %s9, 1
      // Predicated region
      $region13: #{_reflection_conv_impl.1} parent=11 // pred_check
        %p132 = pneg %p68
      $region14: #{_reflection_conv_impl.1} parent=11 // pred_check_branch
        %134 = sbr.rel (%p132) target = $region16
      $region15: #{_reflection_conv_impl.1} parent=11 // pred_region
        _
      $region16: #{_reflection_conv_impl.1} parent=11 // pred_fallthru
        _
      // Predicated region
      $region17: #{_reflection_conv_impl.1} parent=11 // pred_check
        %p135 = pneg %p89
      $region18: #{_reflection_conv_impl.1} parent=11 // pred_check_branch
        %137 = sbr.rel (%p135) target = $region20
      $region19: #{_reflection_conv_impl.1} parent=11 // pred_region
        _
      $region20: #{_reflection_conv_impl.1} parent=11 // pred_fallthru
        _
    $region12: #{_reflection_conv_impl.1} parent=5 // pred_fallthru
      _
    %p138 = scmp.lt.s32.totalorder %s9, 2
    // Predicated region
    $region21: #{_reflection_conv_impl.1} parent=5 // pred_check
      %p139 = pneg %p138
    $region22: #{_reflection_conv_impl.1} parent=5 // pred_check_branch
      %141 = sbr.rel (%p139) target = $region24
    $region23: #{_reflection_conv_impl.1} parent=5 // pred_region
      // Predicated region
      $region25: #{_reflection_conv_impl.1} parent=23 // pred_check
        %p142 = pneg %p41
      $region26: #{_reflection_conv_impl.1} parent=23 // pred_check_branch
        %144 = sbr.rel (%p142) target = $region28
      $region27: #{_reflection_conv_impl.1} parent=23 // pred_region
        %p145 = scmp.lt.s32.totalorder %s16, 1
        %s146 = scalar_select %p145, %s16, 1
        %s147 = smul.addr %s146, 54
        %s148 = smul.addr %s147, 8
        %s149 = scalar_lea.vmem %s0, %s148
      $region28: #{_reflection_conv_impl.1} parent=23 // pred_fallthru
        _
    $region24: #{_reflection_conv_impl.1} parent=5 // pred_fallthru
      _
    %p150 = scmp.le.s32.totalorder 1, %s9
    %p151 = scmp.lt.s32.totalorder %s9, 3
    %p152 = pnand %p150, %p151
    %p153 = pneg %p152
    // Predicated region
    $region29: #{_reflection_conv_impl.1} parent=5 // pred_check
      _
    $region30: #{_reflection_conv_impl.1} parent=5 // pred_check_branch
      %155 = sbr.rel (%p152) target = $region32
    $region31: #{_reflection_conv_impl.1} parent=5 // pred_region
      %s156 = ssub.s32 %s9, 1
      %p157 = scmp.lt.s32.totalorder %s18, 1
      %s158 = scalar_select %p157, %s18, 1
      %s159 = smul.addr %s158, 54
      %s160 = smul.addr %s159, 8
      %s161 = scalar_lea.vmem %s0, %s160
      %p162 = pneg %p47
      %p163 = pneg %p44
      %p164 = pneg %p68
      %p165 = pneg %p65
      %p166 = pneg %p89
      %p167 = pneg %p86
      %p168 = pneg %p117
      %p169 = pneg %p114
      %s170 = smul.u32 16, %s19
      %p171 = scmp.lt.s32.totalorder %s18, 1
      %s172 = scalar_select %p171, %s18, 1
      %p173 = scmp.lt.s32.totalorder %s170, 15
      %s174 = scalar_select %p173, %s170, 15
      %s175 = smul.addr %s174, 2
      %s176 = smul.addr %s172, 32
      %s177 = sadd.s32 %s175, %s176
      %s178 = smul.addr %s177, 8
      %s179 = scalar_lea.vmem %s3, %s178
      %p180 = scmp.lt.s32.totalorder %s18, 1
      %s181 = scalar_select %p180, %s18, 1
      %s182 = smul.addr %s181, 54
      %s183 = smul.addr %s182, 8
      %s184 = scalar_lea.vmem %s0, %s183
      %s185 = smul.u32 16, %s19
      %p186 = scmp.lt.s32.totalorder %s18, 1
      %s187 = scalar_select %p186, %s18, 1
      %p188 = scmp.lt.s32.totalorder %s185, 15
      %s189 = scalar_select %p188, %s185, 15
      %s190 = smul.addr %s189, 2
      %s191 = smul.addr %s187, 32
      %s192 = sadd.s32 %s190, %s191
      %s193 = smul.addr %s192, 8
      %s194 = scalar_lea.vmem %s3, %s193
      %s195 = smul.u32 16, %s19
      %s196 = smul.u32 %s19, 16
      %s197 = smul.u32 %s196, 24
      %s198 = scalar_lea.vmem %s184, %s197
      %v199 = vld [vmem:[%s198] sm:$0xff]
      %v200 = vld [vmem:[%s198 + $0x8] sm:$0xff]
      %v201 = vld [vmem:[%s198 + $0x18] sm:$0xff]
      %v202 = vld [vmem:[%s198 + $0x20] sm:$0xff]
      %v203 = vld [vmem:[%s198 + $0x30] sm:$0xff]
      %v204 = vld [vmem:[%s198 + $0x38] sm:$0xff]
      %v205 = vld [vmem:[%s198 + $0x48] sm:$0xff]
      %v206 = vld [vmem:[%s198 + $0x50] sm:$0xff]
      %v207 = vld [vmem:[%s198 + $0x60] sm:$0xff]
      %v208 = vld [vmem:[%s198 + $0x68] sm:$0xff]
      %v209 = vld [vmem:[%s198 + $0x78] sm:$0xff]
      %v210 = vld [vmem:[%s198 + $0x80] sm:$0xff]
      %v211 = vld [vmem:[%s198 + $0x90] sm:$0xff]
      %v212 = vld [vmem:[%s198 + $0x98] sm:$0xff]
      %v213 = vld [vmem:[%s198 + $0xa8] sm:$0xff]
      %v214 = vld [vmem:[%s198 + $0xb0] sm:$0xff]
      %v215 = vld [vmem:[%s198 + $0xc0] sm:$0xff]
      %v216 = vld [vmem:[%s198 + $0xc8] sm:$0xff]
      %v217 = vld [vmem:[%s198 + $0xd8] sm:$0xff]
      %v218 = vld [vmem:[%s198 + $0xe0] sm:$0xff]
      %v219 = vld [vmem:[%s198 + $0xf0] sm:$0xff]
      %v220 = vld [vmem:[%s198 + $0xf8] sm:$0xff]
      %v221 = vld [vmem:[%s198 + $0x108] sm:$0xff]
      %v222 = vld [vmem:[%s198 + $0x110] sm:$0xff]
      %v223 = vld [vmem:[%s198 + $0x120] sm:$0xff]
      %v224 = vld [vmem:[%s198 + $0x128] sm:$0xff]
      %v225 = vld [vmem:[%s198 + $0x138] sm:$0xff]
      %v226 = vld [vmem:[%s198 + $0x140] sm:$0xff]
      %v227 = vld [vmem:[%s198 + $0x150] sm:$0xff]
      %v228 = vld [vmem:[%s198 + $0x158] sm:$0xff]
      %v229 = vld [vmem:[%s198 + $0x168] sm:$0xff]
      %v230 = vld [vmem:[%s198 + $0x170] sm:$0xff]
      %vm231 = vcmask 31744
      %232 = vst.msk [vmem:[#allocation2] sm:$0xff] %vm231, %v199
      %233 = vst.msk [vmem:[#allocation2 + $0x8] sm:$0xff] %vm231, %v200
      %234 = vst.msk [vmem:[#allocation2 + $0x10] sm:$0xff] %vm231, %v201
      %235 = vst.msk [vmem:[#allocation2 + $0x18] sm:$0xff] %vm231, %v202
      %236 = vst.msk [vmem:[#allocation2 + $0x20] sm:$0xff] %vm231, %v203
      %237 = vst.msk [vmem:[#allocation2 + $0x28] sm:$0xff] %vm231, %v204
      %238 = vst.msk [vmem:[#allocation2 + $0x30] sm:$0xff] %vm231, %v205
      %239 = vst.msk [vmem:[#allocation2 + $0x38] sm:$0xff] %vm231, %v206
      %240 = vst.msk [vmem:[#allocation2 + $0x40] sm:$0xff] %vm231, %v207
      %241 = vst.msk [vmem:[#allocation2 + $0x48] sm:$0xff] %vm231, %v208
      %242 = vst.msk [vmem:[#allocation2 + $0x50] sm:$0xff] %vm231, %v209
      %243 = vst.msk [vmem:[#allocation2 + $0x58] sm:$0xff] %vm231, %v210
      %244 = vst.msk [vmem:[#allocation2 + $0x60] sm:$0xff] %vm231, %v211
      %245 = vst.msk [vmem:[#allocation2 + $0x68] sm:$0xff] %vm231, %v212
      %246 = vst.msk [vmem:[#allocation2 + $0x70] sm:$0xff] %vm231, %v213
      %247 = vst.msk [vmem:[#allocation2 + $0x78] sm:$0xff] %vm231, %v214
      %248 = vst.msk [vmem:[#allocation2 + $0x80] sm:$0xff] %vm231, %v215
      %249 = vst.msk [vmem:[#allocation2 + $0x88] sm:$0xff] %vm231, %v216
      %250 = vst.msk [vmem:[#allocation2 + $0x90] sm:$0xff] %vm231, %v217
      %251 = vst.msk [vmem:[#allocation2 + $0x98] sm:$0xff] %vm231, %v218
      %252 = vst.msk [vmem:[#allocation2 + $0xa0] sm:$0xff] %vm231, %v219
      %253 = vst.msk [vmem:[#allocation2 + $0xa8] sm:$0xff] %vm231, %v220
      %254 = vst.msk [vmem:[#allocation2 + $0xb0] sm:$0xff] %vm231, %v221
      %255 = vst.msk [vmem:[#allocation2 + $0xb8] sm:$0xff] %vm231, %v222
      %256 = vst.msk [vmem:[#allocation2 + $0xc0] sm:$0xff] %vm231, %v223
      %257 = vst.msk [vmem:[#allocation2 + $0xc8] sm:$0xff] %vm231, %v224
      %258 = vst.msk [vmem:[#allocation2 + $0xd0] sm:$0xff] %vm231, %v225
      %259 = vst.msk [vmem:[#allocation2 + $0xd8] sm:$0xff] %vm231, %v226
      %260 = vst.msk [vmem:[#allocation2 + $0xe0] sm:$0xff] %vm231, %v227
      %261 = vst.msk [vmem:[#allocation2 + $0xe8] sm:$0xff] %vm231, %v228
      %262 = vst.msk [vmem:[#allocation2 + $0xf0] sm:$0xff] %vm231, %v229
      %263 = vst.msk [vmem:[#allocation2 + $0xf8] sm:$0xff] %vm231, %v230
      %v264 = vld [vmem:[%s198 + $0x1] sm:$0xff]
      %v265 = vld [vmem:[%s198 + $0x9] sm:$0xff]
      %v266 = vld [vmem:[%s198 + $0x19] sm:$0xff]
      %v267 = vld [vmem:[%s198 + $0x21] sm:$0xff]
      %v268 = vld [vmem:[%s198 + $0x31] sm:$0xff]
      %v269 = vld [vmem:[%s198 + $0x39] sm:$0xff]
      %v270 = vld [vmem:[%s198 + $0x49] sm:$0xff]
      %v271 = vld [vmem:[%s198 + $0x51] sm:$0xff]
      %v272 = vld [vmem:[%s198 + $0x61] sm:$0xff]
      %v273 = vld [vmem:[%s198 + $0x69] sm:$0xff]
      %v274 = vld [vmem:[%s198 + $0x79] sm:$0xff]
      %v275 = vld [vmem:[%s198 + $0x81] sm:$0xff]
      %v276 = vld [vmem:[%s198 + $0x91] sm:$0xff]
      %v277 = vld [vmem:[%s198 + $0x99] sm:$0xff]
      %v278 = vld [vmem:[%s198 + $0xa9] sm:$0xff]
      %v279 = vld [vmem:[%s198 + $0xb1] sm:$0xff]
      %v280 = vld [vmem:[%s198 + $0xc1] sm:$0xff]
      %v281 = vld [vmem:[%s198 + $0xc9] sm:$0xff]
      %v282 = vld [vmem:[%s198 + $0xd9] sm:$0xff]
      %v283 = vld [vmem:[%s198 + $0xe1] sm:$0xff]
      %v284 = vld [vmem:[%s198 + $0xf1] sm:$0xff]
      %v285 = vld [vmem:[%s198 + $0xf9] sm:$0xff]
      %v286 = vld [vmem:[%s198 + $0x109] sm:$0xff]
      %v287 = vld [vmem:[%s198 + $0x111] sm:$0xff]
      %v288 = vld [vmem:[%s198 + $0x121] sm:$0xff]
      %v289 = vld [vmem:[%s198 + $0x129] sm:$0xff]
      %v290 = vld [vmem:[%s198 + $0x139] sm:$0xff]
      %v291 = vld [vmem:[%s198 + $0x141] sm:$0xff]
      %v292 = vld [vmem:[%s198 + $0x151] sm:$0xff]
      %v293 = vld [vmem:[%s198 + $0x159] sm:$0xff]
      %v294 = vld [vmem:[%s198 + $0x169] sm:$0xff]
      %v295 = vld [vmem:[%s198 + $0x171] sm:$0xff]
      %328 = vrot.lane.b32.xlu0 %v264, 4
      %v329 = vpop.permute.xlu0 %328
      %330 = vrot.lane.b32.xlu0 %v265, 4
      %v331 = vpop.permute.xlu0 %330
      %332 = vrot.lane.b32.xlu0 %v266, 4
      %v333 = vpop.permute.xlu0 %332
      %334 = vrot.lane.b32.xlu0 %v267, 4
      %v335 = vpop.permute.xlu0 %334
      %336 = vrot.lane.b32.xlu0 %v268, 4
      %v337 = vpop.permute.xlu0 %336
      %338 = vrot.lane.b32.xlu0 %v269, 4
      %v339 = vpop.permute.xlu0 %338
      %340 = vrot.lane.b32.xlu0 %v270, 4
      %v341 = vpop.permute.xlu0 %340
      %342 = vrot.lane.b32.xlu0 %v271, 4
      %v343 = vpop.permute.xlu0 %342
      %344 = vrot.lane.b32.xlu0 %v272, 4
      %v345 = vpop.permute.xlu0 %344
      %346 = vrot.lane.b32.xlu0 %v273, 4
      %v347 = vpop.permute.xlu0 %346
      %348 = vrot.lane.b32.xlu0 %v274, 4
      %v349 = vpop.permute.xlu0 %348
      %350 = vrot.lane.b32.xlu0 %v275, 4
      %v351 = vpop.permute.xlu0 %350
      %352 = vrot.lane.b32.xlu0 %v276, 4
      %v353 = vpop.permute.xlu0 %352
      %354 = vrot.lane.b32.xlu0 %v277, 4
      %v355 = vpop.permute.xlu0 %354
      %356 = vrot.lane.b32.xlu0 %v278, 4
      %v357 = vpop.permute.xlu0 %356
      %358 = vrot.lane.b32.xlu0 %v279, 4
      %v359 = vpop.permute.xlu0 %358
      %360 = vrot.lane.b32.xlu0 %v280, 4
      %v361 = vpop.permute.xlu0 %360
      %362 = vrot.lane.b32.xlu0 %v281, 4
      %v363 = vpop.permute.xlu0 %362
      %364 = vrot.lane.b32.xlu0 %v282, 4
      %v365 = vpop.permute.xlu0 %364
      %366 = vrot.lane.b32.xlu0 %v283, 4
      %v367 = vpop.permute.xlu0 %366
      %368 = vrot.lane.b32.xlu0 %v284, 4
      %v369 = vpop.permute.xlu0 %368
      %370 = vrot.lane.b32.xlu0 %v285, 4
      %v371 = vpop.permute.xlu0 %370
      %372 = vrot.lane.b32.xlu0 %v286, 4
      %v373 = vpop.permute.xlu0 %372
      %374 = vrot.lane.b32.xlu0 %v287, 4
      %v375 = vpop.permute.xlu0 %374
      %376 = vrot.lane.b32.xlu0 %v288, 4
      %v377 = vpop.permute.xlu0 %376
      %378 = vrot.lane.b32.xlu0 %v289, 4
      %v379 = vpop.permute.xlu0 %378
      %380 = vrot.lane.b32.xlu0 %v290, 4
      %v381 = vpop.permute.xlu0 %380
      %382 = vrot.lane.b32.xlu0 %v291, 4
      %v383 = vpop.permute.xlu0 %382
      %384 = vrot.lane.b32.xlu0 %v292, 4
      %v385 = vpop.permute.xlu0 %384
      %386 = vrot.lane.b32.xlu0 %v293, 4
      %v387 = vpop.permute.xlu0 %386
      %388 = vrot.lane.b32.xlu0 %v294, 4
      %v389 = vpop.permute.xlu0 %388
      %390 = vrot.lane.b32.xlu0 %v295, 4
      %v391 = vpop.permute.xlu0 %390
      %vm424 = vcmask 64544
      %425 = vst.msk [vmem:[#allocation2] sm:$0xff] %vm424, %v329
      %426 = vst.msk [vmem:[#allocation2 + $0x8] sm:$0xff] %vm424, %v331
      %427 = vst.msk [vmem:[#allocation2 + $0x10] sm:$0xff] %vm424, %v333
      %428 = vst.msk [vmem:[#allocation2 + $0x18] sm:$0xff] %vm424, %v335
      %429 = vst.msk [vmem:[#allocation2 + $0x20] sm:$0xff] %vm424, %v337
      %430 = vst.msk [vmem:[#allocation2 + $0x28] sm:$0xff] %vm424, %v339
      %431 = vst.msk [vmem:[#allocation2 + $0x30] sm:$0xff] %vm424, %v341
      %432 = vst.msk [vmem:[#allocation2 + $0x38] sm:$0xff] %vm424, %v343
      %433 = vst.msk [vmem:[#allocation2 + $0x40] sm:$0xff] %vm424, %v345
      %434 = vst.msk [vmem:[#allocation2 + $0x48] sm:$0xff] %vm424, %v347
      %435 = vst.msk [vmem:[#allocation2 + $0x50] sm:$0xff] %vm424, %v349
      %436 = vst.msk [vmem:[#allocation2 + $0x58] sm:$0xff] %vm424, %v351
      %437 = vst.msk [vmem:[#allocation2 + $0x60] sm:$0xff] %vm424, %v353
      %438 = vst.msk [vmem:[#allocation2 + $0x68] sm:$0xff] %vm424, %v355
      %439 = vst.msk [vmem:[#allocation2 + $0x70] sm:$0xff] %vm424, %v357
      %440 = vst.msk [vmem:[#allocation2 + $0x78] sm:$0xff] %vm424, %v359
      %441 = vst.msk [vmem:[#allocation2 + $0x80] sm:$0xff] %vm424, %v361
      %442 = vst.msk [vmem:[#allocation2 + $0x88] sm:$0xff] %vm424, %v363
      %443 = vst.msk [vmem:[#allocation2 + $0x90] sm:$0xff] %vm424, %v365
      %444 = vst.msk [vmem:[#allocation2 + $0x98] sm:$0xff] %vm424, %v367
      %445 = vst.msk [vmem:[#allocation2 + $0xa0] sm:$0xff] %vm424, %v369
      %446 = vst.msk [vmem:[#allocation2 + $0xa8] sm:$0xff] %vm424, %v371
      %447 = vst.msk [vmem:[#allocation2 + $0xb0] sm:$0xff] %vm424, %v373
      %448 = vst.msk [vmem:[#allocation2 + $0xb8] sm:$0xff] %vm424, %v375
      %449 = vst.msk [vmem:[#allocation2 + $0xc0] sm:$0xff] %vm424, %v377
      %450 = vst.msk [vmem:[#allocation2 + $0xc8] sm:$0xff] %vm424, %v379
      %451 = vst.msk [vmem:[#allocation2 + $0xd0] sm:$0xff] %vm424, %v381
      %452 = vst.msk [vmem:[#allocation2 + $0xd8] sm:$0xff] %vm424, %v383
      %453 = vst.msk [vmem:[#allocation2 + $0xe0] sm:$0xff] %vm424, %v385
      %454 = vst.msk [vmem:[#allocation2 + $0xe8] sm:$0xff] %vm424, %v387
      %455 = vst.msk [vmem:[#allocation2 + $0xf0] sm:$0xff] %vm424, %v389
      %456 = vst.msk [vmem:[#allocation2 + $0xf8] sm:$0xff] %vm424, %v391
      %v457 = vld [vmem:[%s198 + $0x2] sm:$0xff]
      %v458 = vld [vmem:[%s198 + $0xa] sm:$0xff]
      %v459 = vld [vmem:[%s198 + $0x1a] sm:$0xff]
      %v460 = vld [vmem:[%s198 + $0x22] sm:$0xff]
      %v461 = vld [vmem:[%s198 + $0x32] sm:$0xff]
      %v462 = vld [vmem:[%s198 + $0x3a] sm:$0xff]
      %v463 = vld [vmem:[%s198 + $0x4a] sm:$0xff]
      %v464 = vld [vmem:[%s198 + $0x52] sm:$0xff]
      %v465 = vld [vmem:[%s198 + $0x62] sm:$0xff]
      %v466 = vld [vmem:[%s198 + $0x6a] sm:$0xff]
      %v467 = vld [vmem:[%s198 + $0x7a] sm:$0xff]
      %v468 = vld [vmem:[%s198 + $0x82] sm:$0xff]
      %v469 = vld [vmem:[%s198 + $0x92] sm:$0xff]
      %v470 = vld [vmem:[%s198 + $0x9a] sm:$0xff]
      %v471 = vld [vmem:[%s198 + $0xaa] sm:$0xff]
      %v472 = vld [vmem:[%s198 + $0xb2] sm:$0xff]
      %v473 = vld [vmem:[%s198 + $0xc2] sm:$0xff]
      %v474 = vld [vmem:[%s198 + $0xca] sm:$0xff]
      %v475 = vld [vmem:[%s198 + $0xda] sm:$0xff]
      %v476 = vld [vmem:[%s198 + $0xe2] sm:$0xff]
      %v477 = vld [vmem:[%s198 + $0xf2] sm:$0xff]
      %v478 = vld [vmem:[%s198 + $0xfa] sm:$0xff]
      %v479 = vld [vmem:[%s198 + $0x10a] sm:$0xff]
      %v480 = vld [vmem:[%s198 + $0x112] sm:$0xff]
      %v481 = vld [vmem:[%s198 + $0x122] sm:$0xff]
      %v482 = vld [vmem:[%s198 + $0x12a] sm:$0xff]
      %v483 = vld [vmem:[%s198 + $0x13a] sm:$0xff]
      %v484 = vld [vmem:[%s198 + $0x142] sm:$0xff]
      %v485 = vld [vmem:[%s198 + $0x152] sm:$0xff]
      %v486 = vld [vmem:[%s198 + $0x15a] sm:$0xff]
      %v487 = vld [vmem:[%s198 + $0x16a] sm:$0xff]
      %v488 = vld [vmem:[%s198 + $0x172] sm:$0xff]
      %521 = vrot.lane.b32.xlu0 %v457, 8
      %v522 = vpop.permute.xlu0 %521
      %523 = vrot.lane.b32.xlu0 %v458, 8
      %v524 = vpop.permute.xlu0 %523
      %525 = vrot.lane.b32.xlu0 %v459, 8
      %v526 = vpop.permute.xlu0 %525
      %527 = vrot.lane.b32.xlu0 %v460, 8
      %v528 = vpop.permute.xlu0 %527
      %529 = vrot.lane.b32.xlu0 %v461, 8
      %v530 = vpop.permute.xlu0 %529
      %531 = vrot.lane.b32.xlu0 %v462, 8
      %v532 = vpop.permute.xlu0 %531
      %533 = vrot.lane.b32.xlu0 %v463, 8
      %v534 = vpop.permute.xlu0 %533
      %535 = vrot.lane.b32.xlu0 %v464, 8
      %v536 = vpop.permute.xlu0 %535
      %537 = vrot.lane.b32.xlu0 %v465, 8
      %v538 = vpop.permute.xlu0 %537
      %539 = vrot.lane.b32.xlu0 %v466, 8
      %v540 = vpop.permute.xlu0 %539
      %541 = vrot.lane.b32.xlu0 %v467, 8
      %v542 = vpop.permute.xlu0 %541
      %543 = vrot.lane.b32.xlu0 %v468, 8
      %v544 = vpop.permute.xlu0 %543
      %545 = vrot.lane.b32.xlu0 %v469, 8
      %v546 = vpop.permute.xlu0 %545
      %547 = vrot.lane.b32.xlu0 %v470, 8
      %v548 = vpop.permute.xlu0 %547
      %549 = vrot.lane.b32.xlu0 %v471, 8
      %v550 = vpop.permute.xlu0 %549
      %551 = vrot.lane.b32.xlu0 %v472, 8
      %v552 = vpop.permute.xlu0 %551
      %553 = vrot.lane.b32.xlu0 %v473, 8
      %v554 = vpop.permute.xlu0 %553
      %555 = vrot.lane.b32.xlu0 %v474, 8
      %v556 = vpop.permute.xlu0 %555
      %557 = vrot.lane.b32.xlu0 %v475, 8
      %v558 = vpop.permute.xlu0 %557
      %559 = vrot.lane.b32.xlu0 %v476, 8
      %v560 = vpop.permute.xlu0 %559
      %561 = vrot.lane.b32.xlu0 %v477, 8
      %v562 = vpop.permute.xlu0 %561
      %563 = vrot.lane.b32.xlu0 %v478, 8
      %v564 = vpop.permute.xlu0 %563
      %565 = vrot.lane.b32.xlu0 %v479, 8
      %v566 = vpop.permute.xlu0 %565
      %567 = vrot.lane.b32.xlu0 %v480, 8
      %v568 = vpop.permute.xlu0 %567
      %569 = vrot.lane.b32.xlu0 %v481, 8
      %v570 = vpop.permute.xlu0 %569
      %571 = vrot.lane.b32.xlu0 %v482, 8
      %v572 = vpop.permute.xlu0 %571
      %573 = vrot.lane.b32.xlu0 %v483, 8
      %v574 = vpop.permute.xlu0 %573
      %575 = vrot.lane.b32.xlu0 %v484, 8
      %v576 = vpop.permute.xlu0 %575
      %577 = vrot.lane.b32.xlu0 %v485, 8
      %v578 = vpop.permute.xlu0 %577
      %579 = vrot.lane.b32.xlu0 %v486, 8
      %v580 = vpop.permute.xlu0 %579
      %581 = vrot.lane.b32.xlu0 %v487, 8
      %v582 = vpop.permute.xlu0 %581
      %583 = vrot.lane.b32.xlu0 %v488, 8
      %v584 = vpop.permute.xlu0 %583
      %vm617 = vcmask 97344
      %618 = vst.msk [vmem:[#allocation2] sm:$0xff] %vm617, %v522
      %619 = vst.msk [vmem:[#allocation2 + $0x8] sm:$0xff] %vm617, %v524
      %620 = vst.msk [vmem:[#allocation2 + $0x10] sm:$0xff] %vm617, %v526
      %621 = vst.msk [vmem:[#allocation2 + $0x18] sm:$0xff] %vm617, %v528
      %622 = vst.msk [vmem:[#allocation2 + $0x20] sm:$0xff] %vm617, %v530
      %623 = vst.msk [vmem:[#allocation2 + $0x28] sm:$0xff] %vm617, %v532
      %624 = vst.msk [vmem:[#allocation2 + $0x30] sm:$0xff] %vm617, %v534
      %625 = vst.msk [vmem:[#allocation2 + $0x38] sm:$0xff] %vm617, %v536
      %626 = vst.msk [vmem:[#allocation2 + $0x40] sm:$0xff] %vm617, %v538
      %627 = vst.msk [vmem:[#allocation2 + $0x48] sm:$0xff] %vm617, %v540
      %628 = vst.msk [vmem:[#allocation2 + $0x50] sm:$0xff] %vm617, %v542
      %629 = vst.msk [vmem:[#allocation2 + $0x58] sm:$0xff] %vm617, %v544
      %630 = vst.msk [vmem:[#allocation2 + $0x60] sm:$0xff] %vm617, %v546
      %631 = vst.msk [vmem:[#allocation2 + $0x68] sm:$0xff] %vm617, %v548
      %632 = vst.msk [vmem:[#allocation2 + $0x70] sm:$0xff] %vm617, %v550
      %633 = vst.msk [vmem:[#allocation2 + $0x78] sm:$0xff] %vm617, %v552
      %634 = vst.msk [vmem:[#allocation2 + $0x80] sm:$0xff] %vm617, %v554
      %635 = vst.msk [vmem:[#allocation2 + $0x88] sm:$0xff] %vm617, %v556
      %636 = vst.msk [vmem:[#allocation2 + $0x90] sm:$0xff] %vm617, %v558
      %637 = vst.msk [vmem:[#allocation2 + $0x98] sm:$0xff] %vm617, %v560
      %638 = vst.msk [vmem:[#allocation2 + $0xa0] sm:$0xff] %vm617, %v562
      %639 = vst.msk [vmem:[#allocation2 + $0xa8] sm:$0xff] %vm617, %v564
      %640 = vst.msk [vmem:[#allocation2 + $0xb0] sm:$0xff] %vm617, %v566
      %641 = vst.msk [vmem:[#allocation2 + $0xb8] sm:$0xff] %vm617, %v568
      %642 = vst.msk [vmem:[#allocation2 + $0xc0] sm:$0xff] %vm617, %v570
      %643 = vst.msk [vmem:[#allocation2 + $0xc8] sm:$0xff] %vm617, %v572
      %644 = vst.msk [vmem:[#allocation2 + $0xd0] sm:$0xff] %vm617, %v574
      %645 = vst.msk [vmem:[#allocation2 + $0xd8] sm:$0xff] %vm617, %v576
      %646 = vst.msk [vmem:[#allocation2 + $0xe0] sm:$0xff] %vm617, %v578
      %647 = vst.msk [vmem:[#allocation2 + $0xe8] sm:$0xff] %vm617, %v580
      %648 = vst.msk [vmem:[#allocation2 + $0xf0] sm:$0xff] %vm617, %v582
      %649 = vst.msk [vmem:[#allocation2 + $0xf8] sm:$0xff] %vm617, %v584
      %s650 = sadd.s32 %s196, 1
      %s651 = smul.u32 %s650, 24
      %s652 = scalar_lea.vmem %s184, %s651
      %v653 = vld [vmem:[%s652] sm:$0xff]
      %v654 = vld [vmem:[%s652 + $0x8] sm:$0xff]
      %v655 = vld [vmem:[%s652 + $0x18] sm:$0xff]
      %v656 = vld [vmem:[%s652 + $0x20] sm:$0xff]
      %v657 = vld [vmem:[%s652 + $0x30] sm:$0xff]
      %v658 = vld [vmem:[%s652 + $0x38] sm:$0xff]
      %v659 = vld [vmem:[%s652 + $0x48] sm:$0xff]
      %v660 = vld [vmem:[%s652 + $0x50] sm:$0xff]
      %v661 = vld [vmem:[%s652 + $0x60] sm:$0xff]
      %v662 = vld [vmem:[%s652 + $0x68] sm:$0xff]
      %v663 = vld [vmem:[%s652 + $0x78] sm:$0xff]
      %v664 = vld [vmem:[%s652 + $0x80] sm:$0xff]
      %v665 = vld [vmem:[%s652 + $0x90] sm:$0xff]
      %v666 = vld [vmem:[%s652 + $0x98] sm:$0xff]
      %v667 = vld [vmem:[%s652 + $0xa8] sm:$0xff]
      %v668 = vld [vmem:[%s652 + $0xb0] sm:$0xff]
      %v669 = vld [vmem:[%s652 + $0xc0] sm:$0xff]
      %v670 = vld [vmem:[%s652 + $0xc8] sm:$0xff]
      %v671 = vld [vmem:[%s652 + $0xd8] sm:$0xff]
      %v672 = vld [vmem:[%s652 + $0xe0] sm:$0xff]
      %v673 = vld [vmem:[%s652 + $0xf0] sm:$0xff]
      %v674 = vld [vmem:[%s652 + $0xf8] sm:$0xff]
      %v675 = vld [vmem:[%s652 + $0x108] sm:$0xff]
      %v676 = vld [vmem:[%s652 + $0x110] sm:$0xff]
      %v677 = vld [vmem:[%s652 + $0x120] sm:$0xff]
      %v678 = vld [vmem:[%s652 + $0x128] sm:$0xff]
      %v679 = vld [vmem:[%s652 + $0x138] sm:$0xff]
      %v680 = vld [vmem:[%s652 + $0x140] sm:$0xff]
      %v681 = vld [vmem:[%s652 + $0x150] sm:$0xff]
      %v682 = vld [vmem:[%s652 + $0x158] sm:$0xff]
      %v683 = vld [vmem:[%s652 + $0x168] sm:$0xff]
      %v684 = vld [vmem:[%s652 + $0x170] sm:$0xff]
      %717 = vrot.lane.b32.xlu0 %v653, 12
      %v718 = vpop.permute.xlu0 %717
      %719 = vrot.lane.b32.xlu0 %v654, 12
      %v720 = vpop.permute.xlu0 %719
      %721 = vrot.lane.b32.xlu0 %v655, 12
      %v722 = vpop.permute.xlu0 %721
      %723 = vrot.lane.b32.xlu0 %v656, 12
      %v724 = vpop.permute.xlu0 %723
      %725 = vrot.lane.b32.xlu0 %v657, 12
      %v726 = vpop.permute.xlu0 %725
      %727 = vrot.lane.b32.xlu0 %v658, 12
      %v728 = vpop.permute.xlu0 %727
      %729 = vrot.lane.b32.xlu0 %v659, 12
      %v730 = vpop.permute.xlu0 %729
      %731 = vrot.lane.b32.xlu0 %v660, 12
      %v732 = vpop.permute.xlu0 %731
      %733 = vrot.lane.b32.xlu0 %v661, 12
      %v734 = vpop.permute.xlu0 %733
      %735 = vrot.lane.b32.xlu0 %v662, 12
      %v736 = vpop.permute.xlu0 %735
      %737 = vrot.lane.b32.xlu0 %v663, 12
      %v738 = vpop.permute.xlu0 %737
      %739 = vrot.lane.b32.xlu0 %v664, 12
      %v740 = vpop.permute.xlu0 %739
      %741 = vrot.lane.b32.xlu0 %v665, 12
      %v742 = vpop.permute.xlu0 %741
      %743 = vrot.lane.b32.xlu0 %v666, 12
      %v744 = vpop.permute.xlu0 %743
      %745 = vrot.lane.b32.xlu0 %v667, 12
      %v746 = vpop.permute.xlu0 %745
      %747 = vrot.lane.b32.xlu0 %v668, 12
      %v748 = vpop.permute.xlu0 %747
      %749 = vrot.lane.b32.xlu0 %v669, 12
      %v750 = vpop.permute.xlu0 %749
      %751 = vrot.lane.b32.xlu0 %v670, 12
      %v752 = vpop.permute.xlu0 %751
      %753 = vrot.lane.b32.xlu0 %v671, 12
      %v754 = vpop.permute.xlu0 %753
      %755 = vrot.lane.b32.xlu0 %v672, 12
      %v756 = vpop.permute.xlu0 %755
      %757 = vrot.lane.b32.xlu0 %v673, 12
      %v758 = vpop.permute.xlu0 %757
      %759 = vrot.lane.b32.xlu0 %v674, 12
      %v760 = vpop.permute.xlu0 %759
      %761 = vrot.lane.b32.xlu0 %v675, 12
      %v762 = vpop.permute.xlu0 %761
      %763 = vrot.lane.b32.xlu0 %v676, 12
      %v764 = vpop.permute.xlu0 %763
      %765 = vrot.lane.b32.xlu0 %v677, 12
      %v766 = vpop.permute.xlu0 %765
      %767 = vrot.lane.b32.xlu0 %v678, 12
      %v768 = vpop.permute.xlu0 %767
      %769 = vrot.lane.b32.xlu0 %v679, 12
      %v770 = vpop.permute.xlu0 %769
      %771 = vrot.lane.b32.xlu0 %v680, 12
      %v772 = vpop.permute.xlu0 %771
      %773 = vrot.lane.b32.xlu0 %v681, 12
      %v774 = vpop.permute.xlu0 %773
      %775 = vrot.lane.b32.xlu0 %v682, 12
      %v776 = vpop.permute.xlu0 %775
      %777 = vrot.lane.b32.xlu0 %v683, 12
      %v778 = vpop.permute.xlu0 %777
      %779 = vrot.lane.b32.xlu0 %v684, 12
      %v780 = vpop.permute.xlu0 %779
      %vm813 = vcmask 130144
      %814 = vst.msk [vmem:[#allocation2] sm:$0xff] %vm813, %v718
      %815 = vst.msk [vmem:[#allocation2 + $0x8] sm:$0xff] %vm813, %v720
      %816 = vst.msk [vmem:[#allocation2 + $0x10] sm:$0xff] %vm813, %v722
      %817 = vst.msk [vmem:[#allocation2 + $0x18] sm:$0xff] %vm813, %v724
      %818 = vst.msk [vmem:[#allocation2 + $0x20] sm:$0xff] %vm813, %v726
      %819 = vst.msk [vmem:[#allocation2 + $0x28] sm:$0xff] %vm813, %v728
      %820 = vst.msk [vmem:[#allocation2 + $0x30] sm:$0xff] %vm813, %v730
      %821 = vst.msk [vmem:[#allocation2 + $0x38] sm:$0xff] %vm813, %v732
      %822 = vst.msk [vmem:[#allocation2 + $0x40] sm:$0xff] %vm813, %v734
      %823 = vst.msk [vmem:[#allocation2 + $0x48] sm:$0xff] %vm813, %v736
      %824 = vst.msk [vmem:[#allocation2 + $0x50] sm:$0xff] %vm813, %v738
      %825 = vst.msk [vmem:[#allocation2 + $0x58] sm:$0xff] %vm813, %v740
      %826 = vst.msk [vmem:[#allocation2 + $0x60] sm:$0xff] %vm813, %v742
      %827 = vst.msk [vmem:[#allocation2 + $0x68] sm:$0xff] %vm813, %v744
      %828 = vst.msk [vmem:[#allocation2 + $0x70] sm:$0xff] %vm813, %v746
      %829 = vst.msk [vmem:[#allocation2 + $0x78] sm:$0xff] %vm813, %v748
      %830 = vst.msk [vmem:[#allocation2 + $0x80] sm:$0xff] %vm813, %v750
      %831 = vst.msk [vmem:[#allocation2 + $0x88] sm:$0xff] %vm813, %v752
      %832 = vst.msk [vmem:[#allocation2 + $0x90] sm:$0xff] %vm813, %v754
      %833 = vst.msk [vmem:[#allocation2 + $0x98] sm:$0xff] %vm813, %v756
      %834 = vst.msk [vmem:[#allocation2 + $0xa0] sm:$0xff] %vm813, %v758
      %835 = vst.msk [vmem:[#allocation2 + $0xa8] sm:$0xff] %vm813, %v760
      %836 = vst.msk [vmem:[#allocation2 + $0xb0] sm:$0xff] %vm813, %v762
      %837 = vst.msk [vmem:[#allocation2 + $0xb8] sm:$0xff] %vm813, %v764
      %838 = vst.msk [vmem:[#allocation2 + $0xc0] sm:$0xff] %vm813, %v766
      %839 = vst.msk [vmem:[#allocation2 + $0xc8] sm:$0xff] %vm813, %v768
      %840 = vst.msk [vmem:[#allocation2 + $0xd0] sm:$0xff] %vm813, %v770
      %841 = vst.msk [vmem:[#allocation2 + $0xd8] sm:$0xff] %vm813, %v772
      %842 = vst.msk [vmem:[#allocation2 + $0xe0] sm:$0xff] %vm813, %v774
      %843 = vst.msk [vmem:[#allocation2 + $0xe8] sm:$0xff] %vm813, %v776
      %844 = vst.msk [vmem:[#allocation2 + $0xf0] sm:$0xff] %vm813, %v778
      %845 = vst.msk [vmem:[#allocation2 + $0xf8] sm:$0xff] %vm813, %v780
      %v846 = vld [vmem:[%s652 + $0x1] sm:$0xff]
      %v847 = vld [vmem:[%s652 + $0x9] sm:$0xff]
      %v848 = vld [vmem:[%s652 + $0x19] sm:$0xff]
      %v849 = vld [vmem:[%s652 + $0x21] sm:$0xff]
      %v850 = vld [vmem:[%s652 + $0x31] sm:$0xff]
      %v851 = vld [vmem:[%s652 + $0x39] sm:$0xff]
      %v852 = vld [vmem:[%s652 + $0x49] sm:$0xff]
      %v853 = vld [vmem:[%s652 + $0x51] sm:$0xff]
      %v854 = vld [vmem:[%s652 + $0x61] sm:$0xff]
      %v855 = vld [vmem:[%s652 + $0x69] sm:$0xff]
      %v856 = vld [vmem:[%s652 + $0x79] sm:$0xff]
      %v857 = vld [vmem:[%s652 + $0x81] sm:$0xff]
      %v858 = vld [vmem:[%s652 + $0x91] sm:$0xff]
      %v859 = vld [vmem:[%s652 + $0x99] sm:$0xff]
      %v860 = vld [vmem:[%s652 + $0xa9] sm:$0xff]
      %v861 = vld [vmem:[%s652 + $0xb1] sm:$0xff]
      %v862 = vld [vmem:[%s652 + $0xc1] sm:$0xff]
      %v863 = vld [vmem:[%s652 + $0xc9] sm:$0xff]
      %v864 = vld [vmem:[%s652 + $0xd9] sm:$0xff]
      %v865 = vld [vmem:[%s652 + $0xe1] sm:$0xff]
      %v866 = vld [vmem:[%s652 + $0xf1] sm:$0xff]
      %v867 = vld [vmem:[%s652 + $0xf9] sm:$0xff]
      %v868 = vld [vmem:[%s652 + $0x109] sm:$0xff]
      %v869 = vld [vmem:[%s652 + $0x111] sm:$0xff]
      %v870 = vld [vmem:[%s652 + $0x121] sm:$0xff]
      %v871 = vld [vmem:[%s652 + $0x129] sm:$0xff]
      %v872 = vld [vmem:[%s652 + $0x139] sm:$0xff]
      %v873 = vld [vmem:[%s652 + $0x141] sm:$0xff]
      %v874 = vld [vmem:[%s652 + $0x151] sm:$0xff]
      %v875 = vld [vmem:[%s652 + $0x159] sm:$0xff]
      %v876 = vld [vmem:[%s652 + $0x169] sm:$0xff]
      %v877 = vld [vmem:[%s652 + $0x171] sm:$0xff]
      %910 = vrot.lane.b32.xlu0 %v846, 16
      %v911 = vpop.permute.xlu0 %910
      %912 = vrot.lane.b32.xlu0 %v847, 16
      %v913 = vpop.permute.xlu0 %912
      %914 = vrot.lane.b32.xlu0 %v848, 16
      %v915 = vpop.permute.xlu0 %914
      %916 = vrot.lane.b32.xlu0 %v849, 16
      %v917 = vpop.permute.xlu0 %916
      %918 = vrot.lane.b32.xlu0 %v850, 16
      %v919 = vpop.permute.xlu0 %918
      %920 = vrot.lane.b32.xlu0 %v851, 16
      %v921 = vpop.permute.xlu0 %920
      %922 = vrot.lane.b32.xlu0 %v852, 16
      %v923 = vpop.permute.xlu0 %922
      %924 = vrot.lane.b32.xlu0 %v853, 16
      %v925 = vpop.permute.xlu0 %924
      %926 = vrot.lane.b32.xlu0 %v854, 16
      %v927 = vpop.permute.xlu0 %926
      %928 = vrot.lane.b32.xlu0 %v855, 16
      %v929 = vpop.permute.xlu0 %928
      %930 = vrot.lane.b32.xlu0 %v856, 16
      %v931 = vpop.permute.xlu0 %930
      %932 = vrot.lane.b32.xlu0 %v857, 16
      %v933 = vpop.permute.xlu0 %932
      %934 = vrot.lane.b32.xlu0 %v858, 16
      %v935 = vpop.permute.xlu0 %934
      %936 = vrot.lane.b32.xlu0 %v859, 16
      %v937 = vpop.permute.xlu0 %936
      %938 = vrot.lane.b32.xlu0 %v860, 16
      %v939 = vpop.permute.xlu0 %938
      %940 = vrot.lane.b32.xlu0 %v861, 16
      %v941 = vpop.permute.xlu0 %940
      %942 = vrot.lane.b32.xlu0 %v862, 16
      %v943 = vpop.permute.xlu0 %942
      %944 = vrot.lane.b32.xlu0 %v863, 16
      %v945 = vpop.permute.xlu0 %944
      %946 = vrot.lane.b32.xlu0 %v864, 16
      %v947 = vpop.permute.xlu0 %946
      %948 = vrot.lane.b32.xlu0 %v865, 16
      %v949 = vpop.permute.xlu0 %948
      %950 = vrot.lane.b32.xlu0 %v866, 16
      %v951 = vpop.permute.xlu0 %950
      %952 = vrot.lane.b32.xlu0 %v867, 16
      %v953 = vpop.permute.xlu0 %952
      %954 = vrot.lane.b32.xlu0 %v868, 16
      %v955 = vpop.permute.xlu0 %954
      %956 = vrot.lane.b32.xlu0 %v869, 16
      %v957 = vpop.permute.xlu0 %956
      %958 = vrot.lane.b32.xlu0 %v870, 16
      %v959 = vpop.permute.xlu0 %958
      %960 = vrot.lane.b32.xlu0 %v871, 16
      %v961 = vpop.permute.xlu0 %960
      %962 = vrot.lane.b32.xlu0 %v872, 16
      %v963 = vpop.permute.xlu0 %962
      %964 = vrot.lane.b32.xlu0 %v873, 16
      %v965 = vpop.permute.xlu0 %964
      %966 = vrot.lane.b32.xlu0 %v874, 16
      %v967 = vpop.permute.xlu0 %966
      %968 = vrot.lane.b32.xlu0 %v875, 16
      %v969 = vpop.permute.xlu0 %968
      %970 = vrot.lane.b32.xlu0 %v876, 16
      %v971 = vpop.permute.xlu0 %970
      %972 = vrot.lane.b32.xlu0 %v877, 16
      %v973 = vpop.permute.xlu0 %972
      %vm1006 = vcmask 162944
      %1007 = vst.msk [vmem:[#allocation2] sm:$0xff] %vm1006, %v911
      %1008 = vst.msk [vmem:[#allocation2 + $0x8] sm:$0xff] %vm1006, %v913
      %1009 = vst.msk [vmem:[#allocation2 + $0x10] sm:$0xff] %vm1006, %v915
      %1010 = vst.msk [vmem:[#allocation2 + $0x18] sm:$0xff] %vm1006, %v917
      %1011 = vst.msk [vmem:[#allocation2 + $0x20] sm:$0xff] %vm1006, %v919
      %1012 = vst.msk [vmem:[#allocation2 + $0x28] sm:$0xff] %vm1006, %v921
      %1013 = vst.msk [vmem:[#allocation2 + $0x30] sm:$0xff] %vm1006, %v923
      %1014 = vst.msk [vmem:[#allocation2 + $0x38] sm:$0xff] %vm1006, %v925
      %1015 = vst.msk [vmem:[#allocation2 + $0x40] sm:$0xff] %vm1006, %v927
      %1016 = vst.msk [vmem:[#allocation2 + $0x48] sm:$0xff] %vm1006, %v929
      %1017 = vst.msk [vmem:[#allocation2 + $0x50] sm:$0xff] %vm1006, %v931
      %1018 = vst.msk [vmem:[#allocation2 + $0x58] sm:$0xff] %vm1006, %v933
      %1019 = vst.msk [vmem:[#allocation2 + $0x60] sm:$0xff] %vm1006, %v935
      %1020 = vst.msk [vmem:[#allocation2 + $0x68] sm:$0xff] %vm1006, %v937
      %1021 = vst.msk [vmem:[#allocation2 + $0x70] sm:$0xff] %vm1006, %v939
      %1022 = vst.msk [vmem:[#allocation2 + $0x78] sm:$0xff] %vm1006, %v941
      %1023 = vst.msk [vmem:[#allocation2 + $0x80] sm:$0xff] %vm1006, %v943
      %1024 = vst.msk [vmem:[#allocation2 + $0x88] sm:$0xff] %vm1006, %v945
      %1025 = vst.msk [vmem:[#allocation2 + $0x90] sm:$0xff] %vm1006, %v947
      %1026 = vst.msk [vmem:[#allocation2 + $0x98] sm:$0xff] %vm1006, %v949
      %1027 = vst.msk [vmem:[#allocation2 + $0xa0] sm:$0xff] %vm1006, %v951
      %1028 = vst.msk [vmem:[#allocation2 + $0xa8] sm:$0xff] %vm1006, %v953
      %1029 = vst.msk [vmem:[#allocation2 + $0xb0] sm:$0xff] %vm1006, %v955
      %1030 = vst.msk [vmem:[#allocation2 + $0xb8] sm:$0xff] %vm1006, %v957
      %1031 = vst.msk [vmem:[#allocation2 + $0xc0] sm:$0xff] %vm1006, %v959
      %1032 = vst.msk [vmem:[#allocation2 + $0xc8] sm:$0xff] %vm1006, %v961
      %1033 = vst.msk [vmem:[#allocation2 + $0xd0] sm:$0xff] %vm1006, %v963
      %1034 = vst.msk [vmem:[#allocation2 + $0xd8] sm:$0xff] %vm1006, %v965
      %1035 = vst.msk [vmem:[#allocation2 + $0xe0] sm:$0xff] %vm1006, %v967
      %1036 = vst.msk [vmem:[#allocation2 + $0xe8] sm:$0xff] %vm1006, %v969
      %1037 = vst.msk [vmem:[#allocation2 + $0xf0] sm:$0xff] %vm1006, %v971
      %1038 = vst.msk [vmem:[#allocation2 + $0xf8] sm:$0xff] %vm1006, %v973
      %v1039 = vld [vmem:[%s652 + $0x2] sm:$0xff]
      %v1040 = vld [vmem:[%s652 + $0xa] sm:$0xff]
      %v1041 = vld [vmem:[%s652 + $0x1a] sm:$0xff]
      %v1042 = vld [vmem:[%s652 + $0x22] sm:$0xff]
      %v1043 = vld [vmem:[%s652 + $0x32] sm:$0xff]
      %v1044 = vld [vmem:[%s652 + $0x3a] sm:$0xff]
      %v1045 = vld [vmem:[%s652 + $0x4a] sm:$0xff]
      %v1046 = vld [vmem:[%s652 + $0x52] sm:$0xff]
      %v1047 = vld [vmem:[%s652 + $0x62] sm:$0xff]
      %v1048 = vld [vmem:[%s652 + $0x6a] sm:$0xff]
      %v1049 = vld [vmem:[%s652 + $0x7a] sm:$0xff]
      %v1050 = vld [vmem:[%s652 + $0x82] sm:$0xff]
      %v1051 = vld [vmem:[%s652 + $0x92] sm:$0xff]
      %v1052 = vld [vmem:[%s652 + $0x9a] sm:$0xff]
      %v1053 = vld [vmem:[%s652 + $0xaa] sm:$0xff]
      %v1054 = vld [vmem:[%s652 + $0xb2] sm:$0xff]
      %v1055 = vld [vmem:[%s652 + $0xc2] sm:$0xff]
      %v1056 = vld [vmem:[%s652 + $0xca] sm:$0xff]
      %v1057 = vld [vmem:[%s652 + $0xda] sm:$0xff]
      %v1058 = vld [vmem:[%s652 + $0xe2] sm:$0xff]
      %v1059 = vld [vmem:[%s652 + $0xf2] sm:$0xff]
      %v1060 = vld [vmem:[%s652 + $0xfa] sm:$0xff]
      %v1061 = vld [vmem:[%s652 + $0x10a] sm:$0xff]
      %v1062 = vld [vmem:[%s652 + $0x112] sm:$0xff]
      %v1063 = vld [vmem:[%s652 + $0x122] sm:$0xff]
      %v1064 = vld [vmem:[%s652 + $0x12a] sm:$0xff]
      %v1065 = vld [vmem:[%s652 + $0x13a] sm:$0xff]
      %v1066 = vld [vmem:[%s652 + $0x142] sm:$0xff]
      %v1067 = vld [vmem:[%s652 + $0x152] sm:$0xff]
      %v1068 = vld [vmem:[%s652 + $0x15a] sm:$0xff]
      %v1069 = vld [vmem:[%s652 + $0x16a] sm:$0xff]
      %v1070 = vld [vmem:[%s652 + $0x172] sm:$0xff]
      %1103 = vrot.lane.b32.xlu0 %v1039, 20
      %v1104 = vpop.permute.xlu0 %1103
      %1105 = vrot.lane.b32.xlu0 %v1040, 20
      %v1106 = vpop.permute.xlu0 %1105
      %1107 = vrot.lane.b32.xlu0 %v1041, 20
      %v1108 = vpop.permute.xlu0 %1107
      %1109 = vrot.lane.b32.xlu0 %v1042, 20
      %v1110 = vpop.permute.xlu0 %1109
      %1111 = vrot.lane.b32.xlu0 %v1043, 20
      %v1112 = vpop.permute.xlu0 %1111
      %1113 = vrot.lane.b32.xlu0 %v1044, 20
      %v1114 = vpop.permute.xlu0 %1113
      %1115 = vrot.lane.b32.xlu0 %v1045, 20
      %v1116 = vpop.permute.xlu0 %1115
      %1117 = vrot.lane.b32.xlu0 %v1046, 20
      %v1118 = vpop.permute.xlu0 %1117
      %1119 = vrot.lane.b32.xlu0 %v1047, 20
      %v1120 = vpop.permute.xlu0 %1119
      %1121 = vrot.lane.b32.xlu0 %v1048, 20
      %v1122 = vpop.permute.xlu0 %1121
      %1123 = vrot.lane.b32.xlu0 %v1049, 20
      %v1124 = vpop.permute.xlu0 %1123
      %1125 = vrot.lane.b32.xlu0 %v1050, 20
      %v1126 = vpop.permute.xlu0 %1125
      %1127 = vrot.lane.b32.xlu0 %v1051, 20
      %v1128 = vpop.permute.xlu0 %1127
      %1129 = vrot.lane.b32.xlu0 %v1052, 20
      %v1130 = vpop.permute.xlu0 %1129
      %1131 = vrot.lane.b32.xlu0 %v1053, 20
      %v1132 = vpop.permute.xlu0 %1131
      %1133 = vrot.lane.b32.xlu0 %v1054, 20
      %v1134 = vpop.permute.xlu0 %1133
      %1135 = vrot.lane.b32.xlu0 %v1055, 20
      %v1136 = vpop.permute.xlu0 %1135
      %1137 = vrot.lane.b32.xlu0 %v1056, 20
      %v1138 = vpop.permute.xlu0 %1137
      %1139 = vrot.lane.b32.xlu0 %v1057, 20
      %v1140 = vpop.permute.xlu0 %1139
      %1141 = vrot.lane.b32.xlu0 %v1058, 20
      %v1142 = vpop.permute.xlu0 %1141
      %1143 = vrot.lane.b32.xlu0 %v1059, 20
      %v1144 = vpop.permute.xlu0 %1143
      %1145 = vrot.lane.b32.xlu0 %v1060, 20
      %v1146 = vpop.permute.xlu0 %1145
      %1147 = vrot.lane.b32.xlu0 %v1061, 20
      %v1148 = vpop.permute.xlu0 %1147
      %1149 = vrot.lane.b32.xlu0 %v1062, 20
      %v1150 = vpop.permute.xlu0 %1149
      %1151 = vrot.lane.b32.xlu0 %v1063, 20
      %v1152 = vpop.permute.xlu0 %1151
      %1153 = vrot.lane.b32.xlu0 %v1064, 20
      %v1154 = vpop.permute.xlu0 %1153
      %1155 = vrot.lane.b32.xlu0 %v1065, 20
      %v1156 = vpop.permute.xlu0 %1155
      %1157 = vrot.lane.b32.xlu0 %v1066, 20
      %v1158 = vpop.permute.xlu0 %1157
      %1159 = vrot.lane.b32.xlu0 %v1067, 20
      %v1160 = vpop.permute.xlu0 %1159
      %1161 = vrot.lane.b32.xlu0 %v1068, 20
      %v1162 = vpop.permute.xlu0 %1161
      %1163 = vrot.lane.b32.xlu0 %v1069, 20
      %v1164 = vpop.permute.xlu0 %1163
      %1165 = vrot.lane.b32.xlu0 %v1070, 20
      %v1166 = vpop.permute.xlu0 %1165
      %vm1199 = vcmask 195744
      %1200 = vst.msk [vmem:[#allocation2] sm:$0xff] %vm1199, %v1104
      %1201 = vst.msk [vmem:[#allocation2 + $0x8] sm:$0xff] %vm1199, %v1106
      %1202 = vst.msk [vmem:[#allocation2 + $0x10] sm:$0xff] %vm1199, %v1108
      %1203 = vst.msk [vmem:[#allocation2 + $0x18] sm:$0xff] %vm1199, %v1110
      %1204 = vst.msk [vmem:[#allocation2 + $0x20] sm:$0xff] %vm1199, %v1112
      %1205 = vst.msk [vmem:[#allocation2 + $0x28] sm:$0xff] %vm1199, %v1114
      %1206 = vst.msk [vmem:[#allocation2 + $0x30] sm:$0xff] %vm1199, %v1116
      %1207 = vst.msk [vmem:[#allocation2 + $0x38] sm:$0xff] %vm1199, %v1118
      %1208 = vst.msk [vmem:[#allocation2 + $0x40] sm:$0xff] %vm1199, %v1120
      %1209 = vst.msk [vmem:[#allocation2 + $0x48] sm:$0xff] %vm1199, %v1122
      %1210 = vst.msk [vmem:[#allocation2 + $0x50] sm:$0xff] %vm1199, %v1124
      %1211 = vst.msk [vmem:[#allocation2 + $0x58] sm:$0xff] %vm1199, %v1126
      %1212 = vst.msk [vmem:[#allocation2 + $0x60] sm:$0xff] %vm1199, %v1128
      %1213 = vst.msk [vmem:[#allocation2 + $0x68] sm:$0xff] %vm1199, %v1130
      %1214 = vst.msk [vmem:[#allocation2 + $0x70] sm:$0xff] %vm1199, %v1132
      %1215 = vst.msk [vmem:[#allocation2 + $0x78] sm:$0xff] %vm1199, %v1134
      %1216 = vst.msk [vmem:[#allocation2 + $0x80] sm:$0xff] %vm1199, %v1136
      %1217 = vst.msk [vmem:[#allocation2 + $0x88] sm:$0xff] %vm1199, %v1138
      %1218 = vst.msk [vmem:[#allocation2 + $0x90] sm:$0xff] %vm1199, %v1140
      %1219 = vst.msk [vmem:[#allocation2 + $0x98] sm:$0xff] %vm1199, %v1142
      %1220 = vst.msk [vmem:[#allocation2 + $0xa0] sm:$0xff] %vm1199, %v1144
      %1221 = vst.msk [vmem:[#allocation2 + $0xa8] sm:$0xff] %vm1199, %v1146
      %1222 = vst.msk [vmem:[#allocation2 + $0xb0] sm:$0xff] %vm1199, %v1148
      %1223 = vst.msk [vmem:[#allocation2 + $0xb8] sm:$0xff] %vm1199, %v1150
      %1224 = vst.msk [vmem:[#allocation2 + $0xc0] sm:$0xff] %vm1199, %v1152
      %1225 = vst.msk [vmem:[#allocation2 + $0xc8] sm:$0xff] %vm1199, %v1154
      %1226 = vst.msk [vmem:[#allocation2 + $0xd0] sm:$0xff] %vm1199, %v1156
      %1227 = vst.msk [vmem:[#allocation2 + $0xd8] sm:$0xff] %vm1199, %v1158
      %1228 = vst.msk [vmem:[#allocation2 + $0xe0] sm:$0xff] %vm1199, %v1160
      %1229 = vst.msk [vmem:[#allocation2 + $0xe8] sm:$0xff] %vm1199, %v1162
      %1230 = vst.msk [vmem:[#allocation2 + $0xf0] sm:$0xff] %vm1199, %v1164
      %1231 = vst.msk [vmem:[#allocation2 + $0xf8] sm:$0xff] %vm1199, %v1166
      %s1232 = sadd.s32 %s196, 2
      %s1233 = smul.u32 %s1232, 24
      %s1234 = scalar_lea.vmem %s184, %s1233
      %v1235 = vld [vmem:[%s1234] sm:$0xff]
      %v1236 = vld [vmem:[%s1234 + $0x8] sm:$0xff]
      %v1237 = vld [vmem:[%s1234 + $0x18] sm:$0xff]
      %v1238 = vld [vmem:[%s1234 + $0x20] sm:$0xff]
      %v1239 = vld [vmem:[%s1234 + $0x30] sm:$0xff]
      %v1240 = vld [vmem:[%s1234 + $0x38] sm:$0xff]
      %v1241 = vld [vmem:[%s1234 + $0x48] sm:$0xff]
      %v1242 = vld [vmem:[%s1234 + $0x50] sm:$0xff]
      %v1243 = vld [vmem:[%s1234 + $0x60] sm:$0xff]
      %v1244 = vld [vmem:[%s1234 + $0x68] sm:$0xff]
      %v1245 = vld [vmem:[%s1234 + $0x78] sm:$0xff]
      %v1246 = vld [vmem:[%s1234 + $0x80] sm:$0xff]
      %v1247 = vld [vmem:[%s1234 + $0x90] sm:$0xff]
      %v1248 = vld [vmem:[%s1234 + $0x98] sm:$0xff]
      %v1249 = vld [vmem:[%s1234 + $0xa8] sm:$0xff]
      %v1250 = vld [vmem:[%s1234 + $0xb0] sm:$0xff]
      %v1251 = vld [vmem:[%s1234 + $0xc0] sm:$0xff]
      %v1252 = vld [vmem:[%s1234 + $0xc8] sm:$0xff]
      %v1253 = vld [vmem:[%s1234 + $0xd8] sm:$0xff]
      %v1254 = vld [vmem:[%s1234 + $0xe0] sm:$0xff]
      %v1255 = vld [vmem:[%s1234 + $0xf0] sm:$0xff]
      %v1256 = vld [vmem:[%s1234 + $0xf8] sm:$0xff]
      %v1257 = vld [vmem:[%s1234 + $0x108] sm:$0xff]
      %v1258 = vld [vmem:[%s1234 + $0x110] sm:$0xff]
      %v1259 = vld [vmem:[%s1234 + $0x120] sm:$0xff]
      %v1260 = vld [vmem:[%s1234 + $0x128] sm:$0xff]
      %v1261 = vld [vmem:[%s1234 + $0x138] sm:$0xff]
      %v1262 = vld [vmem:[%s1234 + $0x140] sm:$0xff]
      %v1263 = vld [vmem:[%s1234 + $0x150] sm:$0xff]
      %v1264 = vld [vmem:[%s1234 + $0x158] sm:$0xff]
      %v1265 = vld [vmem:[%s1234 + $0x168] sm:$0xff]
      %v1266 = vld [vmem:[%s1234 + $0x170] sm:$0xff]
      %1299 = vrot.lane.b32.xlu0 %v1235, 24
      %v1300 = vpop.permute.xlu0 %1299
      %1301 = vrot.lane.b32.xlu0 %v1236, 24
      %v1302 = vpop.permute.xlu0 %1301
      %1303 = vrot.lane.b32.xlu0 %v1237, 24
      %v1304 = vpop.permute.xlu0 %1303
      %1305 = vrot.lane.b32.xlu0 %v1238, 24
      %v1306 = vpop.permute.xlu0 %1305
      %1307 = vrot.lane.b32.xlu0 %v1239, 24
      %v1308 = vpop.permute.xlu0 %1307
      %1309 = vrot.lane.b32.xlu0 %v1240, 24
      %v1310 = vpop.permute.xlu0 %1309
      %1311 = vrot.lane.b32.xlu0 %v1241, 24
      %v1312 = vpop.permute.xlu0 %1311
      %1313 = vrot.lane.b32.xlu0 %v1242, 24
      %v1314 = vpop.permute.xlu0 %1313
      %1315 = vrot.lane.b32.xlu0 %v1243, 24
      %v1316 = vpop.permute.xlu0 %1315
      %1317 = vrot.lane.b32.xlu0 %v1244, 24
      %v1318 = vpop.permute.xlu0 %1317
      %1319 = vrot.lane.b32.xlu0 %v1245, 24
      %v1320 = vpop.permute.xlu0 %1319
      %1321 = vrot.lane.b32.xlu0 %v1246, 24
      %v1322 = vpop.permute.xlu0 %1321
      %1323 = vrot.lane.b32.xlu0 %v1247, 24
      %v1324 = vpop.permute.xlu0 %1323
      %1325 = vrot.lane.b32.xlu0 %v1248, 24
      %v1326 = vpop.permute.xlu0 %1325
      %1327 = vrot.lane.b32.xlu0 %v1249, 24
      %v1328 = vpop.permute.xlu0 %1327
      %1329 = vrot.lane.b32.xlu0 %v1250, 24
      %v1330 = vpop.permute.xlu0 %1329
      %1331 = vrot.lane.b32.xlu0 %v1251, 24
      %v1332 = vpop.permute.xlu0 %1331
      %1333 = vrot.lane.b32.xlu0 %v1252, 24
      %v1334 = vpop.permute.xlu0 %1333
      %1335 = vrot.lane.b32.xlu0 %v1253, 24
      %v1336 = vpop.permute.xlu0 %1335
      %1337 = vrot.lane.b32.xlu0 %v1254, 24
      %v1338 = vpop.permute.xlu0 %1337
      %1339 = vrot.lane.b32.xlu0 %v1255, 24
      %v1340 = vpop.permute.xlu0 %1339
      %1341 = vrot.lane.b32.xlu0 %v1256, 24
      %v1342 = vpop.permute.xlu0 %1341
      %1343 = vrot.lane.b32.xlu0 %v1257, 24
      %v1344 = vpop.permute.xlu0 %1343
      %1345 = vrot.lane.b32.xlu0 %v1258, 24
      %v1346 = vpop.permute.xlu0 %1345
      %1347 = vrot.lane.b32.xlu0 %v1259, 24
      %v1348 = vpop.permute.xlu0 %1347
      %1349 = vrot.lane.b32.xlu0 %v1260, 24
      %v1350 = vpop.permute.xlu0 %1349
      %1351 = vrot.lane.b32.xlu0 %v1261, 24
      %v1352 = vpop.permute.xlu0 %1351
      %1353 = vrot.lane.b32.xlu0 %v1262, 24
      %v1354 = vpop.permute.xlu0 %1353
      %1355 = vrot.lane.b32.xlu0 %v1263, 24
      %v1356 = vpop.permute.xlu0 %1355
      %1357 = vrot.lane.b32.xlu0 %v1264, 24
      %v1358 = vpop.permute.xlu0 %1357
      %1359 = vrot.lane.b32.xlu0 %v1265, 24
      %v1360 = vpop.permute.xlu0 %1359
      %1361 = vrot.lane.b32.xlu0 %v1266, 24
      %v1362 = vpop.permute.xlu0 %1361
      %vm1395 = vcmask 228544
      %1396 = vst.msk [vmem:[#allocation2] sm:$0xff] %vm1395, %v1300
      %1397 = vst.msk [vmem:[#allocation2 + $0x8] sm:$0xff] %vm1395, %v1302
      %1398 = vst.msk [vmem:[#allocation2 + $0x10] sm:$0xff] %vm1395, %v1304
      %1399 = vst.msk [vmem:[#allocation2 + $0x18] sm:$0xff] %vm1395, %v1306
      %1400 = vst.msk [vmem:[#allocation2 + $0x20] sm:$0xff] %vm1395, %v1308
      %1401 = vst.msk [vmem:[#allocation2 + $0x28] sm:$0xff] %vm1395, %v1310
      %1402 = vst.msk [vmem:[#allocation2 + $0x30] sm:$0xff] %vm1395, %v1312
      %1403 = vst.msk [vmem:[#allocation2 + $0x38] sm:$0xff] %vm1395, %v1314
      %1404 = vst.msk [vmem:[#allocation2 + $0x40] sm:$0xff] %vm1395, %v1316
      %1405 = vst.msk [vmem:[#allocation2 + $0x48] sm:$0xff] %vm1395, %v1318
      %1406 = vst.msk [vmem:[#allocation2 + $0x50] sm:$0xff] %vm1395, %v1320
      %1407 = vst.msk [vmem:[#allocation2 + $0x58] sm:$0xff] %vm1395, %v1322
      %1408 = vst.msk [vmem:[#allocation2 + $0x60] sm:$0xff] %vm1395, %v1324
      %1409 = vst.msk [vmem:[#allocation2 + $0x68] sm:$0xff] %vm1395, %v1326
      %1410 = vst.msk [vmem:[#allocation2 + $0x70] sm:$0xff] %vm1395, %v1328
      %1411 = vst.msk [vmem:[#allocation2 + $0x78] sm:$0xff] %vm1395, %v1330
      %1412 = vst.msk [vmem:[#allocation2 + $0x80] sm:$0xff] %vm1395, %v1332
      %1413 = vst.msk [vmem:[#allocation2 + $0x88] sm:$0xff] %vm1395, %v1334
      %1414 = vst.msk [vmem:[#allocation2 + $0x90] sm:$0xff] %vm1395, %v1336
      %1415 = vst.msk [vmem:[#allocation2 + $0x98] sm:$0xff] %vm1395, %v1338
      %1416 = vst.msk [vmem:[#allocation2 + $0xa0] sm:$0xff] %vm1395, %v1340
      %1417 = vst.msk [vmem:[#allocation2 + $0xa8] sm:$0xff] %vm1395, %v1342
      %1418 = vst.msk [vmem:[#allocation2 + $0xb0] sm:$0xff] %vm1395, %v1344
      %1419 = vst.msk [vmem:[#allocation2 + $0xb8] sm:$0xff] %vm1395, %v1346
      %1420 = vst.msk [vmem:[#allocation2 + $0xc0] sm:$0xff] %vm1395, %v1348
      %1421 = vst.msk [vmem:[#allocation2 + $0xc8] sm:$0xff] %vm1395, %v1350
      %1422 = vst.msk [vmem:[#allocation2 + $0xd0] sm:$0xff] %vm1395, %v1352
      %1423 = vst.msk [vmem:[#allocation2 + $0xd8] sm:$0xff] %vm1395, %v1354
      %1424 = vst.msk [vmem:[#allocation2 + $0xe0] sm:$0xff] %vm1395, %v1356
      %1425 = vst.msk [vmem:[#allocation2 + $0xe8] sm:$0xff] %vm1395, %v1358
      %1426 = vst.msk [vmem:[#allocation2 + $0xf0] sm:$0xff] %vm1395, %v1360
      %1427 = vst.msk [vmem:[#allocation2 + $0xf8] sm:$0xff] %vm1395, %v1362
      %v1428 = vld [vmem:[%s1234 + $0x1] sm:$0xff]
      %v1429 = vld [vmem:[%s1234 + $0x9] sm:$0xff]
      %v1430 = vld [vmem:[%s1234 + $0x19] sm:$0xff]
      %v1431 = vld [vmem:[%s1234 + $0x21] sm:$0xff]
      %v1432 = vld [vmem:[%s1234 + $0x31] sm:$0xff]
      %v1433 = vld [vmem:[%s1234 + $0x39] sm:$0xff]
      %v1434 = vld [vmem:[%s1234 + $0x49] sm:$0xff]
      %v1435 = vld [vmem:[%s1234 + $0x51] sm:$0xff]
      %v1436 = vld [vmem:[%s1234 + $0x61] sm:$0xff]
      %v1437 = vld [vmem:[%s1234 + $0x69] sm:$0xff]
      %v1438 = vld [vmem:[%s1234 + $0x79] sm:$0xff]
      %v1439 = vld [vmem:[%s1234 + $0x81] sm:$0xff]
      %v1440 = vld [vmem:[%s1234 + $0x91] sm:$0xff]
      %v1441 = vld [vmem:[%s1234 + $0x99] sm:$0xff]
      %v1442 = vld [vmem:[%s1234 + $0xa9] sm:$0xff]
      %v1443 = vld [vmem:[%s1234 + $0xb1] sm:$0xff]
      %v1444 = vld [vmem:[%s1234 + $0xc1] sm:$0xff]
      %v1445 = vld [vmem:[%s1234 + $0xc9] sm:$0xff]
      %v1446 = vld [vmem:[%s1234 + $0xd9] sm:$0xff]
      %v1447 = vld [vmem:[%s1234 + $0xe1] sm:$0xff]
      %v1448 = vld [vmem:[%s1234 + $0xf1] sm:$0xff]
      %v1449 = vld [vmem:[%s1234 + $0xf9] sm:$0xff]
      %v1450 = vld [vmem:[%s1234 + $0x109] sm:$0xff]
      %v1451 = vld [vmem:[%s1234 + $0x111] sm:$0xff]
      %v1452 = vld [vmem:[%s1234 + $0x121] sm:$0xff]
      %v1453 = vld [vmem:[%s1234 + $0x129] sm:$0xff]
      %v1454 = vld [vmem:[%s1234 + $0x139] sm:$0xff]
      %v1455 = vld [vmem:[%s1234 + $0x141] sm:$0xff]
      %v1456 = vld [vmem:[%s1234 + $0x151] sm:$0xff]
      %v1457 = vld [vmem:[%s1234 + $0x159] sm:$0xff]
      %v1458 = vld [vmem:[%s1234 + $0x169] sm:$0xff]
      %v1459 = vld [vmem:[%s1234 + $0x171] sm:$0xff]
      %1492 = vrot.lane.b32.xlu0 %v1428, 28
      %v1493 = vpop.permute.xlu0 %1492
      %1494 = vrot.lane.b32.xlu0 %v1429, 28
      %v1495 = vpop.permute.xlu0 %1494
      %1496 = vrot.lane.b32.xlu0 %v1430, 28
      %v1497 = vpop.permute.xlu0 %1496
      %1498 = vrot.lane.b32.xlu0 %v1431, 28
      %v1499 = vpop.permute.xlu0 %1498
      %1500 = vrot.lane.b32.xlu0 %v1432, 28
      %v1501 = vpop.permute.xlu0 %1500
      %1502 = vrot.lane.b32.xlu0 %v1433, 28
      %v1503 = vpop.permute.xlu0 %1502
      %1504 = vrot.lane.b32.xlu0 %v1434, 28
      %v1505 = vpop.permute.xlu0 %1504
      %1506 = vrot.lane.b32.xlu0 %v1435, 28
      %v1507 = vpop.permute.xlu0 %1506
      %1508 = vrot.lane.b32.xlu0 %v1436, 28
      %v1509 = vpop.permute.xlu0 %1508
      %1510 = vrot.lane.b32.xlu0 %v1437, 28
      %v1511 = vpop.permute.xlu0 %1510
      %1512 = vrot.lane.b32.xlu0 %v1438, 28
      %v1513 = vpop.permute.xlu0 %1512
      %1514 = vrot.lane.b32.xlu0 %v1439, 28
      %v1515 = vpop.permute.xlu0 %1514
      %1516 = vrot.lane.b32.xlu0 %v1440, 28
      %v1517 = vpop.permute.xlu0 %1516
      %1518 = vrot.lane.b32.xlu0 %v1441, 28
      %v1519 = vpop.permute.xlu0 %1518
      %1520 = vrot.lane.b32.xlu0 %v1442, 28
      %v1521 = vpop.permute.xlu0 %1520
      %1522 = vrot.lane.b32.xlu0 %v1443, 28
      %v1523 = vpop.permute.xlu0 %1522
      %1524 = vrot.lane.b32.xlu0 %v1444, 28
      %v1525 = vpop.permute.xlu0 %1524
      %1526 = vrot.lane.b32.xlu0 %v1445, 28
      %v1527 = vpop.permute.xlu0 %1526
      %1528 = vrot.lane.b32.xlu0 %v1446, 28
      %v1529 = vpop.permute.xlu0 %1528
      %1530 = vrot.lane.b32.xlu0 %v1447, 28
      %v1531 = vpop.permute.xlu0 %1530
      %1532 = vrot.lane.b32.xlu0 %v1448, 28
      %v1533 = vpop.permute.xlu0 %1532
      %1534 = vrot.lane.b32.xlu0 %v1449, 28
      %v1535 = vpop.permute.xlu0 %1534
      %1536 = vrot.lane.b32.xlu0 %v1450, 28
      %v1537 = vpop.permute.xlu0 %1536
      %1538 = vrot.lane.b32.xlu0 %v1451, 28
      %v1539 = vpop.permute.xlu0 %1538
      %1540 = vrot.lane.b32.xlu0 %v1452, 28
      %v1541 = vpop.permute.xlu0 %1540
      %1542 = vrot.lane.b32.xlu0 %v1453, 28
      %v1543 = vpop.permute.xlu0 %1542
      %1544 = vrot.lane.b32.xlu0 %v1454, 28
      %v1545 = vpop.permute.xlu0 %1544
      %1546 = vrot.lane.b32.xlu0 %v1455, 28
      %v1547 = vpop.permute.xlu0 %1546
      %1548 = vrot.lane.b32.xlu0 %v1456, 28
      %v1549 = vpop.permute.xlu0 %1548
      %1550 = vrot.lane.b32.xlu0 %v1457, 28
      %v1551 = vpop.permute.xlu0 %1550
      %1552 = vrot.lane.b32.xlu0 %v1458, 28
      %v1553 = vpop.permute.xlu0 %1552
      %1554 = vrot.lane.b32.xlu0 %v1459, 28
      %v1555 = vpop.permute.xlu0 %1554
      %vm1588 = vcmask 261344
      %1589 = vst.msk [vmem:[#allocation2] sm:$0xff] %vm1588, %v1493
      %1590 = vst.msk [vmem:[#allocation2 + $0x8] sm:$0xff] %vm1588, %v1495
      %1591 = vst.msk [vmem:[#allocation2 + $0x10] sm:$0xff] %vm1588, %v1497
      %1592 = vst.msk [vmem:[#allocation2 + $0x18] sm:$0xff] %vm1588, %v1499
      %1593 = vst.msk [vmem:[#allocation2 + $0x20] sm:$0xff] %vm1588, %v1501
      %1594 = vst.msk [vmem:[#allocation2 + $0x28] sm:$0xff] %vm1588, %v1503
      %1595 = vst.msk [vmem:[#allocation2 + $0x30] sm:$0xff] %vm1588, %v1505
      %1596 = vst.msk [vmem:[#allocation2 + $0x38] sm:$0xff] %vm1588, %v1507
      %1597 = vst.msk [vmem:[#allocation2 + $0x40] sm:$0xff] %vm1588, %v1509
      %1598 = vst.msk [vmem:[#allocation2 + $0x48] sm:$0xff] %vm1588, %v1511
      %1599 = vst.msk [vmem:[#allocation2 + $0x50] sm:$0xff] %vm1588, %v1513
      %1600 = vst.msk [vmem:[#allocation2 + $0x58] sm:$0xff] %vm1588, %v1515
      %1601 = vst.msk [vmem:[#allocation2 + $0x60] sm:$0xff] %vm1588, %v1517
      %1602 = vst.msk [vmem:[#allocation2 + $0x68] sm:$0xff] %vm1588, %v1519
      %1603 = vst.msk [vmem:[#allocation2 + $0x70] sm:$0xff] %vm1588, %v1521
      %1604 = vst.msk [vmem:[#allocation2 + $0x78] sm:$0xff] %vm1588, %v1523
      %1605 = vst.msk [vmem:[#allocation2 + $0x80] sm:$0xff] %vm1588, %v1525
      %1606 = vst.msk [vmem:[#allocation2 + $0x88] sm:$0xff] %vm1588, %v1527
      %1607 = vst.msk [vmem:[#allocation2 + $0x90] sm:$0xff] %vm1588, %v1529
      %1608 = vst.msk [vmem:[#allocation2 + $0x98] sm:$0xff] %vm1588, %v1531
      %1609 = vst.msk [vmem:[#allocation2 + $0xa0] sm:$0xff] %vm1588, %v1533
      %1610 = vst.msk [vmem:[#allocation2 + $0xa8] sm:$0xff] %vm1588, %v1535
      %1611 = vst.msk [vmem:[#allocation2 + $0xb0] sm:$0xff] %vm1588, %v1537
      %1612 = vst.msk [vmem:[#allocation2 + $0xb8] sm:$0xff] %vm1588, %v1539
      %1613 = vst.msk [vmem:[#allocation2 + $0xc0] sm:$0xff] %vm1588, %v1541
      %1614 = vst.msk [vmem:[#allocation2 + $0xc8] sm:$0xff] %vm1588, %v1543
      %1615 = vst.msk [vmem:[#allocation2 + $0xd0] sm:$0xff] %vm1588, %v1545
      %1616 = vst.msk [vmem:[#allocation2 + $0xd8] sm:$0xff] %vm1588, %v1547
      %1617 = vst.msk [vmem:[#allocation2 + $0xe0] sm:$0xff] %vm1588, %v1549
      %1618 = vst.msk [vmem:[#allocation2 + $0xe8] sm:$0xff] %vm1588, %v1551
      %1619 = vst.msk [vmem:[#allocation2 + $0xf0] sm:$0xff] %vm1588, %v1553
      %1620 = vst.msk [vmem:[#allocation2 + $0xf8] sm:$0xff] %vm1588, %v1555
      %v1621 = vld [vmem:[%s1234 + $0x2] sm:$0xff]
      %v1622 = vld [vmem:[%s1234 + $0xa] sm:$0xff]
      %v1623 = vld [vmem:[%s1234 + $0x1a] sm:$0xff]
      %v1624 = vld [vmem:[%s1234 + $0x22] sm:$0xff]
      %v1625 = vld [vmem:[%s1234 + $0x32] sm:$0xff]
      %v1626 = vld [vmem:[%s1234 + $0x3a] sm:$0xff]
      %v1627 = vld [vmem:[%s1234 + $0x4a] sm:$0xff]
      %v1628 = vld [vmem:[%s1234 + $0x52] sm:$0xff]
      %v1629 = vld [vmem:[%s1234 + $0x62] sm:$0xff]
      %v1630 = vld [vmem:[%s1234 + $0x6a] sm:$0xff]
      %v1631 = vld [vmem:[%s1234 + $0x7a] sm:$0xff]
      %v1632 = vld [vmem:[%s1234 + $0x82] sm:$0xff]
      %v1633 = vld [vmem:[%s1234 + $0x92] sm:$0xff]
      %v1634 = vld [vmem:[%s1234 + $0x9a] sm:$0xff]
      %v1635 = vld [vmem:[%s1234 + $0xaa] sm:$0xff]
      %v1636 = vld [vmem:[%s1234 + $0xb2] sm:$0xff]
      %v1637 = vld [vmem:[%s1234 + $0xc2] sm:$0xff]
      %v1638 = vld [vmem:[%s1234 + $0xca] sm:$0xff]
      %v1639 = vld [vmem:[%s1234 + $0xda] sm:$0xff]
      %v1640 = vld [vmem:[%s1234 + $0xe2] sm:$0xff]
      %v1641 = vld [vmem:[%s1234 + $0xf2] sm:$0xff]
      %v1642 = vld [vmem:[%s1234 + $0xfa] sm:$0xff]
      %v1643 = vld [vmem:[%s1234 + $0x10a] sm:$0xff]
      %v1644 = vld [vmem:[%s1234 + $0x112] sm:$0xff]
      %v1645 = vld [vmem:[%s1234 + $0x122] sm:$0xff]
      %v1646 = vld [vmem:[%s1234 + $0x12a] sm:$0xff]
      %v1647 = vld [vmem:[%s1234 + $0x13a] sm:$0xff]
      %v1648 = vld [vmem:[%s1234 + $0x142] sm:$0xff]
      %v1649 = vld [vmem:[%s1234 + $0x152] sm:$0xff]
      %v1650 = vld [vmem:[%s1234 + $0x15a] sm:$0xff]
      %v1651 = vld [vmem:[%s1234 + $0x16a] sm:$0xff]
      %v1652 = vld [vmem:[%s1234 + $0x172] sm:$0xff]
      %1685 = vrot.lane.b32.xlu0 %v1621, 32
      %v1686 = vpop.permute.xlu0 %1685
      %1687 = vrot.lane.b32.xlu0 %v1622, 32
      %v1688 = vpop.permute.xlu0 %1687
      %1689 = vrot.lane.b32.xlu0 %v1623, 32
      %v1690 = vpop.permute.xlu0 %1689
      %1691 = vrot.lane.b32.xlu0 %v1624, 32
      %v1692 = vpop.permute.xlu0 %1691
      %1693 = vrot.lane.b32.xlu0 %v1625, 32
      %v1694 = vpop.permute.xlu0 %1693
      %1695 = vrot.lane.b32.xlu0 %v1626, 32
      %v1696 = vpop.permute.xlu0 %1695
      %1697 = vrot.lane.b32.xlu0 %v1627, 32
      %v1698 = vpop.permute.xlu0 %1697
      %1699 = vrot.lane.b32.xlu0 %v1628, 32
      %v1700 = vpop.permute.xlu0 %1699
      %1701 = vrot.lane.b32.xlu0 %v1629, 32
      %v1702 = vpop.permute.xlu0 %1701
      %1703 = vrot.lane.b32.xlu0 %v1630, 32
      %v1704 = vpop.permute.xlu0 %1703
      %1705 = vrot.lane.b32.xlu0 %v1631, 32
      %v1706 = vpop.permute.xlu0 %1705
      %1707 = vrot.lane.b32.xlu0 %v1632, 32
      %v1708 = vpop.permute.xlu0 %1707
      %1709 = vrot.lane.b32.xlu0 %v1633, 32
      %v1710 = vpop.permute.xlu0 %1709
      %1711 = vrot.lane.b32.xlu0 %v1634, 32
      %v1712 = vpop.permute.xlu0 %1711
      %1713 = vrot.lane.b32.xlu0 %v1635, 32
      %v1714 = vpop.permute.xlu0 %1713
      %1715 = vrot.lane.b32.xlu0 %v1636, 32
      %v1716 = vpop.permute.xlu0 %1715
      %1717 = vrot.lane.b32.xlu0 %v1637, 32
      %v1718 = vpop.permute.xlu0 %1717
      %1719 = vrot.lane.b32.xlu0 %v1638, 32
      %v1720 = vpop.permute.xlu0 %1719
      %1721 = vrot.lane.b32.xlu0 %v1639, 32
      %v1722 = vpop.permute.xlu0 %1721
      %1723 = vrot.lane.b32.xlu0 %v1640, 32
      %v1724 = vpop.permute.xlu0 %1723
      %1725 = vrot.lane.b32.xlu0 %v1641, 32
      %v1726 = vpop.permute.xlu0 %1725
      %1727 = vrot.lane.b32.xlu0 %v1642, 32
      %v1728 = vpop.permute.xlu0 %1727
      %1729 = vrot.lane.b32.xlu0 %v1643, 32
      %v1730 = vpop.permute.xlu0 %1729
      %1731 = vrot.lane.b32.xlu0 %v1644, 32
      %v1732 = vpop.permute.xlu0 %1731
      %1733 = vrot.lane.b32.xlu0 %v1645, 32
      %v1734 = vpop.permute.xlu0 %1733
      %1735 = vrot.lane.b32.xlu0 %v1646, 32
      %v1736 = vpop.permute.xlu0 %1735
      %1737 = vrot.lane.b32.xlu0 %v1647, 32
      %v1738 = vpop.permute.xlu0 %1737
      %1739 = vrot.lane.b32.xlu0 %v1648, 32
      %v1740 = vpop.permute.xlu0 %1739
      %1741 = vrot.lane.b32.xlu0 %v1649, 32
      %v1742 = vpop.permute.xlu0 %1741
      %1743 = vrot.lane.b32.xlu0 %v1650, 32
      %v1744 = vpop.permute.xlu0 %1743
      %1745 = vrot.lane.b32.xlu0 %v1651, 32
      %v1746 = vpop.permute.xlu0 %1745
      %1747 = vrot.lane.b32.xlu0 %v1652, 32
      %v1748 = vpop.permute.xlu0 %1747
      %vm1781 = vcmask 294144
      %1782 = vst.msk [vmem:[#allocation2] sm:$0xff] %vm1781, %v1686
      %1783 = vst.msk [vmem:[#allocation2 + $0x8] sm:$0xff] %vm1781, %v1688
      %1784 = vst.msk [vmem:[#allocation2 + $0x10] sm:$0xff] %vm1781, %v1690
      %1785 = vst.msk [vmem:[#allocation2 + $0x18] sm:$0xff] %vm1781, %v1692
      %1786 = vst.msk [vmem:[#allocation2 + $0x20] sm:$0xff] %vm1781, %v1694
      %1787 = vst.msk [vmem:[#allocation2 + $0x28] sm:$0xff] %vm1781, %v1696
      %1788 = vst.msk [vmem:[#allocation2 + $0x30] sm:$0xff] %vm1781, %v1698
      %1789 = vst.msk [vmem:[#allocation2 + $0x38] sm:$0xff] %vm1781, %v1700
      %1790 = vst.msk [vmem:[#allocation2 + $0x40] sm:$0xff] %vm1781, %v1702
      %1791 = vst.msk [vmem:[#allocation2 + $0x48] sm:$0xff] %vm1781, %v1704
      %1792 = vst.msk [vmem:[#allocation2 + $0x50] sm:$0xff] %vm1781, %v1706
      %1793 = vst.msk [vmem:[#allocation2 + $0x58] sm:$0xff] %vm1781, %v1708
      %1794 = vst.msk [vmem:[#allocation2 + $0x60] sm:$0xff] %vm1781, %v1710
      %1795 = vst.msk [vmem:[#allocation2 + $0x68] sm:$0xff] %vm1781, %v1712
      %1796 = vst.msk [vmem:[#allocation2 + $0x70] sm:$0xff] %vm1781, %v1714
      %1797 = vst.msk [vmem:[#allocation2 + $0x78] sm:$0xff] %vm1781, %v1716
      %1798 = vst.msk [vmem:[#allocation2 + $0x80] sm:$0xff] %vm1781, %v1718
      %1799 = vst.msk [vmem:[#allocation2 + $0x88] sm:$0xff] %vm1781, %v1720
      %1800 = vst.msk [vmem:[#allocation2 + $0x90] sm:$0xff] %vm1781, %v1722
      %1801 = vst.msk [vmem:[#allocation2 + $0x98] sm:$0xff] %vm1781, %v1724
      %1802 = vst.msk [vmem:[#allocation2 + $0xa0] sm:$0xff] %vm1781, %v1726
      %1803 = vst.msk [vmem:[#allocation2 + $0xa8] sm:$0xff] %vm1781, %v1728
      %1804 = vst.msk [vmem:[#allocation2 + $0xb0] sm:$0xff] %vm1781, %v1730
      %1805 = vst.msk [vmem:[#allocation2 + $0xb8] sm:$0xff] %vm1781, %v1732
      %1806 = vst.msk [vmem:[#allocation2 + $0xc0] sm:$0xff] %vm1781, %v1734
      %1807 = vst.msk [vmem:[#allocation2 + $0xc8] sm:$0xff] %vm1781, %v1736
      %1808 = vst.msk [vmem:[#allocation2 + $0xd0] sm:$0xff] %vm1781, %v1738
      %1809 = vst.msk [vmem:[#allocation2 + $0xd8] sm:$0xff] %vm1781, %v1740
      %1810 = vst.msk [vmem:[#allocation2 + $0xe0] sm:$0xff] %vm1781, %v1742
      %1811 = vst.msk [vmem:[#allocation2 + $0xe8] sm:$0xff] %vm1781, %v1744
      %1812 = vst.msk [vmem:[#allocation2 + $0xf0] sm:$0xff] %vm1781, %v1746
      %1813 = vst.msk [vmem:[#allocation2 + $0xf8] sm:$0xff] %vm1781, %v1748
      %v1814 = vld [vmem:[#allocation2] sm:$0xff]
      %v1815 = vld [vmem:[#allocation2 + $0x8] sm:$0xff]
      %v1816 = vld [vmem:[#allocation2 + $0x10] sm:$0xff]
      %v1817 = vld [vmem:[#allocation2 + $0x18] sm:$0xff]
      %v1818 = vld [vmem:[#allocation2 + $0x20] sm:$0xff]
      %v1819 = vld [vmem:[#allocation2 + $0x28] sm:$0xff]
      %v1820 = vld [vmem:[#allocation2 + $0x30] sm:$0xff]
      %v1821 = vld [vmem:[#allocation2 + $0x38] sm:$0xff]
      %v1822 = vld [vmem:[#allocation2 + $0x40] sm:$0xff]
      %v1823 = vld [vmem:[#allocation2 + $0x48] sm:$0xff]
      %v1824 = vld [vmem:[#allocation2 + $0x50] sm:$0xff]
      %v1825 = vld [vmem:[#allocation2 + $0x58] sm:$0xff]
      %v1826 = vld [vmem:[#allocation2 + $0x60] sm:$0xff]
      %v1827 = vld [vmem:[#allocation2 + $0x68] sm:$0xff]
      %v1828 = vld [vmem:[#allocation2 + $0x70] sm:$0xff]
      %v1829 = vld [vmem:[#allocation2 + $0x78] sm:$0xff]
      %v1830 = vld [vmem:[#allocation2 + $0x80] sm:$0xff]
      %v1831 = vld [vmem:[#allocation2 + $0x88] sm:$0xff]
      %v1832 = vld [vmem:[#allocation2 + $0x90] sm:$0xff]
      %v1833 = vld [vmem:[#allocation2 + $0x98] sm:$0xff]
      %v1834 = vld [vmem:[#allocation2 + $0xa0] sm:$0xff]
      %v1835 = vld [vmem:[#allocation2 + $0xa8] sm:$0xff]
      %v1836 = vld [vmem:[#allocation2 + $0xb0] sm:$0xff]
      %v1837 = vld [vmem:[#allocation2 + $0xb8] sm:$0xff]
      %v1838 = vld [vmem:[#allocation2 + $0xc0] sm:$0xff]
      %v1839 = vld [vmem:[#allocation2 + $0xc8] sm:$0xff]
      %v1840 = vld [vmem:[#allocation2 + $0xd0] sm:$0xff]
      %v1841 = vld [vmem:[#allocation2 + $0xd8] sm:$0xff]
      %v1842 = vld [vmem:[#allocation2 + $0xe0] sm:$0xff]
      %v1843 = vld [vmem:[#allocation2 + $0xe8] sm:$0xff]
      %v1844 = vld [vmem:[#allocation2 + $0xf0] sm:$0xff]
      %v1845 = vld [vmem:[#allocation2 + $0xf8] sm:$0xff]
      %v1846 = vld [vmem:[%s1] sm:$0xff]
      %v1847 = vld [vmem:[%s1 + $0x8] sm:$0xff]
      %v1848 = vld [vmem:[%s1 + $0x10] sm:$0xff]
      %v1849 = vld [vmem:[%s1 + $0x18] sm:$0xff]
      %v1850 = vld [vmem:[%s1 + $0x20] sm:$0xf]
      %v1851 = vld [vmem:[%s2] sm:$0x1]
      %v1853 = vlaneseq
      %v1854 = vshrl.u32 %v1853, 7
      %v1855 = vsub.s32 0, %v1854
      %v1856 = vrot.slane %v1851, %v1855
      %vm1858 = vcmask 293888
      %v1860 = vsel %vm1858, %v1814, 0
      %v1863 = vsel %vm1858, %v1815, 0
      %v1866 = vsel %vm1858, %v1816, 0
      %v1869 = vsel %vm1858, %v1817, 0
      %v1872 = vsel %vm1858, %v1818, 0
      %v1875 = vsel %vm1858, %v1819, 0
      %v1878 = vsel %vm1858, %v1820, 0
      %v1881 = vsel %vm1858, %v1821, 0
      %v1884 = vsel %vm1858, %v1822, 0
      %v1887 = vsel %vm1858, %v1823, 0
      %v1890 = vsel %vm1858, %v1824, 0
      %v1893 = vsel %vm1858, %v1825, 0
      %v1896 = vsel %vm1858, %v1826, 0
      %v1899 = vsel %vm1858, %v1827, 0
      %v1902 = vsel %vm1858, %v1828, 0
      %v1905 = vsel %vm1858, %v1829, 0
      %v1908 = vsel %vm1858, %v1830, 0
      %v1911 = vsel %vm1858, %v1831, 0
      %v1914 = vsel %vm1858, %v1832, 0
      %v1917 = vsel %vm1858, %v1833, 0
      %v1920 = vsel %vm1858, %v1834, 0
      %v1923 = vsel %vm1858, %v1835, 0
      %v1926 = vsel %vm1858, %v1836, 0
      %v1929 = vsel %vm1858, %v1837, 0
      %v1932 = vsel %vm1858, %v1838, 0
      %v1935 = vsel %vm1858, %v1839, 0
      %v1938 = vsel %vm1858, %v1840, 0
      %v1941 = vsel %vm1858, %v1841, 0
      %v1944 = vsel %vm1858, %v1842, 0
      %v1947 = vsel %vm1858, %v1843, 0
      %v1950 = vsel %vm1858, %v1844, 0
      %v1953 = vsel %vm1858, %v1845, 0
      %vm1955 = vcmask 1043456
      %v1957 = vsel %vm1955, %v1850, 0
      %1959 = vmatprep.subr.mxu0 0.0
      %1960 = vmatpush1.msra.mxu0 %v1846
      %1961 = vmatprep.subr.mxu0 0.0
      %1962 = vmatpush1.msra.mxu0 %v1847
      %1963 = vmatprep.subr.mxu0 0.0
      %1964 = vmatpush1.msra.mxu0 %v1848
      %1965 = vmatprep.subr.mxu0 0.0
      %1966 = vmatpush1.msra.mxu0 %v1849
      %1967 = vmatprep.subr.mxu0 0.0
      %1968 = vmatpush1.msra.mxu0 %v1957
      %1969 = vmatprep.subr.mxu0 0.0
      %1970 = vmatpush1.msra.mxu0 0.0
      %1971 = vmatprep.subr.mxu0 0.0
      %1972 = vmatpush1.msra.mxu0 0.0
      %1973 = vmatprep.subr.mxu0 0.0
      %1974 = vmatpush1.msra.mxu0 0.0
      %1975 = vmatprep.subr.mxu0 0.0
      %1976 = vmatpush1.msra.mxu0 0.0
      %1977 = vmatprep.subr.mxu0 0.0
      %1978 = vmatpush1.msra.mxu0 0.0
      %1979 = vmatprep.subr.mxu0 0.0
      %1980 = vmatpush1.msra.mxu0 0.0
      %1981 = vmatprep.subr.mxu0 0.0
      %1982 = vmatpush1.msra.mxu0 0.0
      %1983 = vmatprep.subr.mxu0 0.0
      %1984 = vmatpush1.msra.mxu0 0.0
      %1985 = vmatprep.subr.mxu0 0.0
      %1986 = vmatpush1.msra.mxu0 0.0
      %1987 = vmatprep.subr.mxu0 0.0
      %1988 = vmatpush1.msra.mxu0 0.0
      %1989 = vmatprep.subr.mxu0 0.0
      %1990 = vmatpush1.msra.mxu0 0.0
      %1991 = vmatprep.subr.mxu0 0.0
      %1992 = vmatpush1.msra.mxu0 0.0
      %1993 = vmatprep.subr.mxu0 0.0
      %1994 = vmatpush1.msra.mxu0 0.0
      %1995 = vmatprep.subr.mxu0 0.0
      %1996 = vmatpush1.msra.mxu0 0.0
      %1997 = vmatprep.subr.mxu0 0.0
      %1998 = vmatpush1.msra.mxu0 0.0
      %1999 = vmatprep.subr.mxu0 0.0
      %2000 = vmatpush1.msra.mxu0 0.0
      %2001 = vmatprep.subr.mxu0 0.0
      %2002 = vmatpush1.msra.mxu0 0.0
      %2003 = vmatprep.subr.mxu0 0.0
      %2004 = vmatpush1.msra.mxu0 0.0
      %2005 = vmatprep.subr.mxu0 0.0
      %2006 = vmatpush1.msra.mxu0 0.0
      %2007 = vmatprep.subr.mxu0 0.0
      %2008 = vmatpush1.msra.mxu0 0.0
      %2009 = vmatprep.subr.mxu0 0.0
      %2010 = vmatpush1.msra.mxu0 0.0
      %2011 = vmatprep.subr.mxu0 0.0
      %2012 = vmatpush1.msra.mxu0 0.0
      %2013 = vmatprep.subr.mxu0 0.0
      %2014 = vmatpush1.msra.mxu0 0.0
      %2015 = vmatprep.subr.mxu0 0.0
      %2016 = vmatpush1.msra.mxu0 0.0
      %2017 = vmatprep.subr.mxu0 0.0
      %2018 = vmatpush1.msra.mxu0 0.0
      %2019 = vmatprep.subr.mxu0 0.0
      %2020 = vmatpush1.msra.mxu0 0.0
      %2021 = vmatprep.subr.mxu0 0.0
      %2022 = vmatpush1.msra.mxu0 0.0
      %2023 = vmatprep.mubr.f32.mxu0 0.0
      %2024 = vmatmul.mubr.f32.gmra.mrb[0].mxu0 %v1860
      %v2025 = vpop.f32.mrb[0].mxu0
      %v2026 = vadd.f32 %v1856, %v2025
      %v2027 = vpop.f32.mrb[0].mxu0
      %2028 = vmatprep.mubr.f32.mxu0 0.0
      %2029 = vmatmul.mubr.f32.gmra.mrb[0].mxu0 %v1863
      %v2030 = vpop.f32.mrb[0].mxu0
      %v2031 = vadd.f32 %v1856, %v2030
      %v2032 = vpop.f32.mrb[0].mxu0
      %2033 = vmatprep.mubr.f32.mxu0 0.0
      %2034 = vmatmul.mubr.f32.gmra.mrb[0].mxu0 %v1866
      %v2035 = vpop.f32.mrb[0].mxu0
      %v2036 = vadd.f32 %v1856, %v2035
      %v2037 = vpop.f32.mrb[0].mxu0
      %2038 = vmatprep.mubr.f32.mxu0 0.0
      %2039 = vmatmul.mubr.f32.gmra.mrb[0].mxu0 %v1869
      %v2040 = vpop.f32.mrb[0].mxu0
      %v2041 = vadd.f32 %v1856, %v2040
      %v2042 = vpop.f32.mrb[0].mxu0
      %2043 = vmatprep.mubr.f32.mxu0 0.0
      %2044 = vmatmul.mubr.f32.gmra.mrb[0].mxu0 %v1872
      %v2045 = vpop.f32.mrb[0].mxu0
      %v2046 = vadd.f32 %v1856, %v2045
      %v2047 = vpop.f32.mrb[0].mxu0
      %2048 = vmatprep.mubr.f32.mxu0 0.0
      %2049 = vmatmul.mubr.f32.gmra.mrb[0].mxu0 %v1875
      %v2050 = vpop.f32.mrb[0].mxu0
      %v2051 = vadd.f32 %v1856, %v2050
      %v2052 = vpop.f32.mrb[0].mxu0
      %2053 = vmatprep.mubr.f32.mxu0 0.0
      %2054 = vmatmul.mubr.f32.gmra.mrb[0].mxu0 %v1878
      %v2055 = vpop.f32.mrb[0].mxu0
      %v2056 = vadd.f32 %v1856, %v2055
      %v2057 = vpop.f32.mrb[0].mxu0
      %2058 = vmatprep.mubr.f32.mxu0 0.0
      %2059 = vmatmul.mubr.f32.gmra.mrb[0].mxu0 %v1881
      %v2060 = vpop.f32.mrb[0].mxu0
      %v2061 = vadd.f32 %v1856, %v2060
      %v2062 = vpop.f32.mrb[0].mxu0
      %2063 = vmatprep.mubr.f32.mxu0 0.0
      %2064 = vmatmul.mubr.f32.gmra.mrb[0].mxu0 %v1884
      %v2065 = vpop.f32.mrb[0].mxu0
      %v2066 = vadd.f32 %v1856, %v2065
      %v2067 = vpop.f32.mrb[0].mxu0
      %2068 = vmatprep.mubr.f32.mxu0 0.0
      %2069 = vmatmul.mubr.f32.gmra.mrb[0].mxu0 %v1887
      %v2070 = vpop.f32.mrb[0].mxu0
      %v2071 = vadd.f32 %v1856, %v2070
      %v2072 = vpop.f32.mrb[0].mxu0
      %2073 = vmatprep.mubr.f32.mxu0 0.0
      %2074 = vmatmul.mubr.f32.gmra.mrb[0].mxu0 %v1890
      %v2075 = vpop.f32.mrb[0].mxu0
      %v2076 = vadd.f32 %v1856, %v2075
      %v2077 = vpop.f32.mrb[0].mxu0
      %2078 = vmatprep.mubr.f32.mxu0 0.0
      %2079 = vmatmul.mubr.f32.gmra.mrb[0].mxu0 %v1893
      %v2080 = vpop.f32.mrb[0].mxu0
      %v2081 = vadd.f32 %v1856, %v2080
      %v2082 = vpop.f32.mrb[0].mxu0
      %2083 = vmatprep.mubr.f32.mxu0 0.0
      %2084 = vmatmul.mubr.f32.gmra.mrb[0].mxu0 %v1896
      %v2085 = vpop.f32.mrb[0].mxu0
      %v2086 = vadd.f32 %v1856, %v2085
      %v2087 = vpop.f32.mrb[0].mxu0
      %2088 = vmatprep.mubr.f32.mxu0 0.0
      %2089 = vmatmul.mubr.f32.gmra.mrb[0].mxu0 %v1899
      %v2090 = vpop.f32.mrb[0].mxu0
      %v2091 = vadd.f32 %v1856, %v2090
      %v2092 = vpop.f32.mrb[0].mxu0
      %2093 = vmatprep.mubr.f32.mxu0 0.0
      %2094 = vmatmul.mubr.f32.gmra.mrb[0].mxu0 %v1902
      %v2095 = vpop.f32.mrb[0].mxu0
      %v2096 = vadd.f32 %v1856, %v2095
      %v2097 = vpop.f32.mrb[0].mxu0
      %2098 = vmatprep.mubr.f32.mxu0 0.0
      %2099 = vmatmul.mubr.f32.gmra.mrb[0].mxu0 %v1905
      %v2100 = vpop.f32.mrb[0].mxu0
      %v2101 = vadd.f32 %v1856, %v2100
      %v2102 = vpop.f32.mrb[0].mxu0
      %2103 = vmatprep.mubr.f32.mxu0 0.0
      %2104 = vmatmul.mubr.f32.gmra.mrb[0].mxu0 %v1908
      %v2105 = vpop.f32.mrb[0].mxu0
      %v2106 = vadd.f32 %v1856, %v2105
      %v2107 = vpop.f32.mrb[0].mxu0
      %2108 = vmatprep.mubr.f32.mxu0 0.0
      %2109 = vmatmul.mubr.f32.gmra.mrb[0].mxu0 %v1911
      %v2110 = vpop.f32.mrb[0].mxu0
      %v2111 = vadd.f32 %v1856, %v2110
      %v2112 = vpop.f32.mrb[0].mxu0
      %2113 = vmatprep.mubr.f32.mxu0 0.0
      %2114 = vmatmul.mubr.f32.gmra.mrb[0].mxu0 %v1914
      %v2115 = vpop.f32.mrb[0].mxu0
      %v2116 = vadd.f32 %v1856, %v2115
      %v2117 = vpop.f32.mrb[0].mxu0
      %2118 = vmatprep.mubr.f32.mxu0 0.0
      %2119 = vmatmul.mubr.f32.gmra.mrb[0].mxu0 %v1917
      %v2120 = vpop.f32.mrb[0].mxu0
      %v2121 = vadd.f32 %v1856, %v2120
      %v2122 = vpop.f32.mrb[0].mxu0
      %2123 = vmatprep.mubr.f32.mxu0 0.0
      %2124 = vmatmul.mubr.f32.gmra.mrb[0].mxu0 %v1920
      %v2125 = vpop.f32.mrb[0].mxu0
      %v2126 = vadd.f32 %v1856, %v2125
      %v2127 = vpop.f32.mrb[0].mxu0
      %2128 = vmatprep.mubr.f32.mxu0 0.0
      %2129 = vmatmul.mubr.f32.gmra.mrb[0].mxu0 %v1923
      %v2130 = vpop.f32.mrb[0].mxu0
      %v2131 = vadd.f32 %v1856, %v2130
      %v2132 = vpop.f32.mrb[0].mxu0
      %2133 = vmatprep.mubr.f32.mxu0 0.0
      %2134 = vmatmul.mubr.f32.gmra.mrb[0].mxu0 %v1926
      %v2135 = vpop.f32.mrb[0].mxu0
      %v2136 = vadd.f32 %v1856, %v2135
      %v2137 = vpop.f32.mrb[0].mxu0
      %2138 = vmatprep.mubr.f32.mxu0 0.0
      %2139 = vmatmul.mubr.f32.gmra.mrb[0].mxu0 %v1929
      %v2140 = vpop.f32.mrb[0].mxu0
      %v2141 = vadd.f32 %v1856, %v2140
      %v2142 = vpop.f32.mrb[0].mxu0
      %2143 = vmatprep.mubr.f32.mxu0 0.0
      %2144 = vmatmul.mubr.f32.gmra.mrb[0].mxu0 %v1932
      %v2145 = vpop.f32.mrb[0].mxu0
      %v2146 = vadd.f32 %v1856, %v2145
      %v2147 = vpop.f32.mrb[0].mxu0
      %2148 = vmatprep.mubr.f32.mxu0 0.0
      %2149 = vmatmul.mubr.f32.gmra.mrb[0].mxu0 %v1935
      %v2150 = vpop.f32.mrb[0].mxu0
      %v2151 = vadd.f32 %v1856, %v2150
      %v2152 = vpop.f32.mrb[0].mxu0
      %2153 = vmatprep.mubr.f32.mxu0 0.0
      %2154 = vmatmul.mubr.f32.gmra.mrb[0].mxu0 %v1938
      %v2155 = vpop.f32.mrb[0].mxu0
      %v2156 = vadd.f32 %v1856, %v2155
      %v2157 = vpop.f32.mrb[0].mxu0
      %2158 = vmatprep.mubr.f32.mxu0 0.0
      %2159 = vmatmul.mubr.f32.gmra.mrb[0].mxu0 %v1941
      %v2160 = vpop.f32.mrb[0].mxu0
      %v2161 = vadd.f32 %v1856, %v2160
      %v2162 = vpop.f32.mrb[0].mxu0
      %2163 = vmatprep.mubr.f32.mxu0 0.0
      %2164 = vmatmul.mubr.f32.gmra.mrb[0].mxu0 %v1944
      %v2165 = vpop.f32.mrb[0].mxu0
      %v2166 = vadd.f32 %v1856, %v2165
      %v2167 = vpop.f32.mrb[0].mxu0
      %2168 = vmatprep.mubr.f32.mxu0 0.0
      %2169 = vmatmul.mubr.f32.gmra.mrb[0].mxu0 %v1947
      %v2170 = vpop.f32.mrb[0].mxu0
      %v2171 = vadd.f32 %v1856, %v2170
      %v2172 = vpop.f32.mrb[0].mxu0
      %2173 = vmatprep.mubr.f32.mxu0 0.0
      %2174 = vmatmul.mubr.f32.gmra.mrb[0].mxu0 %v1950
      %v2175 = vpop.f32.mrb[0].mxu0
      %v2176 = vadd.f32 %v1856, %v2175
      %v2177 = vpop.f32.mrb[0].mxu0
      %2178 = vmatprep.mubr.f32.mxu0 0.0
      %2179 = vmatmul.mubr.f32.gmra.mrb[0].mxu0 %v1953
      %v2180 = vpop.f32.mrb[0].mxu0
      %v2181 = vadd.f32 %v1856, %v2180
      %v2182 = vpop.f32.mrb[0].mxu0
      %2183 = vdwg.mxu0
      %2184 = vst [vmem:[%s194] sm:$0xff] %v2026
      %2185 = vst [vmem:[%s194 + $0x8] sm:$0xff] %v2031
      %2186 = vst [vmem:[%s194 + $0x10] sm:$0xff] %v2036
      %2187 = vst [vmem:[%s194 + $0x18] sm:$0xff] %v2041
      %2188 = vst [vmem:[%s194 + $0x20] sm:$0xff] %v2046
      %2189 = vst [vmem:[%s194 + $0x28] sm:$0xff] %v2051
      %2190 = vst [vmem:[%s194 + $0x30] sm:$0xff] %v2056
      %2191 = vst [vmem:[%s194 + $0x38] sm:$0xff] %v2061
      %2192 = vst [vmem:[%s194 + $0x40] sm:$0xff] %v2066
      %2193 = vst [vmem:[%s194 + $0x48] sm:$0xff] %v2071
      %2194 = vst [vmem:[%s194 + $0x50] sm:$0xff] %v2076
      %2195 = vst [vmem:[%s194 + $0x58] sm:$0xff] %v2081
      %2196 = vst [vmem:[%s194 + $0x60] sm:$0xff] %v2086
      %2197 = vst [vmem:[%s194 + $0x68] sm:$0xff] %v2091
      %2198 = vst [vmem:[%s194 + $0x70] sm:$0xff] %v2096
      %2199 = vst [vmem:[%s194 + $0x78] sm:$0xff] %v2101
      %2200 = vst [vmem:[%s194 + $0x80] sm:$0xff] %v2106
      %2201 = vst [vmem:[%s194 + $0x88] sm:$0xff] %v2111
      %2202 = vst [vmem:[%s194 + $0x90] sm:$0xff] %v2116
      %2203 = vst [vmem:[%s194 + $0x98] sm:$0xff] %v2121
      %2204 = vst [vmem:[%s194 + $0xa0] sm:$0xff] %v2126
      %2205 = vst [vmem:[%s194 + $0xa8] sm:$0xff] %v2131
      %2206 = vst [vmem:[%s194 + $0xb0] sm:$0xff] %v2136
      %2207 = vst [vmem:[%s194 + $0xb8] sm:$0xff] %v2141
      %2208 = vst [vmem:[%s194 + $0xc0] sm:$0xff] %v2146
      %2209 = vst [vmem:[%s194 + $0xc8] sm:$0xff] %v2151
      %2210 = vst [vmem:[%s194 + $0xd0] sm:$0xff] %v2156
      %2211 = vst [vmem:[%s194 + $0xd8] sm:$0xff] %v2161
      %2212 = vst [vmem:[%s194 + $0xe0] sm:$0xff] %v2166
      %2213 = vst [vmem:[%s194 + $0xe8] sm:$0xff] %v2171
      %2214 = vst [vmem:[%s194 + $0xf0] sm:$0xff] %v2176
      %2215 = vst [vmem:[%s194 + $0xf8] sm:$0xff] %v2181
      %s2216 = smul.u32 16, %s19
      %p2217 = scmp.lt.s32.totalorder %s18, 1
      %s2218 = scalar_select %p2217, %s18, 1
      %p2219 = scmp.lt.s32.totalorder %s2216, 15
      %s2220 = scalar_select %p2219, %s2216, 15
      %s2221 = smul.addr %s2220, 2
      %s2222 = smul.addr %s2218, 32
      %s2223 = sadd.s32 %s2221, %s2222
      %s2224 = smul.addr %s2223, 8
      %s2225 = scalar_lea.vmem %s3, %s2224
      // Predicated region
      $region33: #{_reflection_conv_impl.1} parent=31 // pred_check
        %p2226 = pneg %p114
      $region34: #{_reflection_conv_impl.1} parent=31 // pred_check_branch
        %2228 = sbr.rel (%p2226) target = $region36
      $region35: #{_reflection_conv_impl.1} parent=31 // pred_region
        %s2229 = smul.u32 16, %s19
      $region36: #{_reflection_conv_impl.1} parent=31 // pred_fallthru
        _
    $region32: #{_reflection_conv_impl.1} parent=5 // pred_fallthru
      _
    %p2230 = scmp.le.s32.totalorder 2, %s9
    // Predicated region
    $region37: #{_reflection_conv_impl.1} parent=5 // pred_check
      %p2231 = pneg %p2230
    $region38: #{_reflection_conv_impl.1} parent=5 // pred_check_branch
      %2233 = sbr.rel (%p2231) target = $region40
    $region39: #{_reflection_conv_impl.1} parent=5 // pred_region
      %s2234 = ssub.s32 %s9, 2
      // Predicated region
      $region41: #{_reflection_conv_impl.1} parent=39 // pred_check
        %p2235 = pneg %p120
      $region42: #{_reflection_conv_impl.1} parent=39 // pred_check_branch
        %2237 = sbr.rel (%p2235) target = $region44
      $region43: #{_reflection_conv_impl.1} parent=39 // pred_region
        %s2238 = smul.u32 16, %s21
        %p2239 = scmp.lt.s32.totalorder %s20, 1
        %s2240 = scalar_select %p2239, %s20, 1
        %p2241 = scmp.lt.s32.totalorder %s2238, 15
        %s2242 = scalar_select %p2241, %s2238, 15
        %s2243 = smul.addr %s2242, 2
        %s2244 = smul.addr %s2240, 32
        %s2245 = sadd.s32 %s2243, %s2244
        %s2246 = smul.addr %s2245, 8
        %s2247 = scalar_lea.vmem %s3, %s2246
      $region44: #{_reflection_conv_impl.1} parent=39 // pred_fallthru
        _
    $region40: #{_reflection_conv_impl.1} parent=5 // pred_fallthru
      _
  $region6: #{_reflection_conv_impl.1} parent=0 // loop_footer
    %s13 = sadd.s32 1, %s9
  $region7: #{_reflection_conv_impl.1} parent=0 // loop_footer_branch
    %8 = sbr.rel target = $region3
  $region8: #{_reflection_conv_impl.1} parent=0 // loop_exit
    _

</llo_original>
